<compile_context>
chip_gen: v5e
topology: v5e:2x2
jax: 0.10.0
libtpu: 0.0.40
codegen_flags: <defaults>
</compile_context>

<pallas_src>
import math
from functools import partial

import jax
import jax.numpy as jnp
from jax import lax
from jax.experimental import pallas as pl
from jax.experimental.pallas import tpu as pltpu


# ------------------------------ tiling helper ------------------------------- #

def _pick_tile(dim, pref, aligns=(8,)):
    """Largest tile <= pref that divides dim and is a multiple of an alignment
    (tried in order), else the full dim."""
    if dim <= pref:
        return dim
    for align in aligns:
        t = (pref // align) * align
        while t >= align:
            if dim % t == 0:
                return t
            t -= align
    return dim


def _gelu_tanh(x):
    # TODO(synk): HF 'gelu' is exact erf-GELU; tanh approximation used since erf
    # lowering in Mosaic is not guaranteed across toolchains.
    c = math.sqrt(2.0 / math.pi)
    return 0.5 * x * (1.0 + jnp.tanh(c * (x + 0.044715 * x * x * x)))


# ----------------------------- tiled linear kernels ------------------------- #

def _linear_kernel(*refs, has_bias, activation):
    if has_bias:
        x_ref, w_ref, b_ref, o_ref, acc_ref = refs
    else:
        x_ref, w_ref, o_ref, acc_ref = refs
        b_ref = None
    k = pl.program_id(2)

    @pl.when(k == 0)
    def _init():
        acc_ref[...] = jnp.zeros_like(acc_ref)

    acc_ref[...] += jnp.dot(x_ref[...].astype(jnp.bfloat16), w_ref[...],
                            preferred_element_type=jnp.float32)

    @pl.when(k == pl.num_programs(2) - 1)
    def _finalize():
        y = acc_ref[...]
        if has_bias:
            y = y + b_ref[...]
        if activation == "gelu":
            y = _gelu_tanh(y)
        o_ref[...] = y.astype(o_ref.dtype)


def pallas_linear(x, w, b=None, activation=None, out_dtype=jnp.float32,
                  tm_pref=256, tn_pref=512, tk_pref=1024):
    """x: [M,K] (f32 or bf16), w: [K,N] bf16 (pre-transposed), b: [N] f32 or None."""
    M, K = x.shape
    N = w.shape[1]
    tm = _pick_tile(M, tm_pref, (8,))
    tk = _pick_tile(K, tk_pref, (256, 128))
    tn = _pick_tile(N, tn_pref, (256, 128))

    in_specs = [
        pl.BlockSpec((tm, tk), lambda i, j, k: (i, k)),
        pl.BlockSpec((tk, tn), lambda i, j, k: (k, j)),
    ]
    args = [x, w]
    if b is not None:
        in_specs.append(pl.BlockSpec((1, tn), lambda i, j, k: (0, j)))
        args.append(b.reshape(1, N))

    return pl.pallas_call(
        partial(_linear_kernel, has_bias=b is not None, activation=activation),
        out_shape=jax.ShapeDtypeStruct((M, N), out_dtype),
        grid=(M // tm, N // tn, K // tk),
        in_specs=in_specs,
        out_specs=pl.BlockSpec((tm, tn), lambda i, j, k: (i, j)),
        scratch_shapes=[pltpu.VMEM((tm, tn), jnp.float32)],
        compiler_params=pltpu.CompilerParams(
            dimension_semantics=("parallel", "parallel", "arbitrary")),
    )(*args)


def _linear_res_ln_kernel(x_ref, w_ref, b_ref, r_ref, g_ref, bt_ref, o_ref,
                          acc_ref, *, eps):
    k = pl.program_id(1)

    @pl.when(k == 0)
    def _init():
        acc_ref[...] = jnp.zeros_like(acc_ref)

    acc_ref[...] += jnp.dot(x_ref[...].astype(jnp.bfloat16), w_ref[...],
                            preferred_element_type=jnp.float32)

    @pl.when(k == pl.num_programs(1) - 1)
    def _finalize():
        # y = x@w + bias + residual ; then DebertaLayerNorm (f32 stats)
        y = acc_ref[...] + b_ref[...] + r_ref[...].astype(jnp.float32)
        mean = jnp.mean(y, axis=-1, keepdims=True)
        var = jnp.mean((y - mean) ** 2, axis=-1, keepdims=True)
        yn = (y - mean) * lax.rsqrt(var + eps)
        o_ref[...] = (g_ref[...] * yn + bt_ref[...]).astype(o_ref.dtype)


def pallas_linear_residual_ln(x, w, b, residual, gamma, beta, eps,
                              out_dtype=jnp.float32, tm_pref=256, tk_pref=1024):
    """(x @ w + b + residual) -> DebertaLayerNorm, fused. N kept whole (LN row)."""
    M, K = x.shape
    N = w.shape[1]
    tm = _pick_tile(M, tm_pref, (8,))
    tk = _pick_tile(K, tk_pref, (256, 128))

    return pl.pallas_call(
        partial(_linear_res_ln_kernel, eps=eps),
        out_shape=jax.ShapeDtypeStruct((M, N), out_dtype),
        grid=(M // tm, K // tk),
        in_specs=[
            pl.BlockSpec((tm, tk), lambda i, k: (i, k)),
            pl.BlockSpec((tk, N), lambda i, k: (k, 0)),
            pl.BlockSpec((1, N), lambda i, k: (0, 0)),
            pl.BlockSpec((tm, N), lambda i, k: (i, 0)),
            pl.BlockSpec((1, N), lambda i, k: (0, 0)),
            pl.BlockSpec((1, N), lambda i, k: (0, 0)),
        ],
        out_specs=pl.BlockSpec((tm, N), lambda i, k: (i, 0)),
        scratch_shapes=[pltpu.VMEM((tm, N), jnp.float32)],
        compiler_params=pltpu.CompilerParams(
            dimension_semantics=("parallel", "arbitrary")),
    )(x, w, b.reshape(1, N), residual, gamma.reshape(1, N), beta.reshape(1, N))


# ---------------------- disentangled attention kernel ----------------------- #

def _disentangled_attn_kernel(qkv_ref, pk_ref, pq_ref, qb_ref, vb_ref,
                              mrow_ref, mcol_ref, o_ref, *,
                              span, scale_factor, use_gather):
    # One (batch, head) pair per program.
    f32 = jnp.float32
    bf16 = jnp.bfloat16
    S, Dh = o_ref.shape
    two_span = 2 * span
    inv_scale = 1.0 / math.sqrt(Dh * scale_factor)
    neg = float(jnp.finfo(f32).min)

    q = (qkv_ref[0].astype(f32) + qb_ref[...]) * inv_scale   # fused q_bias + scale
    q = q.astype(bf16)
    k = qkv_ref[1]                                            # bf16, no f32 round trip
    v = qkv_ref[2] + vb_ref[...]                              # fused v_bias (bf16)

    # mask[i, j] = mask_i * mask_j > 0   (built in-kernel from the [B,S] vector)
    valid = (mcol_ref[...] * mrow_ref[...]) > 0.0             # [S, S]

    dn_t = (((1,), (1,)), ((), ()))                           # A @ B^T
    dn = (((1,), (0,)), ((), ()))                             # A @ B

    scores = lax.dot_general(q, k, dn_t, preferred_element_type=f32)        # [S, S]
    c2p_full = lax.dot_general(q, pk_ref[...], dn_t,
                               preferred_element_type=f32)                  # [S, 2span]

    ri = lax.broadcasted_iota(jnp.int32, (S, S), 0)
    ci = lax.broadcasted_iota(jnp.int32, (S, S), 1)
    c2p_idx = jnp.clip(ri - ci + span, 0, two_span - 1)       # clamp(i - j + span)

    if use_gather:
        kp_full = lax.dot_general(k, pq_ref[...], dn_t,
                                  preferred_element_type=f32) * inv_scale   # [S, 2span]
        p2c_idx = jnp.clip(ci - ri + span, 0, two_span - 1)   # clamp(j - i + span)
        c2p = jnp.take_along_axis(c2p_full, c2p_idx, axis=-1)               # [S, S]
        p2c = jnp.take_along_axis(kp_full, p2c_idx, axis=-1).T              # [S, S]
    else:
        # TODO(synk): fallback select-accumulate gather (only used when the lane-dim
        # dynamic gather does not lower on this toolchain).
        p2c_full_t = lax.dot_general(pq_ref[...], k, dn_t,
                                     preferred_element_type=f32) * inv_scale  # [2span,S]
        c2p = jnp.zeros((S, S), f32)
        p2c = jnp.zeros((S, S), f32)
        for m in range(two_span):
            sel = c2p_idx == m
            c2p = c2p + jnp.where(sel, c2p_full[:, m:m + 1], 0.0)
            p2c = p2c + jnp.where(sel, p2c_full_t[m:m + 1, :], 0.0)

    scores = scores + c2p + p2c
    scores = jnp.where(valid, scores, neg)

    smax = jnp.max(scores, axis=-1, keepdims=True)
    p = jnp.exp(scores - smax)
    denom = jnp.sum(p, axis=-1, keepdims=True)
    probs = p * pl.reciprocal(denom, approx=True)

    ctx = lax.dot_general(probs.astype(bf16), v, dn, preferred_element_type=f32)
    o_ref[...] = ctx.astype(o_ref.dtype)


def pallas_disentangled_attention(qkv_t, pos_k, pos_q, q_bias, v_bias,
                                  mask_row, mask_col, *, num_heads, span,
                                  scale_factor, use_gather):
    _, B, NH, S, Dh = qkv_t.shape
    two_span = 2 * span

    kernel = partial(_disentangled_attn_kernel, span=span,
                     scale_factor=scale_factor, use_gather=use_gather)
    return pl.pallas_call(
        kernel,
        out_shape=jax.ShapeDtypeStruct((B, NH, S, Dh), jnp.bfloat16),
        grid=(B, NH),
        in_specs=[
            pl.BlockSpec((3, None, None, S, Dh), lambda b, h: (0, b, h, 0, 0)),  # q/k/v
            pl.BlockSpec((None, two_span, Dh), lambda b, h: (h, 0, 0)),          # pos_k
            pl.BlockSpec((None, two_span, Dh), lambda b, h: (h, 0, 0)),          # pos_q
            pl.BlockSpec((None, 1, Dh), lambda b, h: (h, 0, 0)),                 # q_bias
            pl.BlockSpec((None, 1, Dh), lambda b, h: (h, 0, 0)),                 # v_bias
            pl.BlockSpec((None, 1, S), lambda b, h: (b, 0, 0)),                  # mask row
            pl.BlockSpec((None, S, 1), lambda b, h: (b, 0, 0)),                  # mask col
        ],
        out_specs=pl.BlockSpec((None, None, S, Dh), lambda b, h: (b, h, 0, 0)),
        compiler_params=pltpu.CompilerParams(
            dimension_semantics=("parallel", "parallel")),
    )(qkv_t, pos_k, pos_q,
      q_bias.reshape(NH, 1, Dh),
      v_bias.astype(jnp.bfloat16).reshape(NH, 1, Dh),
      mask_row, mask_col)


# --------------------- lane-gather capability probe ------------------------- #

def _probe_lane_gather(S, two_span):
    """Compile+run a tiny kernel using the exact take_along_axis pattern used in the
    attention kernel; fall back to the select-accumulate gather on failure."""
    def _k(s_ref, i_ref, o_ref):
        o_ref[...] = jnp.take_along_axis(s_ref[...], i_ref[...], axis=-1)

    try:
        src = jax.random.normal(jax.random.PRNGKey(1), (S, two_span), jnp.float32)
        idx = jax.random.randint(jax.random.PRNGKey(2), (S, S), 0, two_span,
                                 dtype=jnp.int32)
        out = pl.pallas_call(
            _k, out_shape=jax.ShapeDtypeStruct((S, S), jnp.float32))(src, idx)
        jax.block_until_ready(out)
        ref = jnp.take_along_axis(src, idx, axis=-1)
        return bool(jnp.allclose(out, ref, atol=0, rtol=0))
    except Exception:
        return False


# ------------------------------- model glue --------------------------------- #

def deberta_layer(lp, hidden, mask_row, mask_col, rel_emb_span, span, cfg):
    B, S, H = hidden.shape
    NH = cfg["num_heads"]
    Dh = H // NH
    two_span = 2 * span
    scale_factor = 1 + len(cfg["pos_att_type"])              # = 3 (c2p + p2c)

    x2 = hidden.reshape(B * S, H)

    # in_proj (no bias): columns laid out [q | k | v], head-major within each chunk.
    qkv = pallas_linear(x2, lp["in_proj_w"], out_dtype=jnp.bfloat16)     # [B*S, 3H]
    # one wrapper relayout so BlockSpec delivers 128-aligned per-head [S, Dh] tiles
    qkv_t = qkv.reshape(B, S, 3, NH, Dh).transpose(2, 0, 3, 1, 4)        # [3,B,NH,S,Dh]

    # relative-position projections (shared over batch), bf16 (matmul-only consumers)
    pos_k = pallas_linear(rel_emb_span, lp["pos_proj_w"], out_dtype=jnp.bfloat16)
    pos_q = pallas_linear(rel_emb_span, lp["pos_q_proj_w"], lp["pos_q_proj_b"],
                          out_dtype=jnp.bfloat16)
    pos_k = pos_k.reshape(two_span, NH, Dh).transpose(1, 0, 2)           # [NH,2span,Dh]
    pos_q = pos_q.reshape(two_span, NH, Dh).transpose(1, 0, 2)

    ctx = pallas_disentangled_attention(
        qkv_t, pos_k, pos_q, lp["q_bias"], lp["v_bias"], mask_row, mask_col,
        num_heads=NH, span=span, scale_factor=scale_factor,
        use_gather=cfg["use_lane_gather"])                               # [B,NH,S,Dh]
    ctx2 = ctx.transpose(0, 2, 1, 3).reshape(B * S, H)

    # DebertaSelfOutput: dense + residual + LayerNorm (fused); bf16 out feeds the MLP
    so = pallas_linear_residual_ln(ctx2, lp["attn_out_w"], lp["attn_out_b"],
                                   x2, lp["attn_ln_g"], lp["attn_ln_b"],
                                   cfg["ln_eps"], out_dtype=jnp.bfloat16)

    # DebertaIntermediate (GELU fused) + DebertaOutput (residual + LN fused)
    inter = pallas_linear(so, lp["inter_w"], lp["inter_b"],
                          activation="gelu", out_dtype=jnp.bfloat16)
    out = pallas_linear_residual_ln(inter, lp["out_w"], lp["out_b"],
                                    so, lp["out_ln_g"], lp["out_ln_b"],
                                    cfg["ln_eps"], out_dtype=jnp.float32)
    return out.reshape(B, S, H)


def deberta_encoder(params, hidden_states, attention_mask, cfg):
    B, S, H = hidden_states.shape
    m = attention_mask.astype(jnp.float32)
    mask_row = m.reshape(B, 1, S)
    mask_col = m.reshape(B, S, 1)

    max_rel = cfg["max_relative_positions"]
    span = min(S, max_rel)                                   # att_span
    rel_emb_span = params["rel_embeddings"][max_rel - span: max_rel + span]

    all_hidden_states = (hidden_states,)
    x = hidden_states
    for lp in params["layers"]:
        x = deberta_layer(lp, x, mask_row, mask_col, rel_emb_span, span, cfg)
        all_hidden_states = all_hidden_states + (x,)
    return x, all_hidden_states, None


# -------------------------------- param init -------------------------------- #

def init_params(key, cfg):
    H = cfg["hidden_size"]
    I = cfg["intermediate_size"]
    L = cfg["num_layers"]
    max_rel = cfg["max_relative_positions"]

    def w(k, shape):   # weights stored pre-transposed [in, out] and in bf16 (MXU)
        return (0.02 * jax.random.normal(k, shape, jnp.float32)).astype(jnp.bfloat16)

    def b(k, shape):
        return 0.02 * jax.random.normal(k, shape, jnp.float32)

    keys = jax.random.split(key, L + 1)
    layers = []
    for li in range(L):
        lk = jax.random.split(keys[li], 12)
        layers.append(dict(
            # TODO(synk): when loading a PyTorch checkpoint, permute in_proj columns
            # from the interleaved per-head [q|k|v] layout to this [q|k|v] head-major
            # layout (pure column permutation, mathematically equivalent).
            in_proj_w=w(lk[0], (H, 3 * H)),        # nn.Linear(H, 3H, bias=False)^T
            q_bias=b(lk[1], (H,)),
            v_bias=b(lk[2], (H,)),
            pos_proj_w=w(lk[3], (H, H)),           # bias=False
            pos_q_proj_w=w(lk[4], (H, H)),
            pos_q_proj_b=b(lk[5], (H,)),
            attn_out_w=w(lk[6], (H, H)),
            attn_out_b=b(lk[7], (H,)),
            attn_ln_g=jnp.ones((H,), jnp.float32),
            attn_ln_b=jnp.zeros((H,), jnp.float32),
            inter_w=w(lk[8], (H, I)),
            inter_b=b(lk[9], (I,)),
            out_w=w(lk[10], (I, H)),
            out_b=b(lk[11], (H,)),
            out_ln_g=jnp.ones((H,), jnp.float32),
            out_ln_b=jnp.zeros((H,), jnp.float32),
        ))
    rel_emb = 0.02 * jax.random.normal(keys[L], (2 * max_rel, H), jnp.float32)
    return dict(layers=layers, rel_embeddings=rel_emb)


# ----------------------------------- main ------------------------------------ #

if __name__ == "__main__":
    cfg = dict(
        hidden_size=32,
        num_heads=4,
        intermediate_size=64,
        num_layers=2,
        max_relative_positions=16,        # max_position_embeddings
        pos_att_type=("c2p", "p2c"),
        ln_eps=1e-7,
    )
    B, S = 2, 8

    span = min(S, cfg["max_relative_positions"])
    cfg["use_lane_gather"] = _probe_lane_gather(S, 2 * span)

    key = jax.random.PRNGKey(0)
    kp, kh = jax.random.split(key)
    params = init_params(kp, cfg)
    hidden_states = jax.random.normal(kh, (B, S, cfg["hidden_size"]), jnp.float32)
    attention_mask = jnp.ones((B, S), jnp.int32).at[1, -2:].set(0)

    fwd = jax.jit(partial(deberta_encoder, cfg=cfg))
    last_hidden, all_hidden, _ = fwd(params, hidden_states, attention_mask)
    jax.block_until_ready(last_hidden)

    assert last_hidden.shape == (B, S, cfg["hidden_size"])
    assert len(all_hidden) == cfg["num_layers"] + 1
    assert bool(jnp.all(jnp.isfinite(last_hidden.astype(jnp.float32))))
    print("KERNEL_OK")
</pallas_src>

<mosaic_0001>
module attributes {stable_mosaic.version = 11 : i64} {
  func.func @_k(%arg0: memref<8x16xf32, #tpu.memory_space<vmem>>, %arg1: memref<8x8xi32, #tpu.memory_space<vmem>>, %arg2: memref<8x8xf32, #tpu.memory_space<vmem>>) attributes {dimension_semantics = [], scalar_prefetch = 0 : i64, scratch_operands = 0 : i64, tpu.core_type = #tpu.core_type<tc>} {
    %c0 = arith.constant 0 : index
    %c0_0 = arith.constant 0 : index
    %0 = vector.load %arg0[%c0, %c0_0] : memref<8x16xf32, #tpu.memory_space<vmem>>, vector<8x16xf32>
    %c0_1 = arith.constant 0 : index
    %c0_2 = arith.constant 0 : index
    %1 = vector.load %arg1[%c0_1, %c0_2] : memref<8x8xi32, #tpu.memory_space<vmem>>, vector<8x8xi32>
    %c0_i32 = arith.constant 0 : i32
    %2 = vector.broadcast %c0_i32 : i32 to vector<8x8xi32>
    %3 = arith.cmpi slt, %1, %2 : vector<8x8xi32>
    %c16_i32 = arith.constant 16 : i32
    %4 = vector.broadcast %c16_i32 : i32 to vector<8x8xi32>
    %5 = arith.addi %1, %4 : vector<8x8xi32>
    %6 = arith.select %3, %5, %1 : vector<8x8xi1>, vector<8x8xi32>
    %7 = vector.shape_cast %6 : vector<8x8xi32> to vector<8x8x1xi32>
    %8 = vector.shape_cast %7 : vector<8x8x1xi32> to vector<8x8xi32>
    %9 = tpu.dynamic_gather %0[%8] in [1] : vector<8x16xf32>, vector<8x8xi32> -> vector<8x8xf32>
    %c0_3 = arith.constant 0 : index
    %c0_4 = arith.constant 0 : index
    %10 = vector.load %arg2[%c0_3, %c0_4] : memref<8x8xf32, #tpu.memory_space<vmem>>, vector<8x8xf32>
    tpu.vector_store %arg2[%c0_3, %c0_4], %9 {strides = array<i32>} : memref<8x8xf32, #tpu.memory_space<vmem>>, vector<8x8xf32>,
    return
  }
}

module attributes {stable_mosaic.version = 11 : i64} {
  func.func @_linear_kernel(%arg0: i32, %arg1: i32, %arg2: i32, %arg3: memref<16x32xf32, #tpu.memory_space<vmem>>, %arg4: memref<32x32xbf16, #tpu.memory_space<vmem>>, %arg5: memref<16x32xbf16, #tpu.memory_space<vmem>>, %arg6: memref<16x32xf32, #tpu.memory_space<vmem>>) attributes {dimension_semantics = [#tpu.dimension_semantics<parallel>, #tpu.dimension_semantics<parallel>, #tpu.dimension_semantics<arbitrary>], iteration_bounds = array<i64: 1, 1, 1>, scalar_prefetch = 0 : i64, scratch_operands = 1 : i64, tpu.core_type = #tpu.core_type<tc>, window_params = [{transform_indices = @transform_0, window_bounds = array<i64: 16, 32>}, {transform_indices = @transform_1, window_bounds = array<i64: 32, 32>}, {transform_indices = @transform_2, window_bounds = array<i64: 16, 32>}]} {
    %c0_i32 = arith.constant 0 : i32
    %0 = arith.cmpi eq, %arg2, %c0_i32 : i32
    %1 = arith.extui %0 : i1 to i32
    %c0_i32_0 = arith.constant 0 : i32
    %2 = arith.cmpi ne, %1, %c0_i32_0 : i32
    scf.if %2 {
      %cst_10 = arith.constant 0.000000e+00 : f32
      %13 = vector.broadcast %cst_10 : f32 to vector<16x32xf32>
      %c0_11 = arith.constant 0 : index
      %c0_12 = arith.constant 0 : index
      %14 = vector.load %arg6[%c0_11, %c0_12] : memref<16x32xf32, #tpu.memory_space<vmem>>, vector<16x32xf32>
      tpu.vector_store %arg6[%c0_11, %c0_12], %13 {strides = array<i32>} : memref<16x32xf32, #tpu.memory_space<vmem>>, vector<16x32xf32>,
    } else {
    }
    %c0 = arith.constant 0 : index
    %c0_1 = arith.constant 0 : index
    %3 = vector.load %arg6[%c0, %c0_1] : memref<16x32xf32, #tpu.memory_space<vmem>>, vector<16x32xf32>
    %c0_2 = arith.constant 0 : index
    %c0_3 = arith.constant 0 : index
    %4 = vector.load %arg3[%c0_2, %c0_3] : memref<16x32xf32, #tpu.memory_space<vmem>>, vector<16x32xf32>
    %5 = arith.truncf %4 : vector<16x32xf32> to vector<16x32xbf16>
    %c0_4 = arith.constant 0 : index
    %c0_5 = arith.constant 0 : index
    %6 = vector.load %arg4[%c0_4, %c0_5] : memref<32x32xbf16, #tpu.memory_space<vmem>>, vector<32x32xbf16>
    %cst = arith.constant dense<0.000000e+00> : vector<16x32xf32>
    %7 = tpu.matmul %5, %6, %cst {dimension_numbers = #tpu.dot_dimension_numbers<[1], [0], [0], [1], [0, 0, 1, 1], [], []>} : vector<16x32xbf16>, vector<32x32xbf16>, vector<16x32xf32> -> vector<16x32xf32>
    %8 = arith.addf %3, %7 : vector<16x32xf32>
    %c0_6 = arith.constant 0 : index
    %c0_7 = arith.constant 0 : index
    %9 = vector.load %arg6[%c0_6, %c0_7] : memref<16x32xf32, #tpu.memory_space<vmem>>, vector<16x32xf32>
    tpu.vector_store %arg6[%c0_6, %c0_7], %8 {strides = array<i32>} : memref<16x32xf32, #tpu.memory_space<vmem>>, vector<16x32xf32>,
    %c0_i32_8 = arith.constant 0 : i32
    %10 = arith.cmpi eq, %arg2, %c0_i32_8 : i32
    %11 = arith.extui %10 : i1 to i32
    %c0_i32_9 = arith.constant 0 : i32
    %12 = arith.cmpi ne, %11, %c0_i32_9 : i32
    scf.if %12 {
      %c0_10 = arith.constant 0 : index
      %c0_11 = arith.constant 0 : index
      %13 = vector.load %arg6[%c0_10, %c0_11] : memref<16x32xf32, #tpu.memory_space<vmem>>, vector<16x32xf32>
      %14 = arith.truncf %13 : vector<16x32xf32> to vector<16x32xbf16>
      %c0_12 = arith.constant 0 : index
      %c0_13 = arith.constant 0 : index
      %15 = vector.load %arg5[%c0_12, %c0_13] : memref<16x32xbf16, #tpu.memory_space<vmem>>, vector<16x32xbf16>
      tpu.vector_store %arg5[%c0_12, %c0_13], %14 {strides = array<i32>} : memref<16x32xbf16, #tpu.memory_space<vmem>>, vector<16x32xbf16>,
    } else {
    }
    return
  }
  func.func @transform_0(%arg0: i32, %arg1: i32, %arg2: i32) -> (i32, i32) {
    %c0_i32 = arith.constant 0 : i32
    return %arg0, %arg2 : i32, i32
  }
  func.func @transform_1(%arg0: i32, %arg1: i32, %arg2: i32) -> (i32, i32) {
    %c0_i32 = arith.constant 0 : i32
    return %arg2, %arg1 : i32, i32
  }
  func.func @transform_2(%arg0: i32, %arg1: i32, %arg2: i32) -> (i32, i32) {
    %c0_i32 = arith.constant 0 : i32
    return %arg0, %arg1 : i32, i32
  }
}

module attributes {stable_mosaic.version = 11 : i64} {
  func.func @_linear_kernel(%arg0: i32, %arg1: i32, %arg2: i32, %arg3: memref<16x32xf32, #tpu.memory_space<vmem>>, %arg4: memref<32x96xbf16, #tpu.memory_space<vmem>>, %arg5: memref<16x96xbf16, #tpu.memory_space<vmem>>, %arg6: memref<16x96xf32, #tpu.memory_space<vmem>>) attributes {dimension_semantics = [#tpu.dimension_semantics<parallel>, #tpu.dimension_semantics<parallel>, #tpu.dimension_semantics<arbitrary>], iteration_bounds = array<i64: 1, 1, 1>, scalar_prefetch = 0 : i64, scratch_operands = 1 : i64, tpu.core_type = #tpu.core_type<tc>, window_params = [{transform_indices = @transform_0, window_bounds = array<i64: 16, 32>}, {transform_indices = @transform_1, window_bounds = array<i64: 32, 96>}, {transform_indices = @transform_2, window_bounds = array<i64: 16, 96>}]} {
    %c0_i32 = arith.constant 0 : i32
    %0 = arith.cmpi eq, %arg2, %c0_i32 : i32
    %1 = arith.extui %0 : i1 to i32
    %c0_i32_0 = arith.constant 0 : i32
    %2 = arith.cmpi ne, %1, %c0_i32_0 : i32
    scf.if %2 {
      %cst_10 = arith.constant 0.000000e+00 : f32
      %13 = vector.broadcast %cst_10 : f32 to vector<16x96xf32>
      %c0_11 = arith.constant 0 : index
      %c0_12 = arith.constant 0 : index
      %14 = vector.load %arg6[%c0_11, %c0_12] : memref<16x96xf32, #tpu.memory_space<vmem>>, vector<16x96xf32>
      tpu.vector_store %arg6[%c0_11, %c0_12], %13 {strides = array<i32>} : memref<16x96xf32, #tpu.memory_space<vmem>>, vector<16x96xf32>,
    } else {
    }
    %c0 = arith.constant 0 : index
    %c0_1 = arith.constant 0 : index
    %3 = vector.load %arg6[%c0, %c0_1] : memref<16x96xf32, #tpu.memory_space<vmem>>, vector<16x96xf32>
    %c0_2 = arith.constant 0 : index
    %c0_3 = arith.constant 0 : index
    %4 = vector.load %arg3[%c0_2, %c0_3] : memref<16x32xf32, #tpu.memory_space<vmem>>, vector<16x32xf32>
    %5 = arith.truncf %4 : vector<16x32xf32> to vector<16x32xbf16>
    %c0_4 = arith.constant 0 : index
    %c0_5 = arith.constant 0 : index
    %6 = vector.load %arg4[%c0_4, %c0_5] : memref<32x96xbf16, #tpu.memory_space<vmem>>, vector<32x96xbf16>
    %cst = arith.constant dense<0.000000e+00> : vector<16x96xf32>
    %7 = tpu.matmul %5, %6, %cst {dimension_numbers = #tpu.dot_dimension_numbers<[1], [0], [0], [1], [0, 0, 1, 1], [], []>} : vector<16x32xbf16>, vector<32x96xbf16>, vector<16x96xf32> -> vector<16x96xf32>
    %8 = arith.addf %3, %7 : vector<16x96xf32>
    %c0_6 = arith.constant 0 : index
    %c0_7 = arith.constant 0 : index
    %9 = vector.load %arg6[%c0_6, %c0_7] : memref<16x96xf32, #tpu.memory_space<vmem>>, vector<16x96xf32>
    tpu.vector_store %arg6[%c0_6, %c0_7], %8 {strides = array<i32>} : memref<16x96xf32, #tpu.memory_space<vmem>>, vector<16x96xf32>,
    %c0_i32_8 = arith.constant 0 : i32
    %10 = arith.cmpi eq, %arg2, %c0_i32_8 : i32
    %11 = arith.extui %10 : i1 to i32
    %c0_i32_9 = arith.constant 0 : i32
    %12 = arith.cmpi ne, %11, %c0_i32_9 : i32
    scf.if %12 {
      %c0_10 = arith.constant 0 : index
      %c0_11 = arith.constant 0 : index
      %13 = vector.load %arg6[%c0_10, %c0_11] : memref<16x96xf32, #tpu.memory_space<vmem>>, vector<16x96xf32>
      %14 = arith.truncf %13 : vector<16x96xf32> to vector<16x96xbf16>
      %c0_12 = arith.constant 0 : index
      %c0_13 = arith.constant 0 : index
      %15 = vector.load %arg5[%c0_12, %c0_13] : memref<16x96xbf16, #tpu.memory_space<vmem>>, vector<16x96xbf16>
      tpu.vector_store %arg5[%c0_12, %c0_13], %14 {strides = array<i32>} : memref<16x96xbf16, #tpu.memory_space<vmem>>, vector<16x96xbf16>,
    } else {
    }
    return
  }
  func.func @transform_0(%arg0: i32, %arg1: i32, %arg2: i32) -> (i32, i32) {
    %c0_i32 = arith.constant 0 : i32
    return %arg0, %arg2 : i32, i32
  }
  func.func @transform_1(%arg0: i32, %arg1: i32, %arg2: i32) -> (i32, i32) {
    %c0_i32 = arith.constant 0 : i32
    return %arg2, %arg1 : i32, i32
  }
  func.func @transform_2(%arg0: i32, %arg1: i32, %arg2: i32) -> (i32, i32) {
    %c0_i32 = arith.constant 0 : i32
    return %arg0, %arg1 : i32, i32
  }
}

module attributes {stable_mosaic.version = 11 : i64} {
  func.func @_linear_kernel(%arg0: i32, %arg1: i32, %arg2: i32, %arg3: memref<16x32xf32, #tpu.memory_space<vmem>>, %arg4: memref<32x32xbf16, #tpu.memory_space<vmem>>, %arg5: memref<1x32xf32, #tpu.memory_space<vmem>>, %arg6: memref<16x32xbf16, #tpu.memory_space<vmem>>, %arg7: memref<16x32xf32, #tpu.memory_space<vmem>>) attributes {dimension_semantics = [#tpu.dimension_semantics<parallel>, #tpu.dimension_semantics<parallel>, #tpu.dimension_semantics<arbitrary>], iteration_bounds = array<i64: 1, 1, 1>, scalar_prefetch = 0 : i64, scratch_operands = 1 : i64, tpu.core_type = #tpu.core_type<tc>, window_params = [{transform_indices = @transform_0, window_bounds = array<i64: 16, 32>}, {transform_indices = @transform_1, window_bounds = array<i64: 32, 32>}, {transform_indices = @transform_2, window_bounds = array<i64: 1, 32>}, {transform_indices = @transform_3, window_bounds = array<i64: 16, 32>}]} {
    %c0_i32 = arith.constant 0 : i32
    %0 = arith.cmpi eq, %arg2, %c0_i32 : i32
    %1 = arith.extui %0 : i1 to i32
    %c0_i32_0 = arith.constant 0 : i32
    %2 = arith.cmpi ne, %1, %c0_i32_0 : i32
    scf.if %2 {
      %cst_10 = arith.constant 0.000000e+00 : f32
      %13 = vector.broadcast %cst_10 : f32 to vector<16x32xf32>
      %c0_11 = arith.constant 0 : index
      %c0_12 = arith.constant 0 : index
      %14 = vector.load %arg7[%c0_11, %c0_12] : memref<16x32xf32, #tpu.memory_space<vmem>>, vector<16x32xf32>
      tpu.vector_store %arg7[%c0_11, %c0_12], %13 {strides = array<i32>} : memref<16x32xf32, #tpu.memory_space<vmem>>, vector<16x32xf32>,
    } else {
    }
    %c0 = arith.constant 0 : index
    %c0_1 = arith.constant 0 : index
    %3 = vector.load %arg7[%c0, %c0_1] : memref<16x32xf32, #tpu.memory_space<vmem>>, vector<16x32xf32>
    %c0_2 = arith.constant 0 : index
    %c0_3 = arith.constant 0 : index
    %4 = vector.load %arg3[%c0_2, %c0_3] : memref<16x32xf32, #tpu.memory_space<vmem>>, vector<16x32xf32>
    %5 = arith.truncf %4 : vector<16x32xf32> to vector<16x32xbf16>
    %c0_4 = arith.constant 0 : index
    %c0_5 = arith.constant 0 : index
    %6 = vector.load %arg4[%c0_4, %c0_5] : memref<32x32xbf16, #tpu.memory_space<vmem>>, vector<32x32xbf16>
    %cst = arith.constant dense<0.000000e+00> : vector<16x32xf32>
    %7 = tpu.matmul %5, %6, %cst {dimension_numbers = #tpu.dot_dimension_numbers<[1], [0], [0], [1], [0, 0, 1, 1], [], []>} : vector<16x32xbf16>, vector<32x32xbf16>, vector<16x32xf32> -> vector<16x32xf32>
    %8 = arith.addf %3, %7 : vector<16x32xf32>
    %c0_6 = arith.constant 0 : index
    %c0_7 = arith.constant 0 : index
    %9 = vector.load %arg7[%c0_6, %c0_7] : memref<16x32xf32, #tpu.memory_space<vmem>>, vector<16x32xf32>
    tpu.vector_store %arg7[%c0_6, %c0_7], %8 {strides = array<i32>} : memref<16x32xf32, #tpu.memory_space<vmem>>, vector<16x32xf32>,
    %c0_i32_8 = arith.constant 0 : i32
    %10 = arith.cmpi eq, %arg2, %c0_i32_8 : i32
    %11 = arith.extui %10 : i1 to i32
    %c0_i32_9 = arith.constant 0 : i32
    %12 = arith.cmpi ne, %11, %c0_i32_9 : i32
    scf.if %12 {
      %c0_10 = arith.constant 0 : index
      %c0_11 = arith.constant 0 : index
      %13 = vector.load %arg7[%c0_10, %c0_11] : memref<16x32xf32, #tpu.memory_space<vmem>>, vector<16x32xf32>
      %c0_12 = arith.constant 0 : index
      %c0_13 = arith.constant 0 : index
      %14 = vector.load %arg5[%c0_12, %c0_13] : memref<1x32xf32, #tpu.memory_space<vmem>>, vector<1x32xf32>
      %15 = vector.broadcast %14 : vector<1x32xf32> to vector<16x32xf32>
      %16 = arith.addf %13, %15 : vector<16x32xf32>
      %17 = arith.truncf %16 : vector<16x32xf32> to vector<16x32xbf16>
      %c0_14 = arith.constant 0 : index
      %c0_15 = arith.constant 0 : index
      %18 = vector.load %arg6[%c0_14, %c0_15] : memref<16x32xbf16, #tpu.memory_space<vmem>>, vector<16x32xbf16>
      tpu.vector_store %arg6[%c0_14, %c0_15], %17 {strides = array<i32>} : memref<16x32xbf16, #tpu.memory_space<vmem>>, vector<16x32xbf16>,
    } else {
    }
    return
  }
  func.func @transform_0(%arg0: i32, %arg1: i32, %arg2: i32) -> (i32, i32) {
    %c0_i32 = arith.constant 0 : i32
    return %arg0, %arg2 : i32, i32
  }
  func.func @transform_1(%arg0: i32, %arg1: i32, %arg2: i32) -> (i32, i32) {
    %c0_i32 = arith.constant 0 : i32
    return %arg2, %arg1 : i32, i32
  }
  func.func @transform_2(%arg0: i32, %arg1: i32, %arg2: i32) -> (i32, i32) {
    %c0_i32 = arith.constant 0 : i32
    %c0_i32_0 = arith.constant 0 : i32
    return %c0_i32, %arg1 : i32, i32
  }
  func.func @transform_3(%arg0: i32, %arg1: i32, %arg2: i32) -> (i32, i32) {
    %c0_i32 = arith.constant 0 : i32
    return %arg0, %arg1 : i32, i32
  }
}

module attributes {stable_mosaic.version = 11 : i64} {
  func.func @_linear_kernel(%arg0: i32, %arg1: i32, %arg2: i32, %arg3: memref<16x32xbf16, #tpu.memory_space<vmem>>, %arg4: memref<32x64xbf16, #tpu.memory_space<vmem>>, %arg5: memref<1x64xf32, #tpu.memory_space<vmem>>, %arg6: memref<16x64xbf16, #tpu.memory_space<vmem>>, %arg7: memref<16x64xf32, #tpu.memory_space<vmem>>) attributes {dimension_semantics = [#tpu.dimension_semantics<parallel>, #tpu.dimension_semantics<parallel>, #tpu.dimension_semantics<arbitrary>], iteration_bounds = array<i64: 1, 1, 1>, scalar_prefetch = 0 : i64, scratch_operands = 1 : i64, tpu.core_type = #tpu.core_type<tc>, window_params = [{transform_indices = @transform_0, window_bounds = array<i64: 16, 32>}, {transform_indices = @transform_1, window_bounds = array<i64: 32, 64>}, {transform_indices = @transform_2, window_bounds = array<i64: 1, 64>}, {transform_indices = @transform_3, window_bounds = array<i64: 16, 64>}]} {
    %c0_i32 = arith.constant 0 : i32
    %0 = arith.cmpi eq, %arg2, %c0_i32 : i32
    %1 = arith.extui %0 : i1 to i32
    %c0_i32_0 = arith.constant 0 : i32
    %2 = arith.cmpi ne, %1, %c0_i32_0 : i32
    scf.if %2 {
      %cst_10 = arith.constant 0.000000e+00 : f32
      %12 = vector.broadcast %cst_10 : f32 to vector<16x64xf32>
      %c0_11 = arith.constant 0 : index
      %c0_12 = arith.constant 0 : index
      %13 = vector.load %arg7[%c0_11, %c0_12] : memref<16x64xf32, #tpu.memory_space<vmem>>, vector<16x64xf32>
      tpu.vector_store %arg7[%c0_11, %c0_12], %12 {strides = array<i32>} : memref<16x64xf32, #tpu.memory_space<vmem>>, vector<16x64xf32>,
    } else {
    }
    %c0 = arith.constant 0 : index
    %c0_1 = arith.constant 0 : index
    %3 = vector.load %arg7[%c0, %c0_1] : memref<16x64xf32, #tpu.memory_space<vmem>>, vector<16x64xf32>
    %c0_2 = arith.constant 0 : index
    %c0_3 = arith.constant 0 : index
    %4 = vector.load %arg3[%c0_2, %c0_3] : memref<16x32xbf16, #tpu.memory_space<vmem>>, vector<16x32xbf16>
    %c0_4 = arith.constant 0 : index
    %c0_5 = arith.constant 0 : index
    %5 = vector.load %arg4[%c0_4, %c0_5] : memref<32x64xbf16, #tpu.memory_space<vmem>>, vector<32x64xbf16>
    %cst = arith.constant dense<0.000000e+00> : vector<16x64xf32>
    %6 = tpu.matmul %4, %5, %cst {dimension_numbers = #tpu.dot_dimension_numbers<[1], [0], [0], [1], [0, 0, 1, 1], [], []>} : vector<16x32xbf16>, vector<32x64xbf16>, vector<16x64xf32> -> vector<16x64xf32>
    %7 = arith.addf %3, %6 : vector<16x64xf32>
    %c0_6 = arith.constant 0 : index
    %c0_7 = arith.constant 0 : index
    %8 = vector.load %arg7[%c0_6, %c0_7] : memref<16x64xf32, #tpu.memory_space<vmem>>, vector<16x64xf32>
    tpu.vector_store %arg7[%c0_6, %c0_7], %7 {strides = array<i32>} : memref<16x64xf32, #tpu.memory_space<vmem>>, vector<16x64xf32>,
    %c0_i32_8 = arith.constant 0 : i32
    %9 = arith.cmpi eq, %arg2, %c0_i32_8 : i32
    %10 = arith.extui %9 : i1 to i32
    %c0_i32_9 = arith.constant 0 : i32
    %11 = arith.cmpi ne, %10, %c0_i32_9 : i32
    scf.if %11 {
      %c0_10 = arith.constant 0 : index
      %c0_11 = arith.constant 0 : index
      %12 = vector.load %arg7[%c0_10, %c0_11] : memref<16x64xf32, #tpu.memory_space<vmem>>, vector<16x64xf32>
      %c0_12 = arith.constant 0 : index
      %c0_13 = arith.constant 0 : index
      %13 = vector.load %arg5[%c0_12, %c0_13] : memref<1x64xf32, #tpu.memory_space<vmem>>, vector<1x64xf32>
      %14 = vector.broadcast %13 : vector<1x64xf32> to vector<16x64xf32>
      %15 = arith.addf %12, %14 : vector<16x64xf32>
      %cst_14 = arith.constant 5.000000e-01 : f32
      %16 = vector.broadcast %cst_14 : f32 to vector<16x64xf32>
      %17 = arith.mulf %16, %15 : vector<16x64xf32>
      %cst_15 = arith.constant 4.471500e-02 : f32
      %18 = vector.broadcast %cst_15 : f32 to vector<16x64xf32>
      %19 = arith.mulf %18, %15 : vector<16x64xf32>
      %20 = arith.mulf %19, %15 : vector<16x64xf32>
      %21 = arith.mulf %20, %15 : vector<16x64xf32>
      %22 = arith.addf %15, %21 : vector<16x64xf32>
      %cst_16 = arith.constant 0.797884583 : f32
      %23 = vector.broadcast %cst_16 : f32 to vector<16x64xf32>
      %24 = arith.mulf %23, %22 : vector<16x64xf32>
      %25 = math.tanh %24 : vector<16x64xf32>
      %cst_17 = arith.constant 1.000000e+00 : f32
      %26 = vector.broadcast %cst_17 : f32 to vector<16x64xf32>
      %27 = arith.addf %26, %25 : vector<16x64xf32>
      %28 = arith.mulf %17, %27 : vector<16x64xf32>
      %29 = arith.truncf %28 : vector<16x64xf32> to vector<16x64xbf16>
      %c0_18 = arith.constant 0 : index
      %c0_19 = arith.constant 0 : index
      %30 = vector.load %arg6[%c0_18, %c0_19] : memref<16x64xbf16, #tpu.memory_space<vmem>>, vector<16x64xbf16>
      tpu.vector_store %arg6[%c0_18, %c0_19], %29 {strides = array<i32>} : memref<16x64xbf16, #tpu.memory_space<vmem>>, vector<16x64xbf16>,
    } else {
    }
    return
  }
  func.func @transform_0(%arg0: i32, %arg1: i32, %arg2: i32) -> (i32, i32) {
    %c0_i32 = arith.constant 0 : i32
    return %arg0, %arg2 : i32, i32
  }
  func.func @transform_1(%arg0: i32, %arg1: i32, %arg2: i32) -> (i32, i32) {
    %c0_i32 = arith.constant 0 : i32
    return %arg2, %arg1 : i32, i32
  }
  func.func @transform_2(%arg0: i32, %arg1: i32, %arg2: i32) -> (i32, i32) {
    %c0_i32 = arith.constant 0 : i32
    %c0_i32_0 = arith.constant 0 : i32
    return %c0_i32, %arg1 : i32, i32
  }
  func.func @transform_3(%arg0: i32, %arg1: i32, %arg2: i32) -> (i32, i32) {
    %c0_i32 = arith.constant 0 : i32
    return %arg0, %arg1 : i32, i32
  }
}

module attributes {stable_mosaic.version = 11 : i64} {
  func.func @_disentangled_attn_kernel(%arg0: i32, %arg1: i32, %arg2: memref<3x1x1x8x8xbf16, #tpu.memory_space<vmem>>, %arg3: memref<1x16x8xbf16, #tpu.memory_space<vmem>>, %arg4: memref<1x16x8xbf16, #tpu.memory_space<vmem>>, %arg5: memref<1x1x8xf32, #tpu.memory_space<vmem>>, %arg6: memref<1x1x8xbf16, #tpu.memory_space<vmem>>, %arg7: memref<1x1x8xf32, #tpu.memory_space<vmem>>, %arg8: memref<1x8x1xf32, #tpu.memory_space<vmem>>, %arg9: memref<1x1x8x8xbf16, #tpu.memory_space<vmem>>) attributes {dimension_semantics = [#tpu.dimension_semantics<parallel>, #tpu.dimension_semantics<parallel>], iteration_bounds = array<i64: 2, 4>, scalar_prefetch = 0 : i64, scratch_operands = 0 : i64, tpu.core_type = #tpu.core_type<tc>, window_params = [{transform_indices = @transform_0, window_bounds = array<i64: 3, 1, 1, 8, 8>}, {transform_indices = @transform_1, window_bounds = array<i64: 1, 16, 8>}, {transform_indices = @transform_2, window_bounds = array<i64: 1, 16, 8>}, {transform_indices = @transform_3, window_bounds = array<i64: 1, 1, 8>}, {transform_indices = @transform_4, window_bounds = array<i64: 1, 1, 8>}, {transform_indices = @transform_5, window_bounds = array<i64: 1, 1, 8>}, {transform_indices = @transform_6, window_bounds = array<i64: 1, 8, 1>}, {transform_indices = @transform_7, window_bounds = array<i64: 1, 1, 8, 8>}]} {
    %c0 = arith.constant 0 : index
    %c0_0 = arith.constant 0 : index
    %c0_1 = arith.constant 0 : index
    %c0_2 = arith.constant 0 : index
    %c0_3 = arith.constant 0 : index
    %0 = vector.load %arg2[%c0, %c0_0, %c0_1, %c0_2, %c0_3] : memref<3x1x1x8x8xbf16, #tpu.memory_space<vmem>>, vector<1x1x1x8x8xbf16>
    %1 = vector.shape_cast %0 : vector<1x1x1x8x8xbf16> to vector<8x8xbf16>
    %2 = arith.extf %1 : vector<8x8xbf16> to vector<8x8xf32>
    %c0_4 = arith.constant 0 : index
    %c0_5 = arith.constant 0 : index
    %c0_6 = arith.constant 0 : index
    %3 = vector.load %arg5[%c0_4, %c0_5, %c0_6] : memref<1x1x8xf32, #tpu.memory_space<vmem>>, vector<1x1x8xf32>
    %4 = vector.shape_cast %3 : vector<1x1x8xf32> to vector<1x8xf32>
    %5 = vector.broadcast %4 : vector<1x8xf32> to vector<8x8xf32>
    %6 = arith.addf %2, %5 : vector<8x8xf32>
    %cst = arith.constant 0.204124153 : f32
    %7 = vector.broadcast %cst : f32 to vector<8x8xf32>
    %8 = arith.mulf %6, %7 : vector<8x8xf32>
    %9 = arith.truncf %8 : vector<8x8xf32> to vector<8x8xbf16>
    %c1 = arith.constant 1 : index
    %c0_7 = arith.constant 0 : index
    %c0_8 = arith.constant 0 : index
    %c0_9 = arith.constant 0 : index
    %c0_10 = arith.constant 0 : index
    %10 = vector.load %arg2[%c1, %c0_7, %c0_8, %c0_9, %c0_10] : memref<3x1x1x8x8xbf16, #tpu.memory_space<vmem>>, vector<1x1x1x8x8xbf16>
    %11 = vector.shape_cast %10 : vector<1x1x1x8x8xbf16> to vector<8x8xbf16>
    %c2 = arith.constant 2 : index
    %c0_11 = arith.constant 0 : index
    %c0_12 = arith.constant 0 : index
    %c0_13 = arith.constant 0 : index
    %c0_14 = arith.constant 0 : index
    %12 = vector.load %arg2[%c2, %c0_11, %c0_12, %c0_13, %c0_14] : memref<3x1x1x8x8xbf16, #tpu.memory_space<vmem>>, vector<1x1x1x8x8xbf16>
    %13 = vector.shape_cast %12 : vector<1x1x1x8x8xbf16> to vector<8x8xbf16>
    %c0_15 = arith.constant 0 : index
    %c0_16 = arith.constant 0 : index
    %c0_17 = arith.constant 0 : index
    %14 = vector.load %arg6[%c0_15, %c0_16, %c0_17] : memref<1x1x8xbf16, #tpu.memory_space<vmem>>, vector<1x1x8xbf16>
    %15 = vector.shape_cast %14 : vector<1x1x8xbf16> to vector<1x8xbf16>
    %16 = vector.broadcast %15 : vector<1x8xbf16> to vector<8x8xbf16>
    %17 = arith.addf %13, %16 : vector<8x8xbf16>
    %c0_18 = arith.constant 0 : index
    %c0_19 = arith.constant 0 : index
    %c0_20 = arith.constant 0 : index
    %18 = vector.load %arg8[%c0_18, %c0_19, %c0_20] : memref<1x8x1xf32, #tpu.memory_space<vmem>>, vector<1x8x1xf32>
    %19 = vector.shape_cast %18 : vector<1x8x1xf32> to vector<8x1xf32>
    %c0_21 = arith.constant 0 : index
    %c0_22 = arith.constant 0 : index
    %c0_23 = arith.constant 0 : index
    %20 = vector.load %arg7[%c0_21, %c0_22, %c0_23] : memref<1x1x8xf32, #tpu.memory_space<vmem>>, vector<1x1x8xf32>
    %21 = vector.shape_cast %20 : vector<1x1x8xf32> to vector<1x8xf32>
    %22 = vector.broadcast %19 : vector<8x1xf32> to vector<8x8xf32>
    %23 = vector.broadcast %21 : vector<1x8xf32> to vector<8x8xf32>
    %24 = arith.mulf %22, %23 : vector<8x8xf32>
    %cst_24 = arith.constant 0.000000e+00 : f32
    %25 = vector.broadcast %cst_24 : f32 to vector<8x8xf32>
    %26 = arith.cmpf ogt, %24, %25 : vector<8x8xf32>
    %cst_25 = arith.constant dense<0.000000e+00> : vector<8x8xf32>
    %27 = tpu.matmul %9, %11, %cst_25 {dimension_numbers = #tpu.dot_dimension_numbers<[1], [1], [0], [0], [0, 0, 1, 0], [], []>} : vector<8x8xbf16>, vector<8x8xbf16>, vector<8x8xf32> -> vector<8x8xf32>
    %c0_26 = arith.constant 0 : index
    %c0_27 = arith.constant 0 : index
    %c0_28 = arith.constant 0 : index
    %28 = vector.load %arg3[%c0_26, %c0_27, %c0_28] : memref<1x16x8xbf16, #tpu.memory_space<vmem>>, vector<1x16x8xbf16>
    %29 = vector.shape_cast %28 : vector<1x16x8xbf16> to vector<16x8xbf16>
    %cst_29 = arith.constant dense<0.000000e+00> : vector<8x16xf32>
    %30 = tpu.matmul %9, %29, %cst_29 {dimension_numbers = #tpu.dot_dimension_numbers<[1], [1], [0], [0], [0, 0, 1, 0], [], []>} : vector<8x8xbf16>, vector<16x8xbf16>, vector<8x16xf32> -> vector<8x16xf32>
    %31 = tpu.iota {dimensions = array<i32: 0>} : vector<8x8xi32>
    %32 = tpu.iota {dimensions = array<i32: 1>} : vector<8x8xi32>
    %33 = arith.subi %31, %32 : vector<8x8xi32>
    %c8_i32 = arith.constant 8 : i32
    %34 = vector.broadcast %c8_i32 : i32 to vector<8x8xi32>
    %35 = arith.addi %33, %34 : vector<8x8xi32>
    %c0_i32 = arith.constant 0 : i32
    %c15_i32 = arith.constant 15 : i32
    %36 = vector.broadcast %c0_i32 : i32 to vector<8x8xi32>
    %37 = arith.maxsi %36, %35 : vector<8x8xi32>
    %38 = vector.broadcast %c15_i32 : i32 to vector<8x8xi32>
    %39 = arith.minsi %38, %37 : vector<8x8xi32>
    %c0_30 = arith.constant 0 : index
    %c0_31 = arith.constant 0 : index
    %c0_32 = arith.constant 0 : index
    %40 = vector.load %arg4[%c0_30, %c0_31, %c0_32] : memref<1x16x8xbf16, #tpu.memory_space<vmem>>, vector<1x16x8xbf16>
    %41 = vector.shape_cast %40 : vector<1x16x8xbf16> to vector<16x8xbf16>
    %cst_33 = arith.constant dense<0.000000e+00> : vector<16x8xf32>
    %42 = tpu.matmul %41, %11, %cst_33 {dimension_numbers = #tpu.dot_dimension_numbers<[1], [1], [0], [0], [0, 0, 1, 0], [], []>} : vector<16x8xbf16>, vector<8x8xbf16>, vector<16x8xf32> -> vector<16x8xf32>
    %cst_34 = arith.constant 0.204124153 : f32
    %43 = vector.broadcast %cst_34 : f32 to vector<16x8xf32>
    %44 = arith.mulf %42, %43 : vector<16x8xf32>
    %cst_35 = arith.constant 0.000000e+00 : f32
    %45 = vector.broadcast %cst_35 : f32 to vector<8x8xf32>
    %cst_36 = arith.constant 0.000000e+00 : f32
    %46 = vector.broadcast %cst_36 : f32 to vector<8x8xf32>
    %c0_i32_37 = arith.constant 0 : i32
    %47 = vector.broadcast %c0_i32_37 : i32 to vector<8x8xi32>
    %48 = arith.cmpi eq, %39, %47 : vector<8x8xi32>
    %49 = vector.extract_strided_slice %30 {offsets = [0, 0], sizes = [8, 1], strides = [1, 1]} : vector<8x16xf32> to vector<8x1xf32>
    %cst_38 = arith.constant 0.000000e+00 : f32
    %50 = vector.shape_cast %49 : vector<8x1xf32> to vector<8x1xf32>
    %51 = vector.broadcast %50 : vector<8x1xf32> to vector<8x8xf32>
    %52 = vector.broadcast %cst_38 : f32 to vector<8x8xf32>
    %53 = arith.select %48, %51, %52 : vector<8x8xi1>, vector<8x8xf32>
    %54 = arith.addf %45, %53 : vector<8x8xf32>
    %55 = vector.extract_strided_slice %44 {offsets = [0, 0], sizes = [1, 8], strides = [1, 1]} : vector<16x8xf32> to vector<1x8xf32>
    %cst_39 = arith.constant 0.000000e+00 : f32
    %56 = vector.shape_cast %55 : vector<1x8xf32> to vector<1x8xf32>
    %57 = vector.broadcast %56 : vector<1x8xf32> to vector<8x8xf32>
    %58 = vector.broadcast %cst_39 : f32 to vector<8x8xf32>
    %59 = arith.select %48, %57, %58 : vector<8x8xi1>, vector<8x8xf32>
    %60 = arith.addf %46, %59 : vector<8x8xf32>
    %c1_i32 = arith.constant 1 : i32
    %61 = vector.broadcast %c1_i32 : i32 to vector<8x8xi32>
    %62 = arith.cmpi eq, %39, %61 : vector<8x8xi32>
    %63 = vector.extract_strided_slice %30 {offsets = [0, 1], sizes = [8, 1], strides = [1, 1]} : vector<8x16xf32> to vector<8x1xf32>
    %cst_40 = arith.constant 0.000000e+00 : f32
    %64 = vector.shape_cast %63 : vector<8x1xf32> to vector<8x1xf32>
    %65 = vector.broadcast %64 : vector<8x1xf32> to vector<8x8xf32>
    %66 = vector.broadcast %cst_40 : f32 to vector<8x8xf32>
    %67 = arith.select %62, %65, %66 : vector<8x8xi1>, vector<8x8xf32>
    %68 = arith.addf %54, %67 : vector<8x8xf32>
    %69 = vector.extract_strided_slice %44 {offsets = [1, 0], sizes = [1, 8], strides = [1, 1]} : vector<16x8xf32> to vector<1x8xf32>
    %cst_41 = arith.constant 0.000000e+00 : f32
    %70 = vector.shape_cast %69 : vector<1x8xf32> to vector<1x8xf32>
    %71 = vector.broadcast %70 : vector<1x8xf32> to vector<8x8xf32>
    %72 = vector.broadcast %cst_41 : f32 to vector<8x8xf32>
    %73 = arith.select %62, %71, %72 : vector<8x8xi1>, vector<8x8xf32>
    %74 = arith.addf %60, %73 : vector<8x8xf32>
    %c2_i32 = arith.constant 2 : i32
    %75 = vector.broadcast %c2_i32 : i32 to vector<8x8xi32>
    %76 = arith.cmpi eq, %39, %75 : vector<8x8xi32>
    %77 = vector.extract_strided_slice %30 {offsets = [0, 2], sizes = [8, 1], strides = [1, 1]} : vector<8x16xf32> to vector<8x1xf32>
    %cst_42 = arith.constant 0.000000e+00 : f32
    %78 = vector.shape_cast %77 : vector<8x1xf32> to vector<8x1xf32>
    %79 = vector.broadcast %78 : vector<8x1xf32> to vector<8x8xf32>
    %80 = vector.broadcast %cst_42 : f32 to vector<8x8xf32>
    %81 = arith.select %76, %79, %80 : vector<8x8xi1>, vector<8x8xf32>
    %82 = arith.addf %68, %81 : vector<8x8xf32>
    %83 = vector.extract_strided_slice %44 {offsets = [2, 0], sizes = [1, 8], strides = [1, 1]} : vector<16x8xf32> to vector<1x8xf32>
    %cst_43 = arith.constant 0.000000e+00 : f32
    %84 = vector.shape_cast %83 : vector<1x8xf32> to vector<1x8xf32>
    %85 = vector.broadcast %84 : vector<1x8xf32> to vector<8x8xf32>
    %86 = vector.broadcast %cst_43 : f32 to vector<8x8xf32>
    %87 = arith.select %76, %85, %86 : vector<8x8xi1>, vector<8x8xf32>
    %88 = arith.addf %74, %87 : vector<8x8xf32>
    %c3_i32 = arith.constant 3 : i32
    %89 = vector.broadcast %c3_i32 : i32 to vector<8x8xi32>
    %90 = arith.cmpi eq, %39, %89 : vector<8x8xi32>
    %91 = vector.extract_strided_slice %30 {offsets = [0, 3], sizes = [8, 1], strides = [1, 1]} : vector<8x16xf32> to vector<8x1xf32>
    %cst_44 = arith.constant 0.000000e+00 : f32
    %92 = vector.shape_cast %91 : vector<8x1xf32> to vector<8x1xf32>
    %93 = vector.broadcast %92 : vector<8x1xf32> to vector<8x8xf32>
    %94 = vector.broadcast %cst_44 : f32 to vector<8x8xf32>
    %95 = arith.select %90, %93, %94 : vector<8x8xi1>, vector<8x8xf32>
    %96 = arith.addf %82, %95 : vector<8x8xf32>
    %97 = vector.extract_strided_slice %44 {offsets = [3, 0], sizes = [1, 8], strides = [1, 1]} : vector<16x8xf32> to vector<1x8xf32>
    %cst_45 = arith.constant 0.000000e+00 : f32
    %98 = vector.shape_cast %97 : vector<1x8xf32> to vector<1x8xf32>
    %99 = vector.broadcast %98 : vector<1x8xf32> to vector<8x8xf32>
    %100 = vector.broadcast %cst_45 : f32 to vector<8x8xf32>
    %101 = arith.select %90, %99, %100 : vector<8x8xi1>, vector<8x8xf32>
    %102 = arith.addf %88, %101 : vector<8x8xf32>
    %c4_i32 = arith.constant 4 : i32
    %103 = vector.broadcast %c4_i32 : i32 to vector<8x8xi32>
    %104 = arith.cmpi eq, %39, %103 : vector<8x8xi32>
    %105 = vector.extract_strided_slice %30 {offsets = [0, 4], sizes = [8, 1], strides = [1, 1]} : vector<8x16xf32> to vector<8x1xf32>
    %cst_46 = arith.constant 0.000000e+00 : f32
    %106 = vector.shape_cast %105 : vector<8x1xf32> to vector<8x1xf32>
    %107 = vector.broadcast %106 : vector<8x1xf32> to vector<8x8xf32>
    %108 = vector.broadcast %cst_46 : f32 to vector<8x8xf32>
    %109 = arith.select %104, %107, %108 : vector<8x8xi1>, vector<8x8xf32>
    %110 = arith.addf %96, %109 : vector<8x8xf32>
    %111 = vector.extract_strided_slice %44 {offsets = [4, 0], sizes = [1, 8], strides = [1, 1]} : vector<16x8xf32> to vector<1x8xf32>
    %cst_47 = arith.constant 0.000000e+00 : f32
    %112 = vector.shape_cast %111 : vector<1x8xf32> to vector<1x8xf32>
    %113 = vector.broadcast %112 : vector<1x8xf32> to vector<8x8xf32>
    %114 = vector.broadcast %cst_47 : f32 to vector<8x8xf32>
    %115 = arith.select %104, %113, %114 : vector<8x8xi1>, vector<8x8xf32>
    %116 = arith.addf %102, %115 : vector<8x8xf32>
    %c5_i32 = arith.constant 5 : i32
    %117 = vector.broadcast %c5_i32 : i32 to vector<8x8xi32>
    %118 = arith.cmpi eq, %39, %117 : vector<8x8xi32>
    %119 = vector.extract_strided_slice %30 {offsets = [0, 5], sizes = [8, 1], strides = [1, 1]} : vector<8x16xf32> to vector<8x1xf32>
    %cst_48 = arith.constant 0.000000e+00 : f32
    %120 = vector.shape_cast %119 : vector<8x1xf32> to vector<8x1xf32>
    %121 = vector.broadcast %120 : vector<8x1xf32> to vector<8x8xf32>
    %122 = vector.broadcast %cst_48 : f32 to vector<8x8xf32>
    %123 = arith.select %118, %121, %122 : vector<8x8xi1>, vector<8x8xf32>
    %124 = arith.addf %110, %123 : vector<8x8xf32>
    %125 = vector.extract_strided_slice %44 {offsets = [5, 0], sizes = [1, 8], strides = [1, 1]} : vector<16x8xf32> to vector<1x8xf32>
    %cst_49 = arith.constant 0.000000e+00 : f32
    %126 = vector.shape_cast %125 : vector<1x8xf32> to vector<1x8xf32>
    %127 = vector.broadcast %126 : vector<1x8xf32> to vector<8x8xf32>
    %128 = vector.broadcast %cst_49 : f32 to vector<8x8xf32>
    %129 = arith.select %118, %127, %128 : vector<8x8xi1>, vector<8x8xf32>
    %130 = arith.addf %116, %129 : vector<8x8xf32>
    %c6_i32 = arith.constant 6 : i32
    %131 = vector.broadcast %c6_i32 : i32 to vector<8x8xi32>
    %132 = arith.cmpi eq, %39, %131 : vector<8x8xi32>
    %133 = vector.extract_strided_slice %30 {offsets = [0, 6], sizes = [8, 1], strides = [1, 1]} : vector<8x16xf32> to vector<8x1xf32>
    %cst_50 = arith.constant 0.000000e+00 : f32
    %134 = vector.shape_cast %133 : vector<8x1xf32> to vector<8x1xf32>
    %135 = vector.broadcast %134 : vector<8x1xf32> to vector<8x8xf32>
    %136 = vector.broadcast %cst_50 : f32 to vector<8x8xf32>
    %137 = arith.select %132, %135, %136 : vector<8x8xi1>, vector<8x8xf32>
    %138 = arith.addf %124, %137 : vector<8x8xf32>
    %139 = vector.extract_strided_slice %44 {offsets = [6, 0], sizes = [1, 8], strides = [1, 1]} : vector<16x8xf32> to vector<1x8xf32>
    %cst_51 = arith.constant 0.000000e+00 : f32
    %140 = vector.shape_cast %139 : vector<1x8xf32> to vector<1x8xf32>
    %141 = vector.broadcast %140 : vector<1x8xf32> to vector<8x8xf32>
    %142 = vector.broadcast %cst_51 : f32 to vector<8x8xf32>
    %143 = arith.select %132, %141, %142 : vector<8x8xi1>, vector<8x8xf32>
    %144 = arith.addf %130, %143 : vector<8x8xf32>
    %c7_i32 = arith.constant 7 : i32
    %145 = vector.broadcast %c7_i32 : i32 to vector<8x8xi32>
    %146 = arith.cmpi eq, %39, %145 : vector<8x8xi32>
    %147 = vector.extract_strided_slice %30 {offsets = [0, 7], sizes = [8, 1], strides = [1, 1]} : vector<8x16xf32> to vector<8x1xf32>
    %cst_52 = arith.constant 0.000000e+00 : f32
    %148 = vector.shape_cast %147 : vector<8x1xf32> to vector<8x1xf32>
    %149 = vector.broadcast %148 : vector<8x1xf32> to vector<8x8xf32>
    %150 = vector.broadcast %cst_52 : f32 to vector<8x8xf32>
    %151 = arith.select %146, %149, %150 : vector<8x8xi1>, vector<8x8xf32>
    %152 = arith.addf %138, %151 : vector<8x8xf32>
    %153 = vector.extract_strided_slice %44 {offsets = [7, 0], sizes = [1, 8], strides = [1, 1]} : vector<16x8xf32> to vector<1x8xf32>
    %cst_53 = arith.constant 0.000000e+00 : f32
    %154 = vector.shape_cast %153 : vector<1x8xf32> to vector<1x8xf32>
    %155 = vector.broadcast %154 : vector<1x8xf32> to vector<8x8xf32>
    %156 = vector.broadcast %cst_53 : f32 to vector<8x8xf32>
    %157 = arith.select %146, %155, %156 : vector<8x8xi1>, vector<8x8xf32>
    %158 = arith.addf %144, %157 : vector<8x8xf32>
    %c8_i32_54 = arith.constant 8 : i32
    %159 = vector.broadcast %c8_i32_54 : i32 to vector<8x8xi32>
    %160 = arith.cmpi eq, %39, %159 : vector<8x8xi32>
    %161 = vector.extract_strided_slice %30 {offsets = [0, 8], sizes = [8, 1], strides = [1, 1]} : vector<8x16xf32> to vector<8x1xf32>
    %cst_55 = arith.constant 0.000000e+00 : f32
    %162 = vector.shape_cast %161 : vector<8x1xf32> to vector<8x1xf32>
    %163 = vector.broadcast %162 : vector<8x1xf32> to vector<8x8xf32>
    %164 = vector.broadcast %cst_55 : f32 to vector<8x8xf32>
    %165 = arith.select %160, %163, %164 : vector<8x8xi1>, vector<8x8xf32>
    %166 = arith.addf %152, %165 : vector<8x8xf32>
    %167 = vector.extract_strided_slice %44 {offsets = [8, 0], sizes = [1, 8], strides = [1, 1]} : vector<16x8xf32> to vector<1x8xf32>
    %cst_56 = arith.constant 0.000000e+00 : f32
    %168 = vector.shape_cast %167 : vector<1x8xf32> to vector<1x8xf32>
    %169 = vector.broadcast %168 : vector<1x8xf32> to vector<8x8xf32>
    %170 = vector.broadcast %cst_56 : f32 to vector<8x8xf32>
    %171 = arith.select %160, %169, %170 : vector<8x8xi1>, vector<8x8xf32>
    %172 = arith.addf %158, %171 : vector<8x8xf32>
    %c9_i32 = arith.constant 9 : i32
    %173 = vector.broadcast %c9_i32 : i32 to vector<8x8xi32>
    %174 = arith.cmpi eq, %39, %173 : vector<8x8xi32>
    %175 = vector.extract_strided_slice %30 {offsets = [0, 9], sizes = [8, 1], strides = [1, 1]} : vector<8x16xf32> to vector<8x1xf32>
    %cst_57 = arith.constant 0.000000e+00 : f32
    %176 = vector.shape_cast %175 : vector<8x1xf32> to vector<8x1xf32>
    %177 = vector.broadcast %176 : vector<8x1xf32> to vector<8x8xf32>
    %178 = vector.broadcast %cst_57 : f32 to vector<8x8xf32>
    %179 = arith.select %174, %177, %178 : vector<8x8xi1>, vector<8x8xf32>
    %180 = arith.addf %166, %179 : vector<8x8xf32>
    %181 = vector.extract_strided_slice %44 {offsets = [9, 0], sizes = [1, 8], strides = [1, 1]} : vector<16x8xf32> to vector<1x8xf32>
    %cst_58 = arith.constant 0.000000e+00 : f32
    %182 = vector.shape_cast %181 : vector<1x8xf32> to vector<1x8xf32>
    %183 = vector.broadcast %182 : vector<1x8xf32> to vector<8x8xf32>
    %184 = vector.broadcast %cst_58 : f32 to vector<8x8xf32>
    %185 = arith.select %174, %183, %184 : vector<8x8xi1>, vector<8x8xf32>
    %186 = arith.addf %172, %185 : vector<8x8xf32>
    %c10_i32 = arith.constant 10 : i32
    %187 = vector.broadcast %c10_i32 : i32 to vector<8x8xi32>
    %188 = arith.cmpi eq, %39, %187 : vector<8x8xi32>
    %189 = vector.extract_strided_slice %30 {offsets = [0, 10], sizes = [8, 1], strides = [1, 1]} : vector<8x16xf32> to vector<8x1xf32>
    %cst_59 = arith.constant 0.000000e+00 : f32
    %190 = vector.shape_cast %189 : vector<8x1xf32> to vector<8x1xf32>
    %191 = vector.broadcast %190 : vector<8x1xf32> to vector<8x8xf32>
    %192 = vector.broadcast %cst_59 : f32 to vector<8x8xf32>
    %193 = arith.select %188, %191, %192 : vector<8x8xi1>, vector<8x8xf32>
    %194 = arith.addf %180, %193 : vector<8x8xf32>
    %195 = vector.extract_strided_slice %44 {offsets = [10, 0], sizes = [1, 8], strides = [1, 1]} : vector<16x8xf32> to vector<1x8xf32>
    %cst_60 = arith.constant 0.000000e+00 : f32
    %196 = vector.shape_cast %195 : vector<1x8xf32> to vector<1x8xf32>
    %197 = vector.broadcast %196 : vector<1x8xf32> to vector<8x8xf32>
    %198 = vector.broadcast %cst_60 : f32 to vector<8x8xf32>
    %199 = arith.select %188, %197, %198 : vector<8x8xi1>, vector<8x8xf32>
    %200 = arith.addf %186, %199 : vector<8x8xf32>
    %c11_i32 = arith.constant 11 : i32
    %201 = vector.broadcast %c11_i32 : i32 to vector<8x8xi32>
    %202 = arith.cmpi eq, %39, %201 : vector<8x8xi32>
    %203 = vector.extract_strided_slice %30 {offsets = [0, 11], sizes = [8, 1], strides = [1, 1]} : vector<8x16xf32> to vector<8x1xf32>
    %cst_61 = arith.constant 0.000000e+00 : f32
    %204 = vector.shape_cast %203 : vector<8x1xf32> to vector<8x1xf32>
    %205 = vector.broadcast %204 : vector<8x1xf32> to vector<8x8xf32>
    %206 = vector.broadcast %cst_61 : f32 to vector<8x8xf32>
    %207 = arith.select %202, %205, %206 : vector<8x8xi1>, vector<8x8xf32>
    %208 = arith.addf %194, %207 : vector<8x8xf32>
    %209 = vector.extract_strided_slice %44 {offsets = [11, 0], sizes = [1, 8], strides = [1, 1]} : vector<16x8xf32> to vector<1x8xf32>
    %cst_62 = arith.constant 0.000000e+00 : f32
    %210 = vector.shape_cast %209 : vector<1x8xf32> to vector<1x8xf32>
    %211 = vector.broadcast %210 : vector<1x8xf32> to vector<8x8xf32>
    %212 = vector.broadcast %cst_62 : f32 to vector<8x8xf32>
    %213 = arith.select %202, %211, %212 : vector<8x8xi1>, vector<8x8xf32>
    %214 = arith.addf %200, %213 : vector<8x8xf32>
    %c12_i32 = arith.constant 12 : i32
    %215 = vector.broadcast %c12_i32 : i32 to vector<8x8xi32>
    %216 = arith.cmpi eq, %39, %215 : vector<8x8xi32>
    %217 = vector.extract_strided_slice %30 {offsets = [0, 12], sizes = [8, 1], strides = [1, 1]} : vector<8x16xf32> to vector<8x1xf32>
    %cst_63 = arith.constant 0.000000e+00 : f32
    %218 = vector.shape_cast %217 : vector<8x1xf32> to vector<8x1xf32>
    %219 = vector.broadcast %218 : vector<8x1xf32> to vector<8x8xf32>
    %220 = vector.broadcast %cst_63 : f32 to vector<8x8xf32>
    %221 = arith.select %216, %219, %220 : vector<8x8xi1>, vector<8x8xf32>
    %222 = arith.addf %208, %221 : vector<8x8xf32>
    %223 = vector.extract_strided_slice %44 {offsets = [12, 0], sizes = [1, 8], strides = [1, 1]} : vector<16x8xf32> to vector<1x8xf32>
    %cst_64 = arith.constant 0.000000e+00 : f32
    %224 = vector.shape_cast %223 : vector<1x8xf32> to vector<1x8xf32>
    %225 = vector.broadcast %224 : vector<1x8xf32> to vector<8x8xf32>
    %226 = vector.broadcast %cst_64 : f32 to vector<8x8xf32>
    %227 = arith.select %216, %225, %226 : vector<8x8xi1>, vector<8x8xf32>
    %228 = arith.addf %214, %227 : vector<8x8xf32>
    %c13_i32 = arith.constant 13 : i32
    %229 = vector.broadcast %c13_i32 : i32 to vector<8x8xi32>
    %230 = arith.cmpi eq, %39, %229 : vector<8x8xi32>
    %231 = vector.extract_strided_slice %30 {offsets = [0, 13], sizes = [8, 1], strides = [1, 1]} : vector<8x16xf32> to vector<8x1xf32>
    %cst_65 = arith.constant 0.000000e+00 : f32
    %232 = vector.shape_cast %231 : vector<8x1xf32> to vector<8x1xf32>
    %233 = vector.broadcast %232 : vector<8x1xf32> to vector<8x8xf32>
    %234 = vector.broadcast %cst_65 : f32 to vector<8x8xf32>
    %235 = arith.select %230, %233, %234 : vector<8x8xi1>, vector<8x8xf32>
    %236 = arith.addf %222, %235 : vector<8x8xf32>
    %237 = vector.extract_strided_slice %44 {offsets = [13, 0], sizes = [1, 8], strides = [1, 1]} : vector<16x8xf32> to vector<1x8xf32>
    %cst_66 = arith.constant 0.000000e+00 : f32
    %238 = vector.shape_cast %237 : vector<1x8xf32> to vector<1x8xf32>
    %239 = vector.broadcast %238 : vector<1x8xf32> to vector<8x8xf32>
    %240 = vector.broadcast %cst_66 : f32 to vector<8x8xf32>
    %241 = arith.select %230, %239, %240 : vector<8x8xi1>, vector<8x8xf32>
    %242 = arith.addf %228, %241 : vector<8x8xf32>
    %c14_i32 = arith.constant 14 : i32
    %243 = vector.broadcast %c14_i32 : i32 to vector<8x8xi32>
    %244 = arith.cmpi eq, %39, %243 : vector<8x8xi32>
    %245 = vector.extract_strided_slice %30 {offsets = [0, 14], sizes = [8, 1], strides = [1, 1]} : vector<8x16xf32> to vector<8x1xf32>
    %cst_67 = arith.constant 0.000000e+00 : f32
    %246 = vector.shape_cast %245 : vector<8x1xf32> to vector<8x1xf32>
    %247 = vector.broadcast %246 : vector<8x1xf32> to vector<8x8xf32>
    %248 = vector.broadcast %cst_67 : f32 to vector<8x8xf32>
    %249 = arith.select %244, %247, %248 : vector<8x8xi1>, vector<8x8xf32>
    %250 = arith.addf %236, %249 : vector<8x8xf32>
    %251 = vector.extract_strided_slice %44 {offsets = [14, 0], sizes = [1, 8], strides = [1, 1]} : vector<16x8xf32> to vector<1x8xf32>
    %cst_68 = arith.constant 0.000000e+00 : f32
    %252 = vector.shape_cast %251 : vector<1x8xf32> to vector<1x8xf32>
    %253 = vector.broadcast %252 : vector<1x8xf32> to vector<8x8xf32>
    %254 = vector.broadcast %cst_68 : f32 to vector<8x8xf32>
    %255 = arith.select %244, %253, %254 : vector<8x8xi1>, vector<8x8xf32>
    %256 = arith.addf %242, %255 : vector<8x8xf32>
    %c15_i32_69 = arith.constant 15 : i32
    %257 = vector.broadcast %c15_i32_69 : i32 to vector<8x8xi32>
    %258 = arith.cmpi eq, %39, %257 : vector<8x8xi32>
    %259 = vector.extract_strided_slice %30 {offsets = [0, 15], sizes = [8, 1], strides = [1, 1]} : vector<8x16xf32> to vector<8x1xf32>
    %cst_70 = arith.constant 0.000000e+00 : f32
    %260 = vector.shape_cast %259 : vector<8x1xf32> to vector<8x1xf32>
    %261 = vector.broadcast %260 : vector<8x1xf32> to vector<8x8xf32>
    %262 = vector.broadcast %cst_70 : f32 to vector<8x8xf32>
    %263 = arith.select %258, %261, %262 : vector<8x8xi1>, vector<8x8xf32>
    %264 = arith.addf %250, %263 : vector<8x8xf32>
    %265 = vector.extract_strided_slice %44 {offsets = [15, 0], sizes = [1, 8], strides = [1, 1]} : vector<16x8xf32> to vector<1x8xf32>
    %cst_71 = arith.constant 0.000000e+00 : f32
    %266 = vector.shape_cast %265 : vector<1x8xf32> to vector<1x8xf32>
    %267 = vector.broadcast %266 : vector<1x8xf32> to vector<8x8xf32>
    %268 = vector.broadcast %cst_71 : f32 to vector<8x8xf32>
    %269 = arith.select %258, %267, %268 : vector<8x8xi1>, vector<8x8xf32>
    %270 = arith.addf %256, %269 : vector<8x8xf32>
    %271 = arith.addf %27, %264 : vector<8x8xf32>
    %272 = arith.addf %271, %270 : vector<8x8xf32>
    %cst_72 = arith.constant -3.40282347E+38 : f32
    %273 = vector.broadcast %cst_72 : f32 to vector<8x8xf32>
    %274 = arith.select %26, %272, %273 : vector<8x8xi1>, vector<8x8xf32>
    %cst_73 = arith.constant dense<0xFF800000> : vector<8xf32>
    %275 = vector.multi_reduction <maximumf>, %274, %cst_73 [1] : vector<8x8xf32> to vector<8xf32>
    %276 = vector.shape_cast %275 : vector<8xf32> to vector<8x1xf32>
    %277 = vector.broadcast %276 : vector<8x1xf32> to vector<8x8xf32>
    %278 = arith.subf %274, %277 : vector<8x8xf32>
    %279 = math.exp %278 : vector<8x8xf32>
    %cst_74 = arith.constant dense<0.000000e+00> : vector<8xf32>
    %280 = vector.multi_reduction <add>, %279, %cst_74 [1] : vector<8x8xf32> to vector<8xf32>
    %281 = vector.shape_cast %280 : vector<8xf32> to vector<8x1xf32>
    %282 = tpu.reciprocal %281 {approx = true} : vector<8x1xf32> -> vector<8x1xf32>
    %283 = vector.broadcast %282 : vector<8x1xf32> to vector<8x8xf32>
    %284 = arith.mulf %279, %283 : vector<8x8xf32>
    %285 = arith.truncf %284 : vector<8x8xf32> to vector<8x8xbf16>
    %cst_75 = arith.constant dense<0.000000e+00> : vector<8x8xf32>
    %286 = tpu.matmul %285, %17, %cst_75 {dimension_numbers = #tpu.dot_dimension_numbers<[1], [0], [0], [1], [0, 0, 1, 1], [], []>} : vector<8x8xbf16>, vector<8x8xbf16>, vector<8x8xf32> -> vector<8x8xf32>
    %287 = arith.truncf %286 : vector<8x8xf32> to vector<8x8xbf16>
    %c0_76 = arith.constant 0 : index
    %c0_77 = arith.constant 0 : index
    %c0_78 = arith.constant 0 : index
    %c0_79 = arith.constant 0 : index
    %288 = vector.load %arg9[%c0_76, %c0_77, %c0_78, %c0_79] : memref<1x1x8x8xbf16, #tpu.memory_space<vmem>>, vector<1x1x8x8xbf16>
    %289 = vector.shape_cast %288 : vector<1x1x8x8xbf16> to vector<8x8xbf16>
    %290 = vector.shape_cast %287 : vector<8x8xbf16> to vector<1x1x8x8xbf16>
    tpu.vector_store %arg9[%c0_76, %c0_77, %c0_78, %c0_79], %290 {strides = array<i32>} : memref<1x1x8x8xbf16, #tpu.memory_space<vmem>>, vector<1x1x8x8xbf16>,
    return
  }
  func.func @transform_0(%arg0: i32, %arg1: i32) -> (i32, i32, i32, i32, i32) {
    %c0_i32 = arith.constant 0 : i32
    %c0_i32_0 = arith.constant 0 : i32
    %c0_i32_1 = arith.constant 0 : i32
    %c0_i32_2 = arith.constant 0 : i32
    return %c0_i32, %arg0, %arg1, %c0_i32_0, %c0_i32_1 : i32, i32, i32, i32, i32
  }
  func.func @transform_1(%arg0: i32, %arg1: i32) -> (i32, i32, i32) {
    %c0_i32 = arith.constant 0 : i32
    %c0_i32_0 = arith.constant 0 : i32
    %c0_i32_1 = arith.constant 0 : i32
    return %arg1, %c0_i32, %c0_i32_0 : i32, i32, i32
  }
  func.func @transform_2(%arg0: i32, %arg1: i32) -> (i32, i32, i32) {
    %c0_i32 = arith.constant 0 : i32
    %c0_i32_0 = arith.constant 0 : i32
    %c0_i32_1 = arith.constant 0 : i32
    return %arg1, %c0_i32, %c0_i32_0 : i32, i32, i32
  }
  func.func @transform_3(%arg0: i32, %arg1: i32) -> (i32, i32, i32) {
    %c0_i32 = arith.constant 0 : i32
    %c0_i32_0 = arith.constant 0 : i32
    %c0_i32_1 = arith.constant 0 : i32
    return %arg1, %c0_i32, %c0_i32_0 : i32, i32, i32
  }
  func.func @transform_4(%arg0: i32, %arg1: i32) -> (i32, i32, i32) {
    %c0_i32 = arith.constant 0 : i32
    %c0_i32_0 = arith.constant 0 : i32
    %c0_i32_1 = arith.constant 0 : i32
    return %arg1, %c0_i32, %c0_i32_0 : i32, i32, i32
  }
  func.func @transform_5(%arg0: i32, %arg1: i32) -> (i32, i32, i32) {
    %c0_i32 = arith.constant 0 : i32
    %c0_i32_0 = arith.constant 0 : i32
    %c0_i32_1 = arith.constant 0 : i32
    return %arg0, %c0_i32, %c0_i32_0 : i32, i32, i32
  }
  func.func @transform_6(%arg0: i32, %arg1: i32) -> (i32, i32, i32) {
    %c0_i32 = arith.constant 0 : i32
    %c0_i32_0 = arith.constant 0 : i32
    %c0_i32_1 = arith.constant 0 : i32
    return %arg0, %c0_i32, %c0_i32_0 : i32, i32, i32
  }
  func.func @transform_7(%arg0: i32, %arg1: i32) -> (i32, i32, i32, i32) {
    %c0_i32 = arith.constant 0 : i32
    %c0_i32_0 = arith.constant 0 : i32
    %c0_i32_1 = arith.constant 0 : i32
    return %arg0, %arg1, %c0_i32, %c0_i32_0 : i32, i32, i32, i32
  }
}

module attributes {stable_mosaic.version = 11 : i64} {
  func.func @_linear_res_ln_kernel(%arg0: i32, %arg1: i32, %arg2: memref<16x32xbf16, #tpu.memory_space<vmem>>, %arg3: memref<32x32xbf16, #tpu.memory_space<vmem>>, %arg4: memref<1x32xf32, #tpu.memory_space<vmem>>, %arg5: memref<16x32xf32, #tpu.memory_space<vmem>>, %arg6: memref<1x32xf32, #tpu.memory_space<vmem>>, %arg7: memref<1x32xf32, #tpu.memory_space<vmem>>, %arg8: memref<16x32xbf16, #tpu.memory_space<vmem>>, %arg9: memref<16x32xf32, #tpu.memory_space<vmem>>) attributes {dimension_semantics = [#tpu.dimension_semantics<parallel>, #tpu.dimension_semantics<arbitrary>], iteration_bounds = array<i64: 1, 1>, scalar_prefetch = 0 : i64, scratch_operands = 1 : i64, tpu.core_type = #tpu.core_type<tc>, window_params = [{transform_indices = @transform_0, window_bounds = array<i64: 16, 32>}, {transform_indices = @transform_1, window_bounds = array<i64: 32, 32>}, {pipeline_mode = #tpu.pipeline_mode<synchronous>, transform_indices = @transform_2, window_bounds = array<i64: 1, 32>}, {transform_indices = @transform_3, window_bounds = array<i64: 16, 32>}, {pipeline_mode = #tpu.pipeline_mode<synchronous>, transform_indices = @transform_4, window_bounds = array<i64: 1, 32>}, {pipeline_mode = #tpu.pipeline_mode<synchronous>, transform_indices = @transform_5, window_bounds = array<i64: 1, 32>}, {transform_indices = @transform_6, window_bounds = array<i64: 16, 32>}]} {
    %c0_i32 = arith.constant 0 : i32
    %0 = arith.cmpi eq, %arg1, %c0_i32 : i32
    %1 = arith.extui %0 : i1 to i32
    %c0_i32_0 = arith.constant 0 : i32
    %2 = arith.cmpi ne, %1, %c0_i32_0 : i32
    scf.if %2 {
      %cst_10 = arith.constant 0.000000e+00 : f32
      %12 = vector.broadcast %cst_10 : f32 to vector<16x32xf32>
      %c0_11 = arith.constant 0 : index
      %c0_12 = arith.constant 0 : index
      %13 = vector.load %arg9[%c0_11, %c0_12] : memref<16x32xf32, #tpu.memory_space<vmem>>, vector<16x32xf32>
      tpu.vector_store %arg9[%c0_11, %c0_12], %12 {strides = array<i32>} : memref<16x32xf32, #tpu.memory_space<vmem>>, vector<16x32xf32>,
    } else {
    }
    %c0 = arith.constant 0 : index
    %c0_1 = arith.constant 0 : index
    %3 = vector.load %arg9[%c0, %c0_1] : memref<16x32xf32, #tpu.memory_space<vmem>>, vector<16x32xf32>
    %c0_2 = arith.constant 0 : index
    %c0_3 = arith.constant 0 : index
    %4 = vector.load %arg2[%c0_2, %c0_3] : memref<16x32xbf16, #tpu.memory_space<vmem>>, vector<16x32xbf16>
    %c0_4 = arith.constant 0 : index
    %c0_5 = arith.constant 0 : index
    %5 = vector.load %arg3[%c0_4, %c0_5] : memref<32x32xbf16, #tpu.memory_space<vmem>>, vector<32x32xbf16>
    %cst = arith.constant dense<0.000000e+00> : vector<16x32xf32>
    %6 = tpu.matmul %4, %5, %cst {dimension_numbers = #tpu.dot_dimension_numbers<[1], [0], [0], [1], [0, 0, 1, 1], [], []>} : vector<16x32xbf16>, vector<32x32xbf16>, vector<16x32xf32> -> vector<16x32xf32>
    %7 = arith.addf %3, %6 : vector<16x32xf32>
    %c0_6 = arith.constant 0 : index
    %c0_7 = arith.constant 0 : index
    %8 = vector.load %arg9[%c0_6, %c0_7] : memref<16x32xf32, #tpu.memory_space<vmem>>, vector<16x32xf32>
    tpu.vector_store %arg9[%c0_6, %c0_7], %7 {strides = array<i32>} : memref<16x32xf32, #tpu.memory_space<vmem>>, vector<16x32xf32>,
    %c0_i32_8 = arith.constant 0 : i32
    %9 = arith.cmpi eq, %arg1, %c0_i32_8 : i32
    %10 = arith.extui %9 : i1 to i32
    %c0_i32_9 = arith.constant 0 : i32
    %11 = arith.cmpi ne, %10, %c0_i32_9 : i32
    scf.if %11 {
      %c0_10 = arith.constant 0 : index
      %c0_11 = arith.constant 0 : index
      %12 = vector.load %arg9[%c0_10, %c0_11] : memref<16x32xf32, #tpu.memory_space<vmem>>, vector<16x32xf32>
      %c0_12 = arith.constant 0 : index
      %c0_13 = arith.constant 0 : index
      %13 = vector.load %arg4[%c0_12, %c0_13] : memref<1x32xf32, #tpu.memory_space<vmem>>, vector<1x32xf32>
      %14 = vector.broadcast %13 : vector<1x32xf32> to vector<16x32xf32>
      %15 = arith.addf %12, %14 : vector<16x32xf32>
      %c0_14 = arith.constant 0 : index
      %c0_15 = arith.constant 0 : index
      %16 = vector.load %arg5[%c0_14, %c0_15] : memref<16x32xf32, #tpu.memory_space<vmem>>, vector<16x32xf32>
      %17 = arith.addf %15, %16 : vector<16x32xf32>
      %cst_16 = arith.constant dense<0.000000e+00> : vector<16xf32>
      %18 = vector.multi_reduction <add>, %17, %cst_16 [1] : vector<16x32xf32> to vector<16xf32>
      %19 = vector.shape_cast %18 : vector<16xf32> to vector<16x1xf32>
      %cst_17 = arith.constant 3.200000e+01 : f32
      %20 = vector.broadcast %cst_17 : f32 to vector<16x1xf32>
      %21 = arith.divf %19, %20 : vector<16x1xf32>
      %22 = vector.broadcast %21 : vector<16x1xf32> to vector<16x32xf32>
      %23 = arith.subf %17, %22 : vector<16x32xf32>
      %24 = arith.mulf %23, %23 : vector<16x32xf32>
      %cst_18 = arith.constant dense<0.000000e+00> : vector<16xf32>
      %25 = vector.multi_reduction <add>, %24, %cst_18 [1] : vector<16x32xf32> to vector<16xf32>
      %26 = vector.shape_cast %25 : vector<16xf32> to vector<16x1xf32>
      %cst_19 = arith.constant 3.200000e+01 : f32
      %27 = vector.broadcast %cst_19 : f32 to vector<16x1xf32>
      %28 = arith.divf %26, %27 : vector<16x1xf32>
      %29 = vector.broadcast %21 : vector<16x1xf32> to vector<16x32xf32>
      %30 = arith.subf %17, %29 : vector<16x32xf32>
      %cst_20 = arith.constant 1.000000e-07 : f32
      %31 = vector.broadcast %cst_20 : f32 to vector<16x1xf32>
      %32 = arith.addf %28, %31 : vector<16x1xf32>
      %33 = math.rsqrt %32 : vector<16x1xf32>
      %34 = vector.broadcast %33 : vector<16x1xf32> to vector<16x32xf32>
      %35 = arith.mulf %30, %34 : vector<16x32xf32>
      %c0_21 = arith.constant 0 : index
      %c0_22 = arith.constant 0 : index
      %36 = vector.load %arg6[%c0_21, %c0_22] : memref<1x32xf32, #tpu.memory_space<vmem>>, vector<1x32xf32>
      %37 = vector.broadcast %36 : vector<1x32xf32> to vector<16x32xf32>
      %38 = arith.mulf %37, %35 : vector<16x32xf32>
      %c0_23 = arith.constant 0 : index
      %c0_24 = arith.constant 0 : index
      %39 = vector.load %arg7[%c0_23, %c0_24] : memref<1x32xf32, #tpu.memory_space<vmem>>, vector<1x32xf32>
      %40 = vector.broadcast %39 : vector<1x32xf32> to vector<16x32xf32>
      %41 = arith.addf %38, %40 : vector<16x32xf32>
      %42 = arith.truncf %41 : vector<16x32xf32> to vector<16x32xbf16>
      %c0_25 = arith.constant 0 : index
      %c0_26 = arith.constant 0 : index
      %43 = vector.load %arg8[%c0_25, %c0_26] : memref<16x32xbf16, #tpu.memory_space<vmem>>, vector<16x32xbf16>
      tpu.vector_store %arg8[%c0_25, %c0_26], %42 {strides = array<i32>} : memref<16x32xbf16, #tpu.memory_space<vmem>>, vector<16x32xbf16>,
    } else {
    }
    return
  }
  func.func @transform_0(%arg0: i32, %arg1: i32) -> (i32, i32) {
    %c0_i32 = arith.constant 0 : i32
    return %arg0, %arg1 : i32, i32
  }
  func.func @transform_1(%arg0: i32, %arg1: i32) -> (i32, i32) {
    %c0_i32 = arith.constant 0 : i32
    %c0_i32_0 = arith.constant 0 : i32
    return %arg1, %c0_i32 : i32, i32
  }
  func.func @transform_2(%arg0: i32, %arg1: i32) -> (i32, i32) {
    %c0_i32 = arith.constant 0 : i32
    %c0_i32_0 = arith.constant 0 : i32
    %c0_i32_1 = arith.constant 0 : i32
    return %c0_i32, %c0_i32_0 : i32, i32
  }
  func.func @transform_3(%arg0: i32, %arg1: i32) -> (i32, i32) {
    %c0_i32 = arith.constant 0 : i32
    %c0_i32_0 = arith.constant 0 : i32
    return %arg0, %c0_i32 : i32, i32
  }
  func.func @transform_4(%arg0: i32, %arg1: i32) -> (i32, i32) {
    %c0_i32 = arith.constant 0 : i32
    %c0_i32_0 = arith.constant 0 : i32
    %c0_i32_1 = arith.constant 0 : i32
    return %c0_i32, %c0_i32_0 : i32, i32
  }
  func.func @transform_5(%arg0: i32, %arg1: i32) -> (i32, i32) {
    %c0_i32 = arith.constant 0 : i32
    %c0_i32_0 = arith.constant 0 : i32
    %c0_i32_1 = arith.constant 0 : i32
    return %c0_i32, %c0_i32_0 : i32, i32
  }
  func.func @transform_6(%arg0: i32, %arg1: i32) -> (i32, i32) {
    %c0_i32 = arith.constant 0 : i32
    %c0_i32_0 = arith.constant 0 : i32
    return %arg0, %c0_i32 : i32, i32
  }
}

module attributes {stable_mosaic.version = 11 : i64} {
  func.func @_linear_res_ln_kernel(%arg0: i32, %arg1: i32, %arg2: memref<16x64xbf16, #tpu.memory_space<vmem>>, %arg3: memref<64x32xbf16, #tpu.memory_space<vmem>>, %arg4: memref<1x32xf32, #tpu.memory_space<vmem>>, %arg5: memref<16x32xbf16, #tpu.memory_space<vmem>>, %arg6: memref<1x32xf32, #tpu.memory_space<vmem>>, %arg7: memref<1x32xf32, #tpu.memory_space<vmem>>, %arg8: memref<16x32xf32, #tpu.memory_space<vmem>>, %arg9: memref<16x32xf32, #tpu.memory_space<vmem>>) attributes {dimension_semantics = [#tpu.dimension_semantics<parallel>, #tpu.dimension_semantics<arbitrary>], iteration_bounds = array<i64: 1, 1>, scalar_prefetch = 0 : i64, scratch_operands = 1 : i64, tpu.core_type = #tpu.core_type<tc>, window_params = [{transform_indices = @transform_0, window_bounds = array<i64: 16, 64>}, {transform_indices = @transform_1, window_bounds = array<i64: 64, 32>}, {pipeline_mode = #tpu.pipeline_mode<synchronous>, transform_indices = @transform_2, window_bounds = array<i64: 1, 32>}, {transform_indices = @transform_3, window_bounds = array<i64: 16, 32>}, {pipeline_mode = #tpu.pipeline_mode<synchronous>, transform_indices = @transform_4, window_bounds = array<i64: 1, 32>}, {pipeline_mode = #tpu.pipeline_mode<synchronous>, transform_indices = @transform_5, window_bounds = array<i64: 1, 32>}, {transform_indices = @transform_6, window_bounds = array<i64: 16, 32>}]} {
    %c0_i32 = arith.constant 0 : i32
    %0 = arith.cmpi eq, %arg1, %c0_i32 : i32
    %1 = arith.extui %0 : i1 to i32
    %c0_i32_0 = arith.constant 0 : i32
    %2 = arith.cmpi ne, %1, %c0_i32_0 : i32
    scf.if %2 {
      %cst_10 = arith.constant 0.000000e+00 : f32
      %12 = vector.broadcast %cst_10 : f32 to vector<16x32xf32>
      %c0_11 = arith.constant 0 : index
      %c0_12 = arith.constant 0 : index
      %13 = vector.load %arg9[%c0_11, %c0_12] : memref<16x32xf32, #tpu.memory_space<vmem>>, vector<16x32xf32>
      tpu.vector_store %arg9[%c0_11, %c0_12], %12 {strides = array<i32>} : memref<16x32xf32, #tpu.memory_space<vmem>>, vector<16x32xf32>,
    } else {
    }
    %c0 = arith.constant 0 : index
    %c0_1 = arith.constant 0 : index
    %3 = vector.load %arg9[%c0, %c0_1] : memref<16x32xf32, #tpu.memory_space<vmem>>, vector<16x32xf32>
    %c0_2 = arith.constant 0 : index
    %c0_3 = arith.constant 0 : index
    %4 = vector.load %arg2[%c0_2, %c0_3] : memref<16x64xbf16, #tpu.memory_space<vmem>>, vector<16x64xbf16>
    %c0_4 = arith.constant 0 : index
    %c0_5 = arith.constant 0 : index
    %5 = vector.load %arg3[%c0_4, %c0_5] : memref<64x32xbf16, #tpu.memory_space<vmem>>, vector<64x32xbf16>
    %cst = arith.constant dense<0.000000e+00> : vector<16x32xf32>
    %6 = tpu.matmul %4, %5, %cst {dimension_numbers = #tpu.dot_dimension_numbers<[1], [0], [0], [1], [0, 0, 1, 1], [], []>} : vector<16x64xbf16>, vector<64x32xbf16>, vector<16x32xf32> -> vector<16x32xf32>
    %7 = arith.addf %3, %6 : vector<16x32xf32>
    %c0_6 = arith.constant 0 : index
    %c0_7 = arith.constant 0 : index
    %8 = vector.load %arg9[%c0_6, %c0_7] : memref<16x32xf32, #tpu.memory_space<vmem>>, vector<16x32xf32>
    tpu.vector_store %arg9[%c0_6, %c0_7], %7 {strides = array<i32>} : memref<16x32xf32, #tpu.memory_space<vmem>>, vector<16x32xf32>,
    %c0_i32_8 = arith.constant 0 : i32
    %9 = arith.cmpi eq, %arg1, %c0_i32_8 : i32
    %10 = arith.extui %9 : i1 to i32
    %c0_i32_9 = arith.constant 0 : i32
    %11 = arith.cmpi ne, %10, %c0_i32_9 : i32
    scf.if %11 {
      %c0_10 = arith.constant 0 : index
      %c0_11 = arith.constant 0 : index
      %12 = vector.load %arg9[%c0_10, %c0_11] : memref<16x32xf32, #tpu.memory_space<vmem>>, vector<16x32xf32>
      %c0_12 = arith.constant 0 : index
      %c0_13 = arith.constant 0 : index
      %13 = vector.load %arg4[%c0_12, %c0_13] : memref<1x32xf32, #tpu.memory_space<vmem>>, vector<1x32xf32>
      %14 = vector.broadcast %13 : vector<1x32xf32> to vector<16x32xf32>
      %15 = arith.addf %12, %14 : vector<16x32xf32>
      %c0_14 = arith.constant 0 : index
      %c0_15 = arith.constant 0 : index
      %16 = vector.load %arg5[%c0_14, %c0_15] : memref<16x32xbf16, #tpu.memory_space<vmem>>, vector<16x32xbf16>
      %17 = arith.extf %16 : vector<16x32xbf16> to vector<16x32xf32>
      %18 = arith.addf %15, %17 : vector<16x32xf32>
      %cst_16 = arith.constant dense<0.000000e+00> : vector<16xf32>
      %19 = vector.multi_reduction <add>, %18, %cst_16 [1] : vector<16x32xf32> to vector<16xf32>
      %20 = vector.shape_cast %19 : vector<16xf32> to vector<16x1xf32>
      %cst_17 = arith.constant 3.200000e+01 : f32
      %21 = vector.broadcast %cst_17 : f32 to vector<16x1xf32>
      %22 = arith.divf %20, %21 : vector<16x1xf32>
      %23 = vector.broadcast %22 : vector<16x1xf32> to vector<16x32xf32>
      %24 = arith.subf %18, %23 : vector<16x32xf32>
      %25 = arith.mulf %24, %24 : vector<16x32xf32>
      %cst_18 = arith.constant dense<0.000000e+00> : vector<16xf32>
      %26 = vector.multi_reduction <add>, %25, %cst_18 [1] : vector<16x32xf32> to vector<16xf32>
      %27 = vector.shape_cast %26 : vector<16xf32> to vector<16x1xf32>
      %cst_19 = arith.constant 3.200000e+01 : f32
      %28 = vector.broadcast %cst_19 : f32 to vector<16x1xf32>
      %29 = arith.divf %27, %28 : vector<16x1xf32>
      %30 = vector.broadcast %22 : vector<16x1xf32> to vector<16x32xf32>
      %31 = arith.subf %18, %30 : vector<16x32xf32>
      %cst_20 = arith.constant 1.000000e-07 : f32
      %32 = vector.broadcast %cst_20 : f32 to vector<16x1xf32>
      %33 = arith.addf %29, %32 : vector<16x1xf32>
      %34 = math.rsqrt %33 : vector<16x1xf32>
      %35 = vector.broadcast %34 : vector<16x1xf32> to vector<16x32xf32>
      %36 = arith.mulf %31, %35 : vector<16x32xf32>
      %c0_21 = arith.constant 0 : index
      %c0_22 = arith.constant 0 : index
      %37 = vector.load %arg6[%c0_21, %c0_22] : memref<1x32xf32, #tpu.memory_space<vmem>>, vector<1x32xf32>
      %38 = vector.broadcast %37 : vector<1x32xf32> to vector<16x32xf32>
      %39 = arith.mulf %38, %36 : vector<16x32xf32>
      %c0_23 = arith.constant 0 : index
      %c0_24 = arith.constant 0 : index
      %40 = vector.load %arg7[%c0_23, %c0_24] : memref<1x32xf32, #tpu.memory_space<vmem>>, vector<1x32xf32>
      %41 = vector.broadcast %40 : vector<1x32xf32> to vector<16x32xf32>
      %42 = arith.addf %39, %41 : vector<16x32xf32>
      %c0_25 = arith.constant 0 : index
      %c0_26 = arith.constant 0 : index
      %43 = vector.load %arg8[%c0_25, %c0_26] : memref<16x32xf32, #tpu.memory_space<vmem>>, vector<16x32xf32>
      tpu.vector_store %arg8[%c0_25, %c0_26], %42 {strides = array<i32>} : memref<16x32xf32, #tpu.memory_space<vmem>>, vector<16x32xf32>,
    } else {
    }
    return
  }
  func.func @transform_0(%arg0: i32, %arg1: i32) -> (i32, i32) {
    %c0_i32 = arith.constant 0 : i32
    return %arg0, %arg1 : i32, i32
  }
  func.func @transform_1(%arg0: i32, %arg1: i32) -> (i32, i32) {
    %c0_i32 = arith.constant 0 : i32
    %c0_i32_0 = arith.constant 0 : i32
    return %arg1, %c0_i32 : i32, i32
  }
  func.func @transform_2(%arg0: i32, %arg1: i32) -> (i32, i32) {
    %c0_i32 = arith.constant 0 : i32
    %c0_i32_0 = arith.constant 0 : i32
    %c0_i32_1 = arith.constant 0 : i32
    return %c0_i32, %c0_i32_0 : i32, i32
  }
  func.func @transform_3(%arg0: i32, %arg1: i32) -> (i32, i32) {
    %c0_i32 = arith.constant 0 : i32
    %c0_i32_0 = arith.constant 0 : i32
    return %arg0, %c0_i32 : i32, i32
  }
  func.func @transform_4(%arg0: i32, %arg1: i32) -> (i32, i32) {
    %c0_i32 = arith.constant 0 : i32
    %c0_i32_0 = arith.constant 0 : i32
    %c0_i32_1 = arith.constant 0 : i32
    return %c0_i32, %c0_i32_0 : i32, i32
  }
  func.func @transform_5(%arg0: i32, %arg1: i32) -> (i32, i32) {
    %c0_i32 = arith.constant 0 : i32
    %c0_i32_0 = arith.constant 0 : i32
    %c0_i32_1 = arith.constant 0 : i32
    return %c0_i32, %c0_i32_0 : i32, i32
  }
  func.func @transform_6(%arg0: i32, %arg1: i32) -> (i32, i32) {
    %c0_i32 = arith.constant 0 : i32
    %c0_i32_0 = arith.constant 0 : i32
    return %arg0, %c0_i32 : i32, i32
  }
}

</mosaic_0001>

<llo_original>
// kernel: tpu_custom_call.1
$region0: #{tpu_custom_call.1}
  #allocation0 [shape = 'u32[]', space=smem, size = 0x4, offset = 0x4, fixed_abs, tag = 'smem constant byte address 0x4 - core index']
  #allocation1 [shape = 'u32[72,128]{1,0:T(1,128)}', space=vmem, size = 0x9000, scoped, tag = 'internal scratch']
  %s0 = inlined_call_operand.hbm [shape: f32[8,16], index: 0, kind: input, shape index: {}]
  %s1 = inlined_call_operand.hbm [shape: s32[8,8], index: 1, kind: input, shape index: {}]
  %s2 = inlined_call_operand.hbm [shape: f32[8,8], index: 2, kind: output, shape index: {}]
  %s3 = sld [smem:[#allocation0]]
  $region26: #{tpu_custom_call.1} parent=0
    _
  %s5 = ssub.s32 1, %s3
  %s6 = scalar_select 0, %s5, %s3
  $region1: #{tpu_custom_call.1} parent=0
    #allocation2 [shape = 'u8[4096]{0}', space=vmem, size = 0x1000, scoped, tag = 'input window, operand 0, single buffered']
    #allocation3 [shape = 's32[1]{0}', space=sflag, size = 0x4, scoped, tag = 'scoped memory for tpu_custom_call.1']
    #allocation4 [shape = 's32[1]{0}', space=sflag, size = 0x4, scoped, tag = 'scoped memory for tpu_custom_call.1']
    #allocation5 [shape = 'u8[4096]{0}', space=vmem, size = 0x1000, scoped, tag = 'input window, operand 1, single buffered']
    #allocation6 [shape = 's32[1]{0}', space=sflag, size = 0x4, scoped, tag = 'scoped memory for tpu_custom_call.1']
    #allocation7 [shape = 'u8[4096]{0}', space=vmem, size = 0x1000, scoped, tag = 'output window, operand 0, single buffered']
    %7 = vsyncpa [#allocation3], 0
    %8 = vsyncpa [#allocation6], 0
    %9 = vsyncpa [#allocation4], 0
    // Predicated region
    $region2: #{tpu_custom_call.1} parent=1 // pred_check
      _
    $region3: #{tpu_custom_call.1} parent=1 // pred_check_branch
      %11 = sbr.rel (0) target = $region5
    $region4: #{tpu_custom_call.1} parent=1 // pred_region
      %13 = vsyncadd [#allocation3], 0
      %s15 = sshll.u32 %s0, 4
      %s16 = int_to_ptr.hbm [resolvable:$true] %s15
      %s17 = sshll.u32 [#allocation2], 4
      %s18 = int_to_ptr.vmem [resolvable:$true] %s17
      %20 = dma.hbm_to_vmem [thread:$0]  %s16, 128, %s18, [#allocation3]
    $region5: #{tpu_custom_call.1} parent=1 // pred_fallthru
      _
    // Predicated region
    $region6: #{tpu_custom_call.1} parent=1 // pred_check
      _
    $region7: #{tpu_custom_call.1} parent=1 // pred_check_branch
      %22 = sbr.rel (0) target = $region9
    $region8: #{tpu_custom_call.1} parent=1 // pred_region
      %24 = vsyncadd [#allocation6], 0
      %s26 = sshll.u32 %s1, 4
      %s27 = int_to_ptr.hbm [resolvable:$true] %s26
      %s28 = sshll.u32 [#allocation5], 4
      %s29 = int_to_ptr.vmem [resolvable:$true] %s28
      %31 = dma.hbm_to_vmem [thread:$0]  %s27, 128, %s29, [#allocation6]
    $region9: #{tpu_custom_call.1} parent=1 // pred_fallthru
      _
    // Predicated region
    $region10: #{tpu_custom_call.1} parent=1 // pred_check
      _
    $region11: #{tpu_custom_call.1} parent=1 // pred_check_branch
      %33 = sbr.rel (0) target = $region13
    $region12: #{tpu_custom_call.1} parent=1 // pred_region
      %35 = dma.done [#allocation3], 128
    $region13: #{tpu_custom_call.1} parent=1 // pred_fallthru
      _
    // Predicated region
    $region14: #{tpu_custom_call.1} parent=1 // pred_check
      _
    $region15: #{tpu_custom_call.1} parent=1 // pred_check_branch
      %37 = sbr.rel (0) target = $region17
    $region16: #{tpu_custom_call.1} parent=1 // pred_region
      %39 = dma.done [#allocation6], 128
    $region17: #{tpu_custom_call.1} parent=1 // pred_fallthru
      _
    %v40 = vld [vmem:[#allocation2] sm:$0xff]
    %v41 = vld [vmem:[#allocation5] sm:$0xff]
    %vm42 = vcmp.lt.s32.totalorder %v41, 0
    %v43 = vadd.s32 %v41, 16
    %v44 = vsel %vm42, %v43, %v41
    %45 = vset.pattern.permute.xlu0 %v44
    %46 = vperm.xlu0 %45, %v40
    %v47 = vpop.permute.xlu0 %46
    %vm48 = vcmask 64512
    %49 = vst.msk [vmem:[#allocation7] sm:$0xff] %vm48, %v47
    // Predicated region
    $region18: #{tpu_custom_call.1} parent=1 // pred_check
      _
    $region19: #{tpu_custom_call.1} parent=1 // pred_check_branch
      %51 = sbr.rel (0) target = $region21
    $region20: #{tpu_custom_call.1} parent=1 // pred_region
      %53 = vsyncadd [#allocation4], 0
      %s55 = sshll.u32 [#allocation7], 4
      %s56 = int_to_ptr.vmem [resolvable:$true] %s55
      %s57 = sshll.u32 %s2, 4
      %s58 = int_to_ptr.hbm [resolvable:$true] %s57
      %60 = dma.vmem_to_hbm [thread:$0]  %s56, 128, %s58, [#allocation4]
    $region21: #{tpu_custom_call.1} parent=1 // pred_fallthru
      _
    // Predicated region
    $region22: #{tpu_custom_call.1} parent=1 // pred_check
      _
    $region23: #{tpu_custom_call.1} parent=1 // pred_check_branch
      %62 = sbr.rel (0) target = $region25
    $region24: #{tpu_custom_call.1} parent=1 // pred_region
      %64 = dma.done [#allocation4], 128
    $region25: #{tpu_custom_call.1} parent=1 // pred_fallthru
      _
    %65 = vsyncpa [#allocation3], 1
    %66 = vsyncpa [#allocation6], 1
    %67 = vsyncpa [#allocation4], 1

// kernel: deberta_encoder.14
$region0: #{deberta_encoder.14}
  #allocation0 [shape = 'u32[]', space=smem, size = 0x4, offset = 0x4, fixed_abs, tag = 'smem constant byte address 0x4 - core index']
  #allocation1 [shape = 'u32[72,128]{1,0:T(1,128)}', space=vmem, size = 0x9000, scoped, tag = 'internal scratch']
  #allocation2 [shape = 'f32[16,96]{1,0:T(8,128)}', space=vmem, size = 0x2000, scoped, tag = 'scratch operand']
  %s0 = inlined_call_operand.vmem [shape: f32[16,32], index: 0, kind: input, shape index: {}]
  %s1 = inlined_call_operand.vmem [shape: bf16[32,96], index: 1, kind: input, shape index: {}]
  %s2 = inlined_call_operand.vmem [shape: bf16[16,96], index: 2, kind: output, shape index: {}]
  %s3 = sld [smem:[#allocation0]]
  $region26: #{deberta_encoder.14} parent=0
    _
  %s5 = ssub.s32 1, %s3
  %s6 = scalar_select 0, %s5, %s3
  // Predicated region
  $region2: #{deberta_encoder.14} parent=0 // pred_check
    _
  $region3: #{deberta_encoder.14} parent=0 // pred_check_branch
    %8 = sbr.rel (0) target = $region5
  $region4: #{deberta_encoder.14} parent=0 // pred_region
    _
  $region5: #{deberta_encoder.14} parent=0 // pred_fallthru
    _
  // Predicated region
  $region6: #{deberta_encoder.14} parent=0 // pred_check
    _
  $region7: #{deberta_encoder.14} parent=0 // pred_check_branch
    %10 = sbr.rel (0) target = $region9
  $region8: #{deberta_encoder.14} parent=0 // pred_region
    _
  $region9: #{deberta_encoder.14} parent=0 // pred_fallthru
    _
  %p12 = scmp.eq.s32.totalorder 0, 0
  // Predicated region
  $region10: #{deberta_encoder.14} parent=0 // pred_check
    %p13 = pneg %p12
  $region11: #{deberta_encoder.14} parent=0 // pred_check_branch
    %15 = sbr.rel (%p13) target = $region13
  $region12: #{deberta_encoder.14} parent=0 // pred_region
    %vm16 = vcmask 785408
    %17 = vst.msk [vmem:[#allocation2] sm:$0xff] %vm16, 0.0
    %18 = vst.msk [vmem:[#allocation2 + $0x8] sm:$0xff] %vm16, 0.0
  $region13: #{deberta_encoder.14} parent=0 // pred_fallthru
    _
  %v19 = vld [vmem:[#allocation2] sm:$0xff]
  %v20 = vld [vmem:[#allocation2 + $0x8] sm:$0xff]
  %v21 = vld [vmem:[%s0] sm:$0xff]
  %v22 = vld [vmem:[%s0 + $0x8] sm:$0xff]
  %v23 = vpack.c.bf16 %v22, %v21
  %v24 = vld [vmem:[%s1] sm:$0xf]
  %v25 = vld [vmem:[%s1 + $0x4] sm:$0xf]
  %v26 = vld [vmem:[%s1 + $0x8] sm:$0xf]
  %v27 = vld [vmem:[%s1 + $0xc] sm:$0xf]
  %v32 = vunpack.c.l.b16 %v24
  %v33 = vunpack.c.l.b16 %v25
  %v34 = vunpack.c.l.b16 %v26
  %v35 = vunpack.c.l.b16 %v27
  %v36 = vpack.c.b16 %v33, %v32
  %v37 = vpack.c.b16 %v35, %v34
  %vm40 = vcmask 261120
  %v42 = vsel %vm40, %v23, 0
  %44 = vmatpush.bf16.msra.mxu0 0
  %45 = vmatpush.bf16.msra.mxu0 0
  %46 = vmatpush.bf16.msra.mxu0 0
  %47 = vmatpush.bf16.msra.mxu0 0
  %48 = vmatpush.bf16.msra.mxu0 0
  %49 = vmatpush.bf16.msra.mxu0 0
  %50 = vmatpush.bf16.msra.mxu0 %v37
  %51 = vmatpush.bf16.msra.mxu0 %v36
  %52 = vmatmul.bf16.gmra.mxu0 %v42
  %v53 = vpop.f32.mrf.mxu0
  %v54 = vadd.f32 0.0, %v53
  %v55 = vpop.f32.mrf.mxu0
  %v56 = vadd.f32 0.0, %v55
  %57 = vdwg.mxu0
  %v58 = vadd.f32 %v19, %v54
  %v59 = vadd.f32 %v20, %v56
  %vm60 = vcmask 785408
  %61 = vst.msk [vmem:[#allocation2] sm:$0xff] %vm60, %v58
  %62 = vst.msk [vmem:[#allocation2 + $0x8] sm:$0xff] %vm60, %v59
  // Predicated region
  $region14: #{deberta_encoder.14} parent=0 // pred_check
    %p63 = pneg %p12
  $region15: #{deberta_encoder.14} parent=0 // pred_check_branch
    %65 = sbr.rel (%p63) target = $region17
  $region16: #{deberta_encoder.14} parent=0 // pred_region
    %v66 = vld [vmem:[#allocation2] sm:$0xff]
    %v67 = vld [vmem:[#allocation2 + $0x8] sm:$0xff]
    %v68 = vpack.c.bf16 %v66, %v66
    %v69 = vpack.c.bf16 %v67, %v67
    %vm70 = vcmask 781312
    %71 = vst.msk [vmem:[%s2] sm:$0xf] %vm70, %v68
    %72 = vst.msk [vmem:[%s2 + $0x4] sm:$0xf] %vm70, %v69
  $region17: #{deberta_encoder.14} parent=0 // pred_fallthru
    _
  // Predicated region
  $region18: #{deberta_encoder.14} parent=0 // pred_check
    _
  $region19: #{deberta_encoder.14} parent=0 // pred_check_branch
    %74 = sbr.rel (0) target = $region21
  $region20: #{deberta_encoder.14} parent=0 // pred_region
    _
  $region21: #{deberta_encoder.14} parent=0 // pred_fallthru
    _
  // Predicated region
  $region22: #{deberta_encoder.14} parent=0 // pred_check
    _
  $region23: #{deberta_encoder.14} parent=0 // pred_check_branch
    %76 = sbr.rel (0) target = $region25
  $region24: #{deberta_encoder.14} parent=0 // pred_region
    _
  $region25: #{deberta_encoder.14} parent=0 // pred_fallthru
    _

// kernel: deberta_encoder.15
$region0: #{deberta_encoder.15}
  #allocation0 [shape = 'u32[]', space=smem, size = 0x4, offset = 0x4, fixed_abs, tag = 'smem constant byte address 0x4 - core index']
  #allocation1 [shape = 'u32[72,128]{1,0:T(1,128)}', space=vmem, size = 0x9000, scoped, tag = 'internal scratch']
  #allocation2 [shape = 'f32[16,32]{1,0:T(8,128)}', space=vmem, size = 0x2000, scoped, tag = 'scratch operand']
  %s0 = inlined_call_operand.vmem [shape: f32[16,32], index: 0, kind: input, shape index: {}]
  %s1 = inlined_call_operand.vmem [shape: bf16[32,32], index: 1, kind: input, shape index: {}]
  %s2 = inlined_call_operand.vmem [shape: bf16[16,32], index: 2, kind: output, shape index: {}]
  %s3 = sld [smem:[#allocation0]]
  $region26: #{deberta_encoder.15} parent=0
    _
  %s5 = ssub.s32 1, %s3
  %s6 = scalar_select 0, %s5, %s3
  // Predicated region
  $region2: #{deberta_encoder.15} parent=0 // pred_check
    _
  $region3: #{deberta_encoder.15} parent=0 // pred_check_branch
    %8 = sbr.rel (0) target = $region5
  $region4: #{deberta_encoder.15} parent=0 // pred_region
    _
  $region5: #{deberta_encoder.15} parent=0 // pred_fallthru
    _
  // Predicated region
  $region6: #{deberta_encoder.15} parent=0 // pred_check
    _
  $region7: #{deberta_encoder.15} parent=0 // pred_check_branch
    %10 = sbr.rel (0) target = $region9
  $region8: #{deberta_encoder.15} parent=0 // pred_region
    _
  $region9: #{deberta_encoder.15} parent=0 // pred_fallthru
    _
  %p12 = scmp.eq.s32.totalorder 0, 0
  // Predicated region
  $region10: #{deberta_encoder.15} parent=0 // pred_check
    %p13 = pneg %p12
  $region11: #{deberta_encoder.15} parent=0 // pred_check_branch
    %15 = sbr.rel (%p13) target = $region13
  $region12: #{deberta_encoder.15} parent=0 // pred_region
    %vm16 = vcmask 261120
    %17 = vst.msk [vmem:[#allocation2] sm:$0xff] %vm16, 0.0
    %18 = vst.msk [vmem:[#allocation2 + $0x8] sm:$0xff] %vm16, 0.0
  $region13: #{deberta_encoder.15} parent=0 // pred_fallthru
    _
  %v19 = vld [vmem:[#allocation2] sm:$0xff]
  %v20 = vld [vmem:[#allocation2 + $0x8] sm:$0xff]
  %v21 = vld [vmem:[%s0] sm:$0xff]
  %v22 = vld [vmem:[%s0 + $0x8] sm:$0xff]
  %v23 = vpack.c.bf16 %v22, %v21
  %v24 = vld [vmem:[%s1] sm:$0xf]
  %v25 = vld [vmem:[%s1 + $0x4] sm:$0xf]
  %v26 = vld [vmem:[%s1 + $0x8] sm:$0xf]
  %v27 = vld [vmem:[%s1 + $0xc] sm:$0xf]
  %v32 = vunpack.c.l.b16 %v24
  %v33 = vunpack.c.l.b16 %v25
  %v34 = vunpack.c.l.b16 %v26
  %v35 = vunpack.c.l.b16 %v27
  %v36 = vpack.c.b16 %v33, %v32
  %v37 = vpack.c.b16 %v35, %v34
  %vm40 = vcmask 261120
  %v42 = vsel %vm40, %v23, 0
  %44 = vmatpush.bf16.msra.mxu0 0
  %45 = vmatpush.bf16.msra.mxu0 0
  %46 = vmatpush.bf16.msra.mxu0 0
  %47 = vmatpush.bf16.msra.mxu0 0
  %48 = vmatpush.bf16.msra.mxu0 0
  %49 = vmatpush.bf16.msra.mxu0 0
  %50 = vmatpush.bf16.msra.mxu0 %v37
  %51 = vmatpush.bf16.msra.mxu0 %v36
  %52 = vmatmul.bf16.gmra.mxu0 %v42
  %v53 = vpop.f32.mrf.mxu0
  %v54 = vadd.f32 0.0, %v53
  %v55 = vpop.f32.mrf.mxu0
  %v56 = vadd.f32 0.0, %v55
  %57 = vdwg.mxu0
  %v58 = vadd.f32 %v19, %v54
  %v59 = vadd.f32 %v20, %v56
  %60 = vst.msk [vmem:[#allocation2] sm:$0xff] %vm40, %v58
  %61 = vst.msk [vmem:[#allocation2 + $0x8] sm:$0xff] %vm40, %v59
  // Predicated region
  $region14: #{deberta_encoder.15} parent=0 // pred_check
    %p62 = pneg %p12
  $region15: #{deberta_encoder.15} parent=0 // pred_check_branch
    %64 = sbr.rel (%p62) target = $region17
  $region16: #{deberta_encoder.15} parent=0 // pred_region
    %v65 = vld [vmem:[#allocation2] sm:$0xff]
    %v66 = vld [vmem:[#allocation2 + $0x8] sm:$0xff]
    %v67 = vpack.c.bf16 %v65, %v65
    %v68 = vpack.c.bf16 %v66, %v66
    %vm69 = vcmask 257024
    %70 = vst.msk [vmem:[%s2] sm:$0xf] %vm69, %v67
    %71 = vst.msk [vmem:[%s2 + $0x4] sm:$0xf] %vm69, %v68
  $region17: #{deberta_encoder.15} parent=0 // pred_fallthru
    _
  // Predicated region
  $region18: #{deberta_encoder.15} parent=0 // pred_check
    _
  $region19: #{deberta_encoder.15} parent=0 // pred_check_branch
    %73 = sbr.rel (0) target = $region21
  $region20: #{deberta_encoder.15} parent=0 // pred_region
    _
  $region21: #{deberta_encoder.15} parent=0 // pred_fallthru
    _
  // Predicated region
  $region22: #{deberta_encoder.15} parent=0 // pred_check
    _
  $region23: #{deberta_encoder.15} parent=0 // pred_check_branch
    %75 = sbr.rel (0) target = $region25
  $region24: #{deberta_encoder.15} parent=0 // pred_region
    _
  $region25: #{deberta_encoder.15} parent=0 // pred_fallthru
    _

// kernel: deberta_encoder.16
$region0: #{deberta_encoder.16}
  #allocation0 [shape = 'u32[]', space=smem, size = 0x4, offset = 0x4, fixed_abs, tag = 'smem constant byte address 0x4 - core index']
  #allocation1 [shape = 'u32[72,128]{1,0:T(1,128)}', space=vmem, size = 0x9000, scoped, tag = 'internal scratch']
  #allocation2 [shape = 'f32[16,32]{1,0:T(8,128)}', space=vmem, size = 0x2000, scoped, tag = 'scratch operand']
  %s0 = inlined_call_operand.vmem [shape: f32[16,32], index: 0, kind: input, shape index: {}]
  %s1 = inlined_call_operand.vmem [shape: bf16[32,32], index: 1, kind: input, shape index: {}]
  %s2 = inlined_call_operand.vmem [shape: f32[1,32], index: 2, kind: input, shape index: {}]
  %s3 = inlined_call_operand.vmem [shape: bf16[16,32], index: 3, kind: output, shape index: {}]
  %s4 = sld [smem:[#allocation0]]
  $region30: #{deberta_encoder.16} parent=0
    _
  %s6 = ssub.s32 1, %s4
  %s7 = scalar_select 0, %s6, %s4
  // Predicated region
  $region2: #{deberta_encoder.16} parent=0 // pred_check
    _
  $region3: #{deberta_encoder.16} parent=0 // pred_check_branch
    %9 = sbr.rel (0) target = $region5
  $region4: #{deberta_encoder.16} parent=0 // pred_region
    _
  $region5: #{deberta_encoder.16} parent=0 // pred_fallthru
    _
  // Predicated region
  $region6: #{deberta_encoder.16} parent=0 // pred_check
    _
  $region7: #{deberta_encoder.16} parent=0 // pred_check_branch
    %11 = sbr.rel (0) target = $region9
  $region8: #{deberta_encoder.16} parent=0 // pred_region
    _
  $region9: #{deberta_encoder.16} parent=0 // pred_fallthru
    _
  // Predicated region
  $region10: #{deberta_encoder.16} parent=0 // pred_check
    _
  $region11: #{deberta_encoder.16} parent=0 // pred_check_branch
    %13 = sbr.rel (0) target = $region13
  $region12: #{deberta_encoder.16} parent=0 // pred_region
    _
  $region13: #{deberta_encoder.16} parent=0 // pred_fallthru
    _
  %p15 = scmp.eq.s32.totalorder 0, 0
  // Predicated region
  $region14: #{deberta_encoder.16} parent=0 // pred_check
    %p16 = pneg %p15
  $region15: #{deberta_encoder.16} parent=0 // pred_check_branch
    %18 = sbr.rel (%p16) target = $region17
  $region16: #{deberta_encoder.16} parent=0 // pred_region
    %vm19 = vcmask 261120
    %20 = vst.msk [vmem:[#allocation2] sm:$0xff] %vm19, 0.0
    %21 = vst.msk [vmem:[#allocation2 + $0x8] sm:$0xff] %vm19, 0.0
  $region17: #{deberta_encoder.16} parent=0 // pred_fallthru
    _
  %v22 = vld [vmem:[#allocation2] sm:$0xff]
  %v23 = vld [vmem:[#allocation2 + $0x8] sm:$0xff]
  %v24 = vld [vmem:[%s0] sm:$0xff]
  %v25 = vld [vmem:[%s0 + $0x8] sm:$0xff]
  %v26 = vpack.c.bf16 %v25, %v24
  %v27 = vld [vmem:[%s1] sm:$0xf]
  %v28 = vld [vmem:[%s1 + $0x4] sm:$0xf]
  %v29 = vld [vmem:[%s1 + $0x8] sm:$0xf]
  %v30 = vld [vmem:[%s1 + $0xc] sm:$0xf]
  %v35 = vunpack.c.l.b16 %v27
  %v36 = vunpack.c.l.b16 %v28
  %v37 = vunpack.c.l.b16 %v29
  %v38 = vunpack.c.l.b16 %v30
  %v39 = vpack.c.b16 %v36, %v35
  %v40 = vpack.c.b16 %v38, %v37
  %vm43 = vcmask 261120
  %v45 = vsel %vm43, %v26, 0
  %47 = vmatpush.bf16.msra.mxu0 0
  %48 = vmatpush.bf16.msra.mxu0 0
  %49 = vmatpush.bf16.msra.mxu0 0
  %50 = vmatpush.bf16.msra.mxu0 0
  %51 = vmatpush.bf16.msra.mxu0 0
  %52 = vmatpush.bf16.msra.mxu0 0
  %53 = vmatpush.bf16.msra.mxu0 %v40
  %54 = vmatpush.bf16.msra.mxu0 %v39
  %55 = vmatmul.bf16.gmra.mxu0 %v45
  %v56 = vpop.f32.mrf.mxu0
  %v57 = vadd.f32 0.0, %v56
  %v58 = vpop.f32.mrf.mxu0
  %v59 = vadd.f32 0.0, %v58
  %60 = vdwg.mxu0
  %v61 = vadd.f32 %v22, %v57
  %v62 = vadd.f32 %v23, %v59
  %63 = vst.msk [vmem:[#allocation2] sm:$0xff] %vm43, %v61
  %64 = vst.msk [vmem:[#allocation2 + $0x8] sm:$0xff] %vm43, %v62
  // Predicated region
  $region18: #{deberta_encoder.16} parent=0 // pred_check
    %p65 = pneg %p15
  $region19: #{deberta_encoder.16} parent=0 // pred_check_branch
    %67 = sbr.rel (%p65) target = $region21
  $region20: #{deberta_encoder.16} parent=0 // pred_region
    %v68 = vld [vmem:[#allocation2] sm:$0xff]
    %v69 = vld [vmem:[#allocation2 + $0x8] sm:$0xff]
    %v70 = vld [vmem:[%s2] sm:$0x1]
    %v72 = vperm.slane %v70, 0
    %v74 = vadd.f32 %v68, %v72
    %v75 = vadd.f32 %v69, %v72
    %v76 = vpack.c.bf16 %v74, %v74
    %v77 = vpack.c.bf16 %v75, %v75
    %vm78 = vcmask 257024
    %79 = vst.msk [vmem:[%s3] sm:$0xf] %vm78, %v76
    %80 = vst.msk [vmem:[%s3 + $0x4] sm:$0xf] %vm78, %v77
  $region21: #{deberta_encoder.16} parent=0 // pred_fallthru
    _
  // Predicated region
  $region22: #{deberta_encoder.16} parent=0 // pred_check
    _
  $region23: #{deberta_encoder.16} parent=0 // pred_check_branch
    %82 = sbr.rel (0) target = $region25
  $region24: #{deberta_encoder.16} parent=0 // pred_region
    _
  $region25: #{deberta_encoder.16} parent=0 // pred_fallthru
    _
  // Predicated region
  $region26: #{deberta_encoder.16} parent=0 // pred_check
    _
  $region27: #{deberta_encoder.16} parent=0 // pred_check_branch
    %84 = sbr.rel (0) target = $region29
  $region28: #{deberta_encoder.16} parent=0 // pred_region
    _
  $region29: #{deberta_encoder.16} parent=0 // pred_fallthru
    _

// kernel: deberta_encoder.19
$region0: #{deberta_encoder.19}
  #allocation0 [shape = 'u32[]', space=smem, size = 0x4, offset = 0x4, fixed_abs, tag = 'smem constant byte address 0x4 - core index']
  #allocation1 [shape = 'u32[72,128]{1,0:T(1,128)}', space=vmem, size = 0x9000, scoped, tag = 'internal scratch']
  #allocation2 [shape = 'f32[16,64]{1,0:T(8,128)}', space=vmem, size = 0x2000, scoped, tag = 'scratch operand']
  %s0 = inlined_call_operand.vmem [shape: bf16[16,32], index: 0, kind: input, shape index: {}]
  %s1 = inlined_call_operand.vmem [shape: bf16[32,64], index: 1, kind: input, shape index: {}]
  %s2 = inlined_call_operand.vmem [shape: f32[1,64], index: 2, kind: input, shape index: {}]
  %s3 = inlined_call_operand.vmem [shape: bf16[16,64], index: 3, kind: output, shape index: {}]
  %s4 = sld [smem:[#allocation0]]
  $region30: #{deberta_encoder.19} parent=0
    _
  %s6 = ssub.s32 1, %s4
  %s7 = scalar_select 0, %s6, %s4
  // Predicated region
  $region2: #{deberta_encoder.19} parent=0 // pred_check
    _
  $region3: #{deberta_encoder.19} parent=0 // pred_check_branch
    %9 = sbr.rel (0) target = $region5
  $region4: #{deberta_encoder.19} parent=0 // pred_region
    _
  $region5: #{deberta_encoder.19} parent=0 // pred_fallthru
    _
  // Predicated region
  $region6: #{deberta_encoder.19} parent=0 // pred_check
    _
  $region7: #{deberta_encoder.19} parent=0 // pred_check_branch
    %11 = sbr.rel (0) target = $region9
  $region8: #{deberta_encoder.19} parent=0 // pred_region
    _
  $region9: #{deberta_encoder.19} parent=0 // pred_fallthru
    _
  // Predicated region
  $region10: #{deberta_encoder.19} parent=0 // pred_check
    _
  $region11: #{deberta_encoder.19} parent=0 // pred_check_branch
    %13 = sbr.rel (0) target = $region13
  $region12: #{deberta_encoder.19} parent=0 // pred_region
    _
  $region13: #{deberta_encoder.19} parent=0 // pred_fallthru
    _
  %p15 = scmp.eq.s32.totalorder 0, 0
  // Predicated region
  $region14: #{deberta_encoder.19} parent=0 // pred_check
    %p16 = pneg %p15
  $region15: #{deberta_encoder.19} parent=0 // pred_check_branch
    %18 = sbr.rel (%p16) target = $region17
  $region16: #{deberta_encoder.19} parent=0 // pred_region
    %vm19 = vcmask 523264
    %20 = vst.msk [vmem:[#allocation2] sm:$0xff] %vm19, 0.0
    %21 = vst.msk [vmem:[#allocation2 + $0x8] sm:$0xff] %vm19, 0.0
  $region17: #{deberta_encoder.19} parent=0 // pred_fallthru
    _
  %v22 = vld [vmem:[#allocation2] sm:$0xff]
  %v23 = vld [vmem:[#allocation2 + $0x8] sm:$0xff]
  %v24 = vld [vmem:[%s0] sm:$0xf]
  %v25 = vld [vmem:[%s0 + $0x4] sm:$0xf]
  %v26 = vld [vmem:[%s1] sm:$0xf]
  %v27 = vld [vmem:[%s1 + $0x4] sm:$0xf]
  %v28 = vld [vmem:[%s1 + $0x8] sm:$0xf]
  %v29 = vld [vmem:[%s1 + $0xc] sm:$0xf]
  %v32 = vunpack.c.l.b16 %v24
  %v33 = vunpack.c.l.b16 %v25
  %v34 = vpack.c.b16 %v33, %v32
  %v39 = vunpack.c.l.b16 %v26
  %v40 = vunpack.c.l.b16 %v27
  %v41 = vunpack.c.l.b16 %v28
  %v42 = vunpack.c.l.b16 %v29
  %v43 = vpack.c.b16 %v40, %v39
  %v44 = vpack.c.b16 %v42, %v41
  %vm47 = vcmask 261120
  %v49 = vsel %vm47, %v34, 0
  %51 = vmatpush.bf16.msra.mxu0 0
  %52 = vmatpush.bf16.msra.mxu0 0
  %53 = vmatpush.bf16.msra.mxu0 0
  %54 = vmatpush.bf16.msra.mxu0 0
  %55 = vmatpush.bf16.msra.mxu0 0
  %56 = vmatpush.bf16.msra.mxu0 0
  %57 = vmatpush.bf16.msra.mxu0 %v44
  %58 = vmatpush.bf16.msra.mxu0 %v43
  %59 = vmatmul.bf16.gmra.mxu0 %v49
  %v60 = vpop.f32.mrf.mxu0
  %v61 = vadd.f32 0.0, %v60
  %v62 = vpop.f32.mrf.mxu0
  %v63 = vadd.f32 0.0, %v62
  %64 = vdwg.mxu0
  %v65 = vadd.f32 %v22, %v61
  %v66 = vadd.f32 %v23, %v63
  %vm67 = vcmask 523264
  %68 = vst.msk [vmem:[#allocation2] sm:$0xff] %vm67, %v65
  %69 = vst.msk [vmem:[#allocation2 + $0x8] sm:$0xff] %vm67, %v66
  // Predicated region
  $region18: #{deberta_encoder.19} parent=0 // pred_check
    %p70 = pneg %p15
  $region19: #{deberta_encoder.19} parent=0 // pred_check_branch
    %72 = sbr.rel (%p70) target = $region21
  $region20: #{deberta_encoder.19} parent=0 // pred_region
    %v73 = vld [vmem:[#allocation2] sm:$0xff]
    %v74 = vld [vmem:[#allocation2 + $0x8] sm:$0xff]
    %v75 = vld [vmem:[%s2] sm:$0x1]
    %v77 = vperm.slane %v75, 0
    %v79 = vadd.f32 %v73, %v77
    %v80 = vadd.f32 %v74, %v77
    %v81 = vmul.f32 %v79, 0.5
    %v82 = vmul.f32 %v80, 0.5
    %v83 = vmul.f32 %v79, 0.044715
    %v84 = vmul.f32 %v80, 0.044715
    %v85 = vmul.f32 %v83, %v79
    %v86 = vmul.f32 %v84, %v80
    %v87 = vmul.f32 %v85, %v79
    %v88 = vmul.f32 %v86, %v80
    %v89 = vadd.f32 %v79, %v87
    %v90 = vadd.f32 %v80, %v88
    %v91 = vmul.f32 %v89, 0.7978846
    %v92 = vmul.f32 %v90, 0.7978846
    %v93 = vtanh.pop %v91
    %v94 = vtanh.pop %v92
    %v95 = vadd.f32 %v93, 1.0
    %v96 = vadd.f32 %v94, 1.0
    %v97 = vmul.f32 %v81, %v95
    %v98 = vmul.f32 %v82, %v96
    %v99 = vpack.c.bf16 %v97, %v97
    %v100 = vpack.c.bf16 %v98, %v98
    %vm101 = vcmask 519168
    %102 = vst.msk [vmem:[%s3] sm:$0xf] %vm101, %v99
    %103 = vst.msk [vmem:[%s3 + $0x4] sm:$0xf] %vm101, %v100
  $region21: #{deberta_encoder.19} parent=0 // pred_fallthru
    _
  // Predicated region
  $region22: #{deberta_encoder.19} parent=0 // pred_check
    _
  $region23: #{deberta_encoder.19} parent=0 // pred_check_branch
    %105 = sbr.rel (0) target = $region25
  $region24: #{deberta_encoder.19} parent=0 // pred_region
    _
  $region25: #{deberta_encoder.19} parent=0 // pred_fallthru
    _
  // Predicated region
  $region26: #{deberta_encoder.19} parent=0 // pred_check
    _
  $region27: #{deberta_encoder.19} parent=0 // pred_check_branch
    %107 = sbr.rel (0) target = $region29
  $region28: #{deberta_encoder.19} parent=0 // pred_region
    _
  $region29: #{deberta_encoder.19} parent=0 // pred_fallthru
    _

// kernel: deberta_encoder.18
$region0: #{deberta_encoder.18}
  #allocation0 [shape = 'u32[]', space=smem, size = 0x4, offset = 0x4, fixed_abs, tag = 'smem constant byte address 0x4 - core index']
  #allocation1 [shape = 'u32[72,128]{1,0:T(1,128)}', space=vmem, size = 0x9000, scoped, tag = 'internal scratch']
  #allocation2 [shape = 'f32[16,32]{1,0:T(8,128)}', space=vmem, size = 0x2000, scoped, tag = 'scratch operand']
  %s0 = inlined_call_operand.vmem [shape: bf16[16,32], index: 0, kind: input, shape index: {}]
  %s1 = inlined_call_operand.vmem [shape: bf16[32,32], index: 1, kind: input, shape index: {}]
  %s2 = inlined_call_operand.vmem [shape: f32[1,32], index: 2, kind: input, shape index: {}]
  %s3 = inlined_call_operand.vmem [shape: f32[16,32], index: 3, kind: input, shape index: {}]
  %s4 = inlined_call_operand.vmem [shape: f32[1,32], index: 4, kind: input, shape index: {}]
  %s5 = inlined_call_operand.vmem [shape: f32[1,32], index: 5, kind: input, shape index: {}]
  %s6 = inlined_call_operand.vmem [shape: bf16[16,32], index: 6, kind: output, shape index: {}]
  %s7 = sld [smem:[#allocation0]]
  $region42: #{deberta_encoder.18} parent=0
    _
  %s9 = ssub.s32 1, %s7
  %s10 = scalar_select 0, %s9, %s7
  // Predicated region
  $region2: #{deberta_encoder.18} parent=0 // pred_check
    _
  $region3: #{deberta_encoder.18} parent=0 // pred_check_branch
    %12 = sbr.rel (0) target = $region5
  $region4: #{deberta_encoder.18} parent=0 // pred_region
    _
  $region5: #{deberta_encoder.18} parent=0 // pred_fallthru
    _
  // Predicated region
  $region6: #{deberta_encoder.18} parent=0 // pred_check
    _
  $region7: #{deberta_encoder.18} parent=0 // pred_check_branch
    %14 = sbr.rel (0) target = $region9
  $region8: #{deberta_encoder.18} parent=0 // pred_region
    _
  $region9: #{deberta_encoder.18} parent=0 // pred_fallthru
    _
  // Predicated region
  $region10: #{deberta_encoder.18} parent=0 // pred_check
    _
  $region11: #{deberta_encoder.18} parent=0 // pred_check_branch
    %16 = sbr.rel (0) target = $region13
  $region12: #{deberta_encoder.18} parent=0 // pred_region
    _
  $region13: #{deberta_encoder.18} parent=0 // pred_fallthru
    _
  // Predicated region
  $region14: #{deberta_encoder.18} parent=0 // pred_check
    _
  $region15: #{deberta_encoder.18} parent=0 // pred_check_branch
    %18 = sbr.rel (0) target = $region17
  $region16: #{deberta_encoder.18} parent=0 // pred_region
    _
  $region17: #{deberta_encoder.18} parent=0 // pred_fallthru
    _
  // Predicated region
  $region18: #{deberta_encoder.18} parent=0 // pred_check
    _
  $region19: #{deberta_encoder.18} parent=0 // pred_check_branch
    %20 = sbr.rel (0) target = $region21
  $region20: #{deberta_encoder.18} parent=0 // pred_region
    _
  $region21: #{deberta_encoder.18} parent=0 // pred_fallthru
    _
  // Predicated region
  $region22: #{deberta_encoder.18} parent=0 // pred_check
    _
  $region23: #{deberta_encoder.18} parent=0 // pred_check_branch
    %22 = sbr.rel (0) target = $region25
  $region24: #{deberta_encoder.18} parent=0 // pred_region
    _
  $region25: #{deberta_encoder.18} parent=0 // pred_fallthru
    _
  %p24 = scmp.eq.s32.totalorder 0, 0
  // Predicated region
  $region26: #{deberta_encoder.18} parent=0 // pred_check
    %p25 = pneg %p24
  $region27: #{deberta_encoder.18} parent=0 // pred_check_branch
    %27 = sbr.rel (%p25) target = $region29
  $region28: #{deberta_encoder.18} parent=0 // pred_region
    %vm28 = vcmask 261120
    %29 = vst.msk [vmem:[#allocation2] sm:$0xff] %vm28, 0.0
    %30 = vst.msk [vmem:[#allocation2 + $0x8] sm:$0xff] %vm28, 0.0
  $region29: #{deberta_encoder.18} parent=0 // pred_fallthru
    _
  %v31 = vld [vmem:[#allocation2] sm:$0xff]
  %v32 = vld [vmem:[#allocation2 + $0x8] sm:$0xff]
  %v33 = vld [vmem:[%s0] sm:$0xf]
  %v34 = vld [vmem:[%s0 + $0x4] sm:$0xf]
  %v35 = vld [vmem:[%s1] sm:$0xf]
  %v36 = vld [vmem:[%s1 + $0x4] sm:$0xf]
  %v37 = vld [vmem:[%s1 + $0x8] sm:$0xf]
  %v38 = vld [vmem:[%s1 + $0xc] sm:$0xf]
  %v41 = vunpack.c.l.b16 %v33
  %v42 = vunpack.c.l.b16 %v34
  %v43 = vpack.c.b16 %v42, %v41
  %v48 = vunpack.c.l.b16 %v35
  %v49 = vunpack.c.l.b16 %v36
  %v50 = vunpack.c.l.b16 %v37
  %v51 = vunpack.c.l.b16 %v38
  %v52 = vpack.c.b16 %v49, %v48
  %v53 = vpack.c.b16 %v51, %v50
  %vm56 = vcmask 261120
  %v58 = vsel %vm56, %v43, 0
  %60 = vmatpush.bf16.msra.mxu0 0
  %61 = vmatpush.bf16.msra.mxu0 0
  %62 = vmatpush.bf16.msra.mxu0 0
  %63 = vmatpush.bf16.msra.mxu0 0
  %64 = vmatpush.bf16.msra.mxu0 0
  %65 = vmatpush.bf16.msra.mxu0 0
  %66 = vmatpush.bf16.msra.mxu0 %v53
  %67 = vmatpush.bf16.msra.mxu0 %v52
  %68 = vmatmul.bf16.gmra.mxu0 %v58
  %v69 = vpop.f32.mrf.mxu0
  %v70 = vadd.f32 0.0, %v69
  %v71 = vpop.f32.mrf.mxu0
  %v72 = vadd.f32 0.0, %v71
  %73 = vdwg.mxu0
  %v74 = vadd.f32 %v31, %v70
  %v75 = vadd.f32 %v32, %v72
  %76 = vst.msk [vmem:[#allocation2] sm:$0xff] %vm56, %v74
  %77 = vst.msk [vmem:[#allocation2 + $0x8] sm:$0xff] %vm56, %v75
  // Predicated region
  $region30: #{deberta_encoder.18} parent=0 // pred_check
    %p78 = pneg %p24
  $region31: #{deberta_encoder.18} parent=0 // pred_check_branch
    %80 = sbr.rel (%p78) target = $region33
  $region32: #{deberta_encoder.18} parent=0 // pred_region
    %v81 = vld [vmem:[#allocation2] sm:$0xff]
    %v82 = vld [vmem:[#allocation2 + $0x8] sm:$0xff]
    %v83 = vld [vmem:[%s2] sm:$0x1]
    %v85 = vperm.slane %v83, 0
    %v87 = vadd.f32 %v81, %v85
    %v88 = vadd.f32 %v82, %v85
    %v89 = vld [vmem:[%s3] sm:$0xff]
    %v90 = vld [vmem:[%s3 + $0x8] sm:$0xff]
    %v91 = vadd.f32 %v87, %v89
    %v92 = vadd.f32 %v88, %v90
    %v93 = vsel %vm56, %v91, 0.0
    %94 = vadd.xlane.f32.xlu0 %v93
    %v95 = vpop.xlane.xlu0 %94
    %v96 = vsel %vm56, %v92, 0.0
    %97 = vadd.xlane.f32.xlu0 %v96
    %v98 = vpop.xlane.xlu0 %97
    %v99 = vrcp.pop 32.0
    %v100 = vmul.f32 32.0, %v99
    %v101 = vsub.f32 1.0, %v100
    %v102 = vmul.f32 %v99, %v101
    %v103 = vadd.f32 %v99, %v102
    %vm104 = vweird.f32 %v99
    %v105 = vsel %vm104, %v99, %v103
    %v106 = vmul.f32 %v95, %v105
    %v107 = vmul.f32 %v98, %v105
    %v108 = vsub.f32 %v91, %v106
    %v109 = vsub.f32 %v92, %v107
    %v110 = vmul.f32 %v108, %v108
    %v111 = vmul.f32 %v109, %v109
    %v112 = vsel %vm56, %v110, 0.0
    %113 = vadd.xlane.f32.xlu0 %v112
    %v114 = vpop.xlane.xlu0 %113
    %v115 = vsel %vm56, %v111, 0.0
    %116 = vadd.xlane.f32.xlu0 %v115
    %v117 = vpop.xlane.xlu0 %116
    %v118 = vmul.f32 %v114, %v105
    %v119 = vmul.f32 %v117, %v105
    %v120 = vadd.f32 %v118, 1e-07
    %v121 = vadd.f32 %v119, 1e-07
    %v122 = vrsqrt.pop %v120
    %v123 = vmul.f32 %v122, %v120
    %v124 = vmul.f32 %v123, %v122
    %v125 = vmul.f32 0.5, %v124
    %v126 = vsub.f32 1.5, %v125
    %v127 = vmul.f32 %v122, %v126
    %vm128 = vweird.f32 %v120
    %vm129 = vweird.f32 %v122
    %vm130 = vmor %vm128, %vm129
    %v131 = vsel %vm130, %v122, %v127
    %v132 = vrsqrt.pop %v121
    %v133 = vmul.f32 %v132, %v121
    %v134 = vmul.f32 %v133, %v132
    %v135 = vmul.f32 0.5, %v134
    %v136 = vsub.f32 1.5, %v135
    %v137 = vmul.f32 %v132, %v136
    %vm138 = vweird.f32 %v121
    %vm139 = vweird.f32 %v132
    %vm140 = vmor %vm138, %vm139
    %v141 = vsel %vm140, %v132, %v137
    %v142 = vmul.f32 %v108, %v131
    %v143 = vmul.f32 %v109, %v141
    %v144 = vld [vmem:[%s4] sm:$0x1]
    %v146 = vperm.slane %v144, 0
    %v148 = vmul.f32 %v146, %v142
    %v149 = vmul.f32 %v146, %v143
    %v150 = vld [vmem:[%s5] sm:$0x1]
    %v152 = vperm.slane %v150, 0
    %v154 = vadd.f32 %v148, %v152
    %v155 = vadd.f32 %v149, %v152
    %v156 = vpack.c.bf16 %v154, %v154
    %v157 = vpack.c.bf16 %v155, %v155
    %vm158 = vcmask 257024
    %159 = vst.msk [vmem:[%s6] sm:$0xf] %vm158, %v156
    %160 = vst.msk [vmem:[%s6 + $0x4] sm:$0xf] %vm158, %v157
  $region33: #{deberta_encoder.18} parent=0 // pred_fallthru
    _
  // Predicated region
  $region34: #{deberta_encoder.18} parent=0 // pred_check
    _
  $region35: #{deberta_encoder.18} parent=0 // pred_check_branch
    %162 = sbr.rel (0) target = $region37
  $region36: #{deberta_encoder.18} parent=0 // pred_region
    _
  $region37: #{deberta_encoder.18} parent=0 // pred_fallthru
    _
  // Predicated region
  $region38: #{deberta_encoder.18} parent=0 // pred_check
    _
  $region39: #{deberta_encoder.18} parent=0 // pred_check_branch
    %164 = sbr.rel (0) target = $region41
  $region40: #{deberta_encoder.18} parent=0 // pred_region
    _
  $region41: #{deberta_encoder.18} parent=0 // pred_fallthru
    _

// kernel: deberta_encoder.20
$region0: #{deberta_encoder.20}
  #allocation0 [shape = 'u32[]', space=smem, size = 0x4, offset = 0x4, fixed_abs, tag = 'smem constant byte address 0x4 - core index']
  #allocation1 [shape = 'u32[72,128]{1,0:T(1,128)}', space=vmem, size = 0x9000, scoped, tag = 'internal scratch']
  #allocation2 [shape = 'f32[16,32]{1,0:T(8,128)}', space=vmem, size = 0x2000, scoped, tag = 'scratch operand']
  %s0 = inlined_call_operand.vmem [shape: bf16[16,64], index: 0, kind: input, shape index: {}]
  %s1 = inlined_call_operand.vmem [shape: bf16[64,32], index: 1, kind: input, shape index: {}]
  %s2 = inlined_call_operand.vmem [shape: f32[1,32], index: 2, kind: input, shape index: {}]
  %s3 = inlined_call_operand.vmem [shape: bf16[16,32], index: 3, kind: input, shape index: {}]
  %s4 = inlined_call_operand.vmem [shape: f32[1,32], index: 4, kind: input, shape index: {}]
  %s5 = inlined_call_operand.vmem [shape: f32[1,32], index: 5, kind: input, shape index: {}]
  %s6 = inlined_call_operand.vmem [shape: f32[16,32], index: 6, kind: output, shape index: {}]
  %s7 = sld [smem:[#allocation0]]
  $region42: #{deberta_encoder.20} parent=0
    _
  %s9 = ssub.s32 1, %s7
  %s10 = scalar_select 0, %s9, %s7
  // Predicated region
  $region2: #{deberta_encoder.20} parent=0 // pred_check
    _
  $region3: #{deberta_encoder.20} parent=0 // pred_check_branch
    %12 = sbr.rel (0) target = $region5
  $region4: #{deberta_encoder.20} parent=0 // pred_region
    _
  $region5: #{deberta_encoder.20} parent=0 // pred_fallthru
    _
  // Predicated region
  $region6: #{deberta_encoder.20} parent=0 // pred_check
    _
  $region7: #{deberta_encoder.20} parent=0 // pred_check_branch
    %14 = sbr.rel (0) target = $region9
  $region8: #{deberta_encoder.20} parent=0 // pred_region
    _
  $region9: #{deberta_encoder.20} parent=0 // pred_fallthru
    _
  // Predicated region
  $region10: #{deberta_encoder.20} parent=0 // pred_check
    _
  $region11: #{deberta_encoder.20} parent=0 // pred_check_branch
    %16 = sbr.rel (0) target = $region13
  $region12: #{deberta_encoder.20} parent=0 // pred_region
    _
  $region13: #{deberta_encoder.20} parent=0 // pred_fallthru
    _
  // Predicated region
  $region14: #{deberta_encoder.20} parent=0 // pred_check
    _
  $region15: #{deberta_encoder.20} parent=0 // pred_check_branch
    %18 = sbr.rel (0) target = $region17
  $region16: #{deberta_encoder.20} parent=0 // pred_region
    _
  $region17: #{deberta_encoder.20} parent=0 // pred_fallthru
    _
  // Predicated region
  $region18: #{deberta_encoder.20} parent=0 // pred_check
    _
  $region19: #{deberta_encoder.20} parent=0 // pred_check_branch
    %20 = sbr.rel (0) target = $region21
  $region20: #{deberta_encoder.20} parent=0 // pred_region
    _
  $region21: #{deberta_encoder.20} parent=0 // pred_fallthru
    _
  // Predicated region
  $region22: #{deberta_encoder.20} parent=0 // pred_check
    _
  $region23: #{deberta_encoder.20} parent=0 // pred_check_branch
    %22 = sbr.rel (0) target = $region25
  $region24: #{deberta_encoder.20} parent=0 // pred_region
    _
  $region25: #{deberta_encoder.20} parent=0 // pred_fallthru
    _
  %p24 = scmp.eq.s32.totalorder 0, 0
  // Predicated region
  $region26: #{deberta_encoder.20} parent=0 // pred_check
    %p25 = pneg %p24
  $region27: #{deberta_encoder.20} parent=0 // pred_check_branch
    %27 = sbr.rel (%p25) target = $region29
  $region28: #{deberta_encoder.20} parent=0 // pred_region
    %vm28 = vcmask 261120
    %29 = vst.msk [vmem:[#allocation2] sm:$0xff] %vm28, 0.0
    %30 = vst.msk [vmem:[#allocation2 + $0x8] sm:$0xff] %vm28, 0.0
  $region29: #{deberta_encoder.20} parent=0 // pred_fallthru
    _
  %v31 = vld [vmem:[#allocation2] sm:$0xff]
  %v32 = vld [vmem:[#allocation2 + $0x8] sm:$0xff]
  %v33 = vld [vmem:[%s0] sm:$0xf]
  %v34 = vld [vmem:[%s0 + $0x4] sm:$0xf]
  %v35 = vld [vmem:[%s1] sm:$0xf]
  %v36 = vld [vmem:[%s1 + $0x4] sm:$0xf]
  %v37 = vld [vmem:[%s1 + $0x8] sm:$0xf]
  %v38 = vld [vmem:[%s1 + $0xc] sm:$0xf]
  %v39 = vld [vmem:[%s1 + $0x10] sm:$0xf]
  %v40 = vld [vmem:[%s1 + $0x14] sm:$0xf]
  %v41 = vld [vmem:[%s1 + $0x18] sm:$0xf]
  %v42 = vld [vmem:[%s1 + $0x1c] sm:$0xf]
  %v45 = vunpack.c.l.b16 %v33
  %v46 = vunpack.c.l.b16 %v34
  %v47 = vpack.c.b16 %v46, %v45
  %v56 = vunpack.c.l.b16 %v35
  %v57 = vunpack.c.l.b16 %v36
  %v58 = vunpack.c.l.b16 %v37
  %v59 = vunpack.c.l.b16 %v38
  %v60 = vunpack.c.l.b16 %v39
  %v61 = vunpack.c.l.b16 %v40
  %v62 = vunpack.c.l.b16 %v41
  %v63 = vunpack.c.l.b16 %v42
  %v64 = vpack.c.b16 %v57, %v56
  %v65 = vpack.c.b16 %v59, %v58
  %v66 = vpack.c.b16 %v61, %v60
  %v67 = vpack.c.b16 %v63, %v62
  %vm72 = vcmask 523264
  %v74 = vsel %vm72, %v47, 0
  %76 = vmatpush.bf16.msra.mxu0 0
  %77 = vmatpush.bf16.msra.mxu0 0
  %78 = vmatpush.bf16.msra.mxu0 0
  %79 = vmatpush.bf16.msra.mxu0 0
  %80 = vmatpush.bf16.msra.mxu0 %v67
  %81 = vmatpush.bf16.msra.mxu0 %v66
  %82 = vmatpush.bf16.msra.mxu0 %v65
  %83 = vmatpush.bf16.msra.mxu0 %v64
  %84 = vmatmul.bf16.gmra.mxu0 %v74
  %v85 = vpop.f32.mrf.mxu0
  %v86 = vadd.f32 0.0, %v85
  %v87 = vpop.f32.mrf.mxu0
  %v88 = vadd.f32 0.0, %v87
  %89 = vdwg.mxu0
  %v90 = vadd.f32 %v31, %v86
  %v91 = vadd.f32 %v32, %v88
  %vm92 = vcmask 261120
  %93 = vst.msk [vmem:[#allocation2] sm:$0xff] %vm92, %v90
  %94 = vst.msk [vmem:[#allocation2 + $0x8] sm:$0xff] %vm92, %v91
  // Predicated region
  $region30: #{deberta_encoder.20} parent=0 // pred_check
    %p95 = pneg %p24
  $region31: #{deberta_encoder.20} parent=0 // pred_check_branch
    %97 = sbr.rel (%p95) target = $region33
  $region32: #{deberta_encoder.20} parent=0 // pred_region
    %v98 = vld [vmem:[#allocation2] sm:$0xff]
    %v99 = vld [vmem:[#allocation2 + $0x8] sm:$0xff]
    %v100 = vld [vmem:[%s2] sm:$0x1]
    %v102 = vperm.slane %v100, 0
    %v104 = vadd.f32 %v98, %v102
    %v105 = vadd.f32 %v99, %v102
    %v106 = vld [vmem:[%s3] sm:$0xf]
    %v107 = vld [vmem:[%s3 + $0x4] sm:$0xf]
    %v108 = vunpack.c.l.bf16 %v106
    %v109 = vunpack.c.l.bf16 %v107
    %v110 = vadd.f32 %v104, %v108
    %v111 = vadd.f32 %v105, %v109
    %v112 = vsel %vm92, %v110, 0.0
    %113 = vadd.xlane.f32.xlu0 %v112
    %v114 = vpop.xlane.xlu0 %113
    %v115 = vsel %vm92, %v111, 0.0
    %116 = vadd.xlane.f32.xlu0 %v115
    %v117 = vpop.xlane.xlu0 %116
    %v118 = vrcp.pop 32.0
    %v119 = vmul.f32 32.0, %v118
    %v120 = vsub.f32 1.0, %v119
    %v121 = vmul.f32 %v118, %v120
    %v122 = vadd.f32 %v118, %v121
    %vm123 = vweird.f32 %v118
    %v124 = vsel %vm123, %v118, %v122
    %v125 = vmul.f32 %v114, %v124
    %v126 = vmul.f32 %v117, %v124
    %v127 = vsub.f32 %v110, %v125
    %v128 = vsub.f32 %v111, %v126
    %v129 = vmul.f32 %v127, %v127
    %v130 = vmul.f32 %v128, %v128
    %v131 = vsel %vm92, %v129, 0.0
    %132 = vadd.xlane.f32.xlu0 %v131
    %v133 = vpop.xlane.xlu0 %132
    %v134 = vsel %vm92, %v130, 0.0
    %135 = vadd.xlane.f32.xlu0 %v134
    %v136 = vpop.xlane.xlu0 %135
    %v137 = vmul.f32 %v133, %v124
    %v138 = vmul.f32 %v136, %v124
    %v139 = vadd.f32 %v137, 1e-07
    %v140 = vadd.f32 %v138, 1e-07
    %v141 = vrsqrt.pop %v139
    %v142 = vmul.f32 %v141, %v139
    %v143 = vmul.f32 %v142, %v141
    %v144 = vmul.f32 0.5, %v143
    %v145 = vsub.f32 1.5, %v144
    %v146 = vmul.f32 %v141, %v145
    %vm147 = vweird.f32 %v139
    %vm148 = vweird.f32 %v141
    %vm149 = vmor %vm147, %vm148
    %v150 = vsel %vm149, %v141, %v146
    %v151 = vrsqrt.pop %v140
    %v152 = vmul.f32 %v151, %v140
    %v153 = vmul.f32 %v152, %v151
    %v154 = vmul.f32 0.5, %v153
    %v155 = vsub.f32 1.5, %v154
    %v156 = vmul.f32 %v151, %v155
    %vm157 = vweird.f32 %v140
    %vm158 = vweird.f32 %v151
    %vm159 = vmor %vm157, %vm158
    %v160 = vsel %vm159, %v151, %v156
    %v161 = vmul.f32 %v127, %v150
    %v162 = vmul.f32 %v128, %v160
    %v163 = vld [vmem:[%s4] sm:$0x1]
    %v165 = vperm.slane %v163, 0
    %v167 = vmul.f32 %v165, %v161
    %v168 = vmul.f32 %v165, %v162
    %v169 = vld [vmem:[%s5] sm:$0x1]
    %v171 = vperm.slane %v169, 0
    %v173 = vadd.f32 %v167, %v171
    %v174 = vadd.f32 %v168, %v171
    %175 = vst.msk [vmem:[%s6] sm:$0xff] %vm92, %v173
    %176 = vst.msk [vmem:[%s6 + $0x8] sm:$0xff] %vm92, %v174
  $region33: #{deberta_encoder.20} parent=0 // pred_fallthru
    _
  // Predicated region
  $region34: #{deberta_encoder.20} parent=0 // pred_check
    _
  $region35: #{deberta_encoder.20} parent=0 // pred_check_branch
    %178 = sbr.rel (0) target = $region37
  $region36: #{deberta_encoder.20} parent=0 // pred_region
    _
  $region37: #{deberta_encoder.20} parent=0 // pred_fallthru
    _
  // Predicated region
  $region38: #{deberta_encoder.20} parent=0 // pred_check
    _
  $region39: #{deberta_encoder.20} parent=0 // pred_check_branch
    %180 = sbr.rel (0) target = $region41
  $region40: #{deberta_encoder.20} parent=0 // pred_region
    _
  $region41: #{deberta_encoder.20} parent=0 // pred_fallthru
    _

// kernel: deberta_encoder.17
$region0: #{deberta_encoder.17}
  #allocation0 [shape = 'u32[]', space=smem, size = 0x4, offset = 0x4, fixed_abs, tag = 'smem constant byte address 0x4 - core index']
  #allocation1 [shape = 'u32[72,128]{1,0:T(1,128)}', space=vmem, size = 0x9000, scoped, tag = 'internal scratch']
  %s0 = inlined_call_operand.vmem [shape: bf16[3,2,4,8,8], index: 0, kind: input, shape index: {}]
  %s1 = inlined_call_operand.vmem [shape: bf16[4,16,8], index: 1, kind: input, shape index: {}]
  %s2 = inlined_call_operand.vmem [shape: bf16[4,16,8], index: 2, kind: input, shape index: {}]
  %s3 = inlined_call_operand.vmem [shape: f32[4,1,8], index: 3, kind: input, shape index: {}]
  %s4 = inlined_call_operand.vmem [shape: bf16[4,1,8], index: 4, kind: input, shape index: {}]
  %s5 = inlined_call_operand.vmem [shape: f32[2,1,8], index: 5, kind: input, shape index: {}]
  %s6 = inlined_call_operand.vmem [shape: f32[2,8,1], index: 6, kind: input, shape index: {}]
  %s7 = inlined_call_operand.vmem [shape: bf16[2,4,8,8], index: 7, kind: output, shape index: {}]
  %s8 = sld [smem:[#allocation0]]
  $region102: #{deberta_encoder.17} parent=0
    _
  %s10 = ssub.s32 1, %s8
  %s11 = scalar_select 0, %s10, %s8
  $region1: #{deberta_encoder.17} parent=0
    #allocation2 [shape = 'u8[12288]{0}', space=vmem, size = 0x3000, scoped, tag = 'input window, operand 0']
    loop: start=0, step=1, limit=10
    $region2: #{deberta_encoder.17} parent=1 // loop_pre_header
      _
    $region3: #{deberta_encoder.17} parent=1 // loop_header
      %s13 = sphi 0, %s17
      %p14 = scmp.ge.s32.totalorder %s13, 10
      %s20 = sphi 0, %s32
      %s21 = sphi 0, %s28
      %s22 = sphi 0, %s20
      %s23 = sphi 0, %s21
      %s24 = sphi 0, %s22
      %s25 = sphi 0, %s23
      %s37 = sphi 0, %s39
      %s40 = sphi 0, %s37
      %s41 = sphi 0, %s40
      %s57 = sphi 0, %s41
      %s63 = sphi 0, %s65
      %s66 = sphi 0, %s63
      %s67 = sphi 0, %s66
      %s83 = sphi 0, %s67
      %s89 = sphi 0, %s91
      %s92 = sphi 0, %s89
      %s93 = sphi 0, %s92
      %s109 = sphi 0, %s93
      %s115 = sphi 0, %s117
      %s118 = sphi 0, %s115
      %s119 = sphi 0, %s118
      %s135 = sphi 0, %s119
      %s141 = sphi 0, %s143
      %s144 = sphi 0, %s141
      %s145 = sphi 0, %s144
      %s161 = sphi 0, %s145
      %s167 = sphi 0, %s169
      %s170 = sphi 0, %s167
      %s171 = sphi 0, %s170
      %s187 = sphi 0, %s171
      %s193 = sphi 0, %s195
      %s196 = sphi 0, %s193
      %s197 = sphi 0, %s196
      %s213 = sphi 0, %s197
      %s221 = sphi 0, %s223
      %s224 = sphi 0, %s221
      %s225 = sphi 0, %s224
      %s241 = sphi 0, %s225
    $region4: #{deberta_encoder.17} parent=1 // loop_header_branch
      %16 = sbr.rel (%p14) target = $region8
    $region5: #{deberta_encoder.17} parent=1 // loop_body
      %s18 = ssub.s32 %s13, 1
      %s19 = ssub.s32 %s13, 2
      %s26 = sadd.s32 1, %s21
      %p27 = scmp.ge.s32.totalorder %s26, 4
      %s28 = scalar_select %p27, 0, %s26
      %s29 = sadd.s32 1, %s20
      %s30 = scalar_select %p27, %s29, %s20
      %p31 = scmp.ge.s32.totalorder %s30, 2
      %s32 = scalar_select %p31, 0, %s30
      %s33 = ssub.s32 %s20, %s32
      %s34 = ssub.s32 %s21, %s28
      %s35 = sor.u32 %s33, %s34
      %p36 = scmp.eq.s32.totalorder %s35, 0
      %s38 = sadd.s32 %s37, 1
      %s39 = scalar_select %p36, %s37, %s38
      %p42 = pneg %p36
      %p43 = scmp.eq.s32.totalorder %s13, 7
      %p44 = por %p42, %p43
      %p45 = scmp.ne.s32.totalorder %s37, %s40
      %p46 = scmp.eq.s32.totalorder %s13, 0
      %p47 = por %p45, %p46
      %p48 = scmp.ne.s32.totalorder %s37, %s40
      %p49 = scmp.eq.s32.totalorder %s18, 7
      %p50 = por %p48, %p49
      %p51 = scmp.ne.s32.totalorder %s40, %s41
      %p52 = scmp.eq.s32.totalorder %s18, 0
      %p53 = por %p51, %p52
      %p54 = scmp.ne.s32.totalorder %s40, %s41
      %p55 = scmp.eq.s32.totalorder %s19, 7
      %p56 = por %p54, %p55
      %p58 = scmp.ne.s32.totalorder %s41, %s57
      %p59 = scmp.eq.s32.totalorder %s19, 0
      %p60 = por %p58, %p59
      %s61 = ssub.s32 %s21, %s28
      %p62 = scmp.eq.s32.totalorder %s61, 0
      %s64 = sadd.s32 %s63, 1
      %s65 = scalar_select %p62, %s63, %s64
      %p68 = pneg %p62
      %p69 = scmp.eq.s32.totalorder %s13, 7
      %p70 = por %p68, %p69
      %p71 = scmp.ne.s32.totalorder %s63, %s66
      %p72 = scmp.eq.s32.totalorder %s13, 0
      %p73 = por %p71, %p72
      %p74 = scmp.ne.s32.totalorder %s63, %s66
      %p75 = scmp.eq.s32.totalorder %s18, 7
      %p76 = por %p74, %p75
      %p77 = scmp.ne.s32.totalorder %s66, %s67
      %p78 = scmp.eq.s32.totalorder %s18, 0
      %p79 = por %p77, %p78
      %p80 = scmp.ne.s32.totalorder %s66, %s67
      %p81 = scmp.eq.s32.totalorder %s19, 7
      %p82 = por %p80, %p81
      %p84 = scmp.ne.s32.totalorder %s67, %s83
      %p85 = scmp.eq.s32.totalorder %s19, 0
      %p86 = por %p84, %p85
      %s87 = ssub.s32 %s21, %s28
      %p88 = scmp.eq.s32.totalorder %s87, 0
      %s90 = sadd.s32 %s89, 1
      %s91 = scalar_select %p88, %s89, %s90
      %p94 = pneg %p88
      %p95 = scmp.eq.s32.totalorder %s13, 7
      %p96 = por %p94, %p95
      %p97 = scmp.ne.s32.totalorder %s89, %s92
      %p98 = scmp.eq.s32.totalorder %s13, 0
      %p99 = por %p97, %p98
      %p100 = scmp.ne.s32.totalorder %s89, %s92
      %p101 = scmp.eq.s32.totalorder %s18, 7
      %p102 = por %p100, %p101
      %p103 = scmp.ne.s32.totalorder %s92, %s93
      %p104 = scmp.eq.s32.totalorder %s18, 0
      %p105 = por %p103, %p104
      %p106 = scmp.ne.s32.totalorder %s92, %s93
      %p107 = scmp.eq.s32.totalorder %s19, 7
      %p108 = por %p106, %p107
      %p110 = scmp.ne.s32.totalorder %s93, %s109
      %p111 = scmp.eq.s32.totalorder %s19, 0
      %p112 = por %p110, %p111
      %s113 = ssub.s32 %s21, %s28
      %p114 = scmp.eq.s32.totalorder %s113, 0
      %s116 = sadd.s32 %s115, 1
      %s117 = scalar_select %p114, %s115, %s116
      %p120 = pneg %p114
      %p121 = scmp.eq.s32.totalorder %s13, 7
      %p122 = por %p120, %p121
      %p123 = scmp.ne.s32.totalorder %s115, %s118
      %p124 = scmp.eq.s32.totalorder %s13, 0
      %p125 = por %p123, %p124
      %p126 = scmp.ne.s32.totalorder %s115, %s118
      %p127 = scmp.eq.s32.totalorder %s18, 7
      %p128 = por %p126, %p127
      %p129 = scmp.ne.s32.totalorder %s118, %s119
      %p130 = scmp.eq.s32.totalorder %s18, 0
      %p131 = por %p129, %p130
      %p132 = scmp.ne.s32.totalorder %s118, %s119
      %p133 = scmp.eq.s32.totalorder %s19, 7
      %p134 = por %p132, %p133
      %p136 = scmp.ne.s32.totalorder %s119, %s135
      %p137 = scmp.eq.s32.totalorder %s19, 0
      %p138 = por %p136, %p137
      %s139 = ssub.s32 %s21, %s28
      %p140 = scmp.eq.s32.totalorder %s139, 0
      %s142 = sadd.s32 %s141, 1
      %s143 = scalar_select %p140, %s141, %s142
      %p146 = pneg %p140
      %p147 = scmp.eq.s32.totalorder %s13, 7
      %p148 = por %p146, %p147
      %p149 = scmp.ne.s32.totalorder %s141, %s144
      %p150 = scmp.eq.s32.totalorder %s13, 0
      %p151 = por %p149, %p150
      %p152 = scmp.ne.s32.totalorder %s141, %s144
      %p153 = scmp.eq.s32.totalorder %s18, 7
      %p154 = por %p152, %p153
      %p155 = scmp.ne.s32.totalorder %s144, %s145
      %p156 = scmp.eq.s32.totalorder %s18, 0
      %p157 = por %p155, %p156
      %p158 = scmp.ne.s32.totalorder %s144, %s145
      %p159 = scmp.eq.s32.totalorder %s19, 7
      %p160 = por %p158, %p159
      %p162 = scmp.ne.s32.totalorder %s145, %s161
      %p163 = scmp.eq.s32.totalorder %s19, 0
      %p164 = por %p162, %p163
      %s165 = ssub.s32 %s20, %s32
      %p166 = scmp.eq.s32.totalorder %s165, 0
      %s168 = sadd.s32 %s167, 1
      %s169 = scalar_select %p166, %s167, %s168
      %p172 = pneg %p166
      %p173 = scmp.eq.s32.totalorder %s13, 7
      %p174 = por %p172, %p173
      %p175 = scmp.ne.s32.totalorder %s167, %s170
      %p176 = scmp.eq.s32.totalorder %s13, 0
      %p177 = por %p175, %p176
      %p178 = scmp.ne.s32.totalorder %s167, %s170
      %p179 = scmp.eq.s32.totalorder %s18, 7
      %p180 = por %p178, %p179
      %p181 = scmp.ne.s32.totalorder %s170, %s171
      %p182 = scmp.eq.s32.totalorder %s18, 0
      %p183 = por %p181, %p182
      %p184 = scmp.ne.s32.totalorder %s170, %s171
      %p185 = scmp.eq.s32.totalorder %s19, 7
      %p186 = por %p184, %p185
      %p188 = scmp.ne.s32.totalorder %s171, %s187
      %p189 = scmp.eq.s32.totalorder %s19, 0
      %p190 = por %p188, %p189
      %s191 = ssub.s32 %s20, %s32
      %p192 = scmp.eq.s32.totalorder %s191, 0
      %s194 = sadd.s32 %s193, 1
      %s195 = scalar_select %p192, %s193, %s194
      %p198 = pneg %p192
      %p199 = scmp.eq.s32.totalorder %s13, 7
      %p200 = por %p198, %p199
      %p201 = scmp.ne.s32.totalorder %s193, %s196
      %p202 = scmp.eq.s32.totalorder %s13, 0
      %p203 = por %p201, %p202
      %p204 = scmp.ne.s32.totalorder %s193, %s196
      %p205 = scmp.eq.s32.totalorder %s18, 7
      %p206 = por %p204, %p205
      %p207 = scmp.ne.s32.totalorder %s196, %s197
      %p208 = scmp.eq.s32.totalorder %s18, 0
      %p209 = por %p207, %p208
      %p210 = scmp.ne.s32.totalorder %s196, %s197
      %p211 = scmp.eq.s32.totalorder %s19, 7
      %p212 = por %p210, %p211
      %p214 = scmp.ne.s32.totalorder %s197, %s213
      %p215 = scmp.eq.s32.totalorder %s19, 0
      %p216 = por %p214, %p215
      %s217 = ssub.s32 %s20, %s32
      %s218 = ssub.s32 %s21, %s28
      %s219 = sor.u32 %s217, %s218
      %p220 = scmp.eq.s32.totalorder %s219, 0
      %s222 = sadd.s32 %s221, 1
      %s223 = scalar_select %p220, %s221, %s222
      %p226 = pneg %p220
      %p227 = scmp.eq.s32.totalorder %s13, 7
      %p228 = por %p226, %p227
      %p229 = scmp.ne.s32.totalorder %s221, %s224
      %p230 = scmp.eq.s32.totalorder %s13, 0
      %p231 = por %p229, %p230
      %p232 = scmp.ne.s32.totalorder %s221, %s224
      %p233 = scmp.eq.s32.totalorder %s18, 7
      %p234 = por %p232, %p233
      %p235 = scmp.ne.s32.totalorder %s224, %s225
      %p236 = scmp.eq.s32.totalorder %s18, 0
      %p237 = por %p235, %p236
      %p238 = scmp.ne.s32.totalorder %s224, %s225
      %p239 = scmp.eq.s32.totalorder %s19, 7
      %p240 = por %p238, %p239
      %p242 = scmp.ne.s32.totalorder %s225, %s241
      %p243 = scmp.eq.s32.totalorder %s19, 0
      %p244 = por %p242, %p243
      %p245 = scmp.le.s32.totalorder 1, %s13
      %p246 = scmp.lt.s32.totalorder %s13, 9
      %p247 = pnand %p245, %p246
      %p248 = pneg %p247
      // Predicated region
      $region9: #{deberta_encoder.17} parent=5 // pred_check
        _
      $region10: #{deberta_encoder.17} parent=5 // pred_check_branch
        %250 = sbr.rel (%p247) target = $region12
      $region11: #{deberta_encoder.17} parent=5 // pred_region
        %s251 = ssub.s32 %s13, 1
      $region12: #{deberta_encoder.17} parent=5 // pred_fallthru
        _
      %p252 = scmp.lt.s32.totalorder %s13, 8
      // Predicated region
      $region13: #{deberta_encoder.17} parent=5 // pred_check
        %p253 = pneg %p252
      $region14: #{deberta_encoder.17} parent=5 // pred_check_branch
        %255 = sbr.rel (%p253) target = $region16
      $region15: #{deberta_encoder.17} parent=5 // pred_region
        // Predicated region
        $region17: #{deberta_encoder.17} parent=15 // pred_check
          %p256 = pneg %p47
        $region18: #{deberta_encoder.17} parent=15 // pred_check_branch
          %258 = sbr.rel (%p256) target = $region20
        $region19: #{deberta_encoder.17} parent=15 // pred_region
          %s259 = sand.u32 %s37, 1
          %s260 = sand.u32 %s37, 1
          %s261 = smul.addr %s260, 12
          %s262 = scalar_lea.vmem [#allocation2], %s261
          %s263 = smul.addr %s20, 4
          %s264 = sadd.s32 %s21, %s263
          %s265 = smul.addr %s264, 4
          %s266 = scalar_lea.vmem %s0, %s265
          // Predicated region
          $region21: #{deberta_encoder.17} parent=19 // pred_check
            _
          $region22: #{deberta_encoder.17} parent=19 // pred_check_branch
            %268 = sbr.rel (0) target = $region24
          $region23: #{deberta_encoder.17} parent=19 // pred_region
            // Predicated region
            $region25: #{deberta_encoder.17} parent=23 // pred_check
              _
            $region26: #{deberta_encoder.17} parent=23 // pred_check_branch
              %270 = sbr.rel target = $region28
            $region27: #{deberta_encoder.17} parent=23 // pred_region
              // Predicated region
              $region40: #{deberta_encoder.17} parent=27 // pred_check
                _
              $region41: #{deberta_encoder.17} parent=27 // pred_check_branch
                %290 = sbr.rel (0) target = $region43
              $region42: #{deberta_encoder.17} parent=27 // pred_region
                loop: start=0, step=1, limit=1
                $region44: #{deberta_encoder.17} parent=42 // loop_pre_header
                  _
                $region45: #{deberta_encoder.17} parent=42 // loop_header
                  %s292 = sphi 0, %s296
                  %p293 = scmp.ge.s32.totalorder %s292, 1
                  %s297 = sphi %s266, %s266
                  %s298 = sphi %s262, %s262
                $region46: #{deberta_encoder.17} parent=42 // loop_header_branch
                  %295 = sbr.rel (%p293) target = $region50
                $region47: #{deberta_encoder.17} parent=42 // loop_body
                  _
                $region48: #{deberta_encoder.17} parent=42 // loop_footer
                  %s296 = sadd.s32 1, %s292
                $region49: #{deberta_encoder.17} parent=42 // loop_footer_branch
                  %291 = sbr.rel target = $region45
                $region50: #{deberta_encoder.17} parent=42 // loop_exit
                  _
                %s300 = ssub.s32 16, 1
                loop: start=0, step=1, limit=1
                $region51: #{deberta_encoder.17} parent=42 // loop_pre_header
                  _
                $region52: #{deberta_encoder.17} parent=42 // loop_header
                  %s302 = sphi 0, %s306
                  %p303 = scmp.ge.s32.totalorder %s302, 1
                  %s307 = sphi %s266, %s266
                  %s308 = sphi %s262, %s262
                $region53: #{deberta_encoder.17} parent=42 // loop_header_branch
                  %305 = sbr.rel (%p303) target = $region57
                $region54: #{deberta_encoder.17} parent=42 // loop_body
                  %v309 = vld [vmem:[%s307] sm:%s300]
                  %310 = vst [vmem:[%s308] sm:%s300] %v309
                  %v311 = vld [vmem:[%s307 + $0x20] sm:%s300]
                  %312 = vst [vmem:[%s308 + $0x4] sm:%s300] %v311
                  %v313 = vld [vmem:[%s307 + $0x40] sm:%s300]
                  %314 = vst [vmem:[%s308 + $0x8] sm:%s300] %v313
                $region55: #{deberta_encoder.17} parent=42 // loop_footer
                  %s306 = sadd.s32 1, %s302
                $region56: #{deberta_encoder.17} parent=42 // loop_footer_branch
                  %301 = sbr.rel target = $region52
                $region57: #{deberta_encoder.17} parent=42 // loop_exit
                  _
              $region43: #{deberta_encoder.17} parent=27 // pred_fallthru
                _
            $region28: #{deberta_encoder.17} parent=23 // pred_fallthru
              _
            // Predicated region
            $region29: #{deberta_encoder.17} parent=23 // pred_check
              _
            $region30: #{deberta_encoder.17} parent=23 // pred_check_branch
              %272 = sbr.rel (0) target = $region32
            $region31: #{deberta_encoder.17} parent=23 // pred_region
              %s274 = ssub.s32 16, 1
              loop: start=0, step=1, limit=1
              $region33: #{deberta_encoder.17} parent=31 // loop_pre_header
                _
              $region34: #{deberta_encoder.17} parent=31 // loop_header
                %s276 = sphi 0, %s280
                %p277 = scmp.ge.s32.totalorder %s276, 1
                %s281 = sphi %s266, %s266
                %s282 = sphi %s262, %s262
              $region35: #{deberta_encoder.17} parent=31 // loop_header_branch
                %279 = sbr.rel (%p277) target = $region39
              $region36: #{deberta_encoder.17} parent=31 // loop_body
                %v283 = vld [vmem:[%s281] sm:%s274]
                %284 = vst [vmem:[%s282] sm:%s274] %v283
                %v285 = vld [vmem:[%s281 + $0x20] sm:%s274]
                %286 = vst [vmem:[%s282 + $0x4] sm:%s274] %v285
                %v287 = vld [vmem:[%s281 + $0x40] sm:%s274]
                %288 = vst [vmem:[%s282 + $0x8] sm:%s274] %v287
              $region37: #{deberta_encoder.17} parent=31 // loop_footer
                %s280 = sadd.s32 1, %s276
              $region38: #{deberta_encoder.17} parent=31 // loop_footer_branch
                %275 = sbr.rel target = $region34
              $region39: #{deberta_encoder.17} parent=31 // loop_exit
                _
            $region32: #{deberta_encoder.17} parent=23 // pred_fallthru
              _
          $region24: #{deberta_encoder.17} parent=19 // pred_fallthru
            _
          %315 = vnop
        $region20: #{deberta_encoder.17} parent=15 // pred_fallthru
          _
        // Predicated region
        $region58: #{deberta_encoder.17} parent=15 // pred_check
          %p316 = pneg %p73
        $region59: #{deberta_encoder.17} parent=15 // pred_check_branch
          %318 = sbr.rel (%p316) target = $region61
        $region60: #{deberta_encoder.17} parent=15 // pred_region
          %p319 = scmp.lt.s32.totalorder %s21, 3
          %s320 = scalar_select %p319, %s21, 3
          %s321 = smul.addr %s320, 2
          %s322 = smul.addr %s321, 4
          %s323 = scalar_lea.vmem %s1, %s322
        $region61: #{deberta_encoder.17} parent=15 // pred_fallthru
          _
        // Predicated region
        $region62: #{deberta_encoder.17} parent=15 // pred_check
          %p324 = pneg %p99
        $region63: #{deberta_encoder.17} parent=15 // pred_check_branch
          %326 = sbr.rel (%p324) target = $region65
        $region64: #{deberta_encoder.17} parent=15 // pred_region
          %p327 = scmp.lt.s32.totalorder %s21, 3
          %s328 = scalar_select %p327, %s21, 3
          %s329 = smul.addr %s328, 2
          %s330 = smul.addr %s329, 4
          %s331 = scalar_lea.vmem %s2, %s330
        $region65: #{deberta_encoder.17} parent=15 // pred_fallthru
          _
        // Predicated region
        $region66: #{deberta_encoder.17} parent=15 // pred_check
          %p332 = pneg %p125
        $region67: #{deberta_encoder.17} parent=15 // pred_check_branch
          %334 = sbr.rel (%p332) target = $region69
        $region68: #{deberta_encoder.17} parent=15 // pred_region
          %p335 = scmp.lt.s32.totalorder %s21, 3
          %s336 = scalar_select %p335, %s21, 3
          %s337 = scalar_lea.vmem %s3, %s336
        $region69: #{deberta_encoder.17} parent=15 // pred_fallthru
          _
        // Predicated region
        $region70: #{deberta_encoder.17} parent=15 // pred_check
          %p338 = pneg %p151
        $region71: #{deberta_encoder.17} parent=15 // pred_check_branch
          %340 = sbr.rel (%p338) target = $region73
        $region72: #{deberta_encoder.17} parent=15 // pred_region
          %p341 = scmp.lt.s32.totalorder %s21, 3
          %s342 = scalar_select %p341, %s21, 3
          %s343 = scalar_lea.vmem %s4, %s342
        $region73: #{deberta_encoder.17} parent=15 // pred_fallthru
          _
        // Predicated region
        $region74: #{deberta_encoder.17} parent=15 // pred_check
          %p344 = pneg %p177
        $region75: #{deberta_encoder.17} parent=15 // pred_check_branch
          %346 = sbr.rel (%p344) target = $region77
        $region76: #{deberta_encoder.17} parent=15 // pred_region
          %p347 = scmp.lt.s32.totalorder %s20, 1
          %s348 = scalar_select %p347, %s20, 1
          %s349 = scalar_lea.vmem %s5, %s348
        $region77: #{deberta_encoder.17} parent=15 // pred_fallthru
          _
        // Predicated region
        $region78: #{deberta_encoder.17} parent=15 // pred_check
          %p350 = pneg %p203
        $region79: #{deberta_encoder.17} parent=15 // pred_check_branch
          %352 = sbr.rel (%p350) target = $region81
        $region80: #{deberta_encoder.17} parent=15 // pred_region
          %p353 = scmp.lt.s32.totalorder %s20, 1
          %s354 = scalar_select %p353, %s20, 1
          %s355 = smul.addr %s354, 8
          %s356 = scalar_lea.vmem %s6, %s355
        $region81: #{deberta_encoder.17} parent=15 // pred_fallthru
          _
      $region16: #{deberta_encoder.17} parent=5 // pred_fallthru
        _
      %p357 = scmp.le.s32.totalorder 1, %s13
      %p358 = scmp.lt.s32.totalorder %s13, 9
      %p359 = pnand %p357, %p358
      %p360 = pneg %p359
      // Predicated region
      $region82: #{deberta_encoder.17} parent=5 // pred_check
        _
      $region83: #{deberta_encoder.17} parent=5 // pred_check_branch
        %362 = sbr.rel (%p359) target = $region85
      $region84: #{deberta_encoder.17} parent=5 // pred_region
        %s363 = ssub.s32 %s13, 1
        %s364 = sand.u32 %s40, 1
        %s365 = sand.u32 %s40, 1
        %s366 = smul.addr %s365, 12
        %s367 = scalar_lea.vmem [#allocation2], %s366
        // Predicated region
        $region86: #{deberta_encoder.17} parent=84 // pred_check
          %p368 = pneg %p53
        $region87: #{deberta_encoder.17} parent=84 // pred_check_branch
          %370 = sbr.rel (%p368) target = $region89
        $region88: #{deberta_encoder.17} parent=84 // pred_region
          _
        $region89: #{deberta_encoder.17} parent=84 // pred_fallthru
          _
        %s371 = sand.u32 %s40, 1
        %s372 = sand.u32 %s40, 1
        %s373 = smul.addr %s372, 12
        %s374 = scalar_lea.vmem [#allocation2], %s373
        %p375 = pneg %p53
        %p376 = pneg %p50
        %p377 = scmp.lt.s32.totalorder %s23, 3
        %s378 = scalar_select %p377, %s23, 3
        %s379 = smul.addr %s378, 2
        %s380 = smul.addr %s379, 4
        %s381 = scalar_lea.vmem %s1, %s380
        %p382 = pneg %p79
        %p383 = pneg %p76
        %p384 = scmp.lt.s32.totalorder %s23, 3
        %s385 = scalar_select %p384, %s23, 3
        %s386 = smul.addr %s385, 2
        %s387 = smul.addr %s386, 4
        %s388 = scalar_lea.vmem %s2, %s387
        %p389 = pneg %p105
        %p390 = pneg %p102
        %p391 = scmp.lt.s32.totalorder %s23, 3
        %s392 = scalar_select %p391, %s23, 3
        %s393 = scalar_lea.vmem %s3, %s392
        %p394 = pneg %p131
        %p395 = pneg %p128
        %p396 = scmp.lt.s32.totalorder %s23, 3
        %s397 = scalar_select %p396, %s23, 3
        %s398 = scalar_lea.vmem %s4, %s397
        %p399 = pneg %p157
        %p400 = pneg %p154
        %p401 = scmp.lt.s32.totalorder %s22, 1
        %s402 = scalar_select %p401, %s22, 1
        %s403 = scalar_lea.vmem %s5, %s402
        %p404 = pneg %p183
        %p405 = pneg %p180
        %p406 = scmp.lt.s32.totalorder %s22, 1
        %s407 = scalar_select %p406, %s22, 1
        %s408 = smul.addr %s407, 8
        %s409 = scalar_lea.vmem %s6, %s408
        %p410 = pneg %p209
        %p411 = pneg %p206
        %p412 = pneg %p237
        %p413 = pneg %p234
        %p414 = scmp.lt.s32.totalorder %s22, 1
        %s415 = scalar_select %p414, %s22, 1
        %p416 = scmp.lt.s32.totalorder %s23, 3
        %s417 = scalar_select %p416, %s23, 3
        %s418 = smul.addr %s415, 4
        %s419 = sadd.s32 %s417, %s418
        %s420 = smul.addr %s419, 4
        %s421 = scalar_lea.vmem %s7, %s420
        %p422 = scmp.lt.s32.totalorder %s23, 3
        %s423 = scalar_select %p422, %s23, 3
        %s424 = smul.addr %s423, 2
        %s425 = smul.addr %s424, 4
        %s426 = scalar_lea.vmem %s1, %s425
        %p427 = scmp.lt.s32.totalorder %s23, 3
        %s428 = scalar_select %p427, %s23, 3
        %s429 = smul.addr %s428, 2
        %s430 = smul.addr %s429, 4
        %s431 = scalar_lea.vmem %s2, %s430
        %p432 = scmp.lt.s32.totalorder %s23, 3
        %s433 = scalar_select %p432, %s23, 3
        %s434 = scalar_lea.vmem %s3, %s433
        %p435 = scmp.lt.s32.totalorder %s23, 3
        %s436 = scalar_select %p435, %s23, 3
        %s437 = scalar_lea.vmem %s4, %s436
        %p438 = scmp.lt.s32.totalorder %s22, 1
        %s439 = scalar_select %p438, %s22, 1
        %s440 = scalar_lea.vmem %s5, %s439
        %p441 = scmp.lt.s32.totalorder %s22, 1
        %s442 = scalar_select %p441, %s22, 1
        %s443 = smul.addr %s442, 8
        %s444 = scalar_lea.vmem %s6, %s443
        %p445 = scmp.lt.s32.totalorder %s22, 1
        %s446 = scalar_select %p445, %s22, 1
        %p447 = scmp.lt.s32.totalorder %s23, 3
        %s448 = scalar_select %p447, %s23, 3
        %s449 = smul.addr %s446, 4
        %s450 = sadd.s32 %s448, %s449
        %s451 = smul.addr %s450, 4
        %s452 = scalar_lea.vmem %s7, %s451
        %v454 = vld [vmem:[%s367] sm:$0xf]
        %v455 = vunpack.c.l.bf16 %v454
        %v456 = vld [vmem:[%s434] sm:$0x1]
        %v458 = vperm.slane %v456, 0
        %v460 = vadd.f32 %v455, %v458
        %v461 = vmul.f32 %v460, 0.20412415
        %v462 = vpack.c.bf16 %v461, %v461
        %s463 = scalar_lea.vmem %s367, 4 [#allocation2]
        %v464 = vld [vmem:[%s463] sm:$0xf]
        %s465 = scalar_lea.vmem %s367, 8 [#allocation2]
        %v466 = vld [vmem:[%s465] sm:$0xf]
        %v467 = vld [vmem:[%s437] sm:$0x1]
        %v469 = vpack.i.b16 %v467, %v467
        %v471 = vperm.slane %v469, 0
        %v472 = vunpack.c.l.bf16 %v466
        %v473 = vunpack.c.l.bf16 %v471
        %v474 = vadd.f32 %v472, %v473
        %v475 = vpack.c.bf16 %v474, %v474
        %v476 = vld [vmem:[%s444] sm:$0xff]
        %v477 = vld [vmem:[%s440] sm:$0x1]
        %479 = vset.pattern.permute.xlu0 0
        %480 = vperm.xlu0 %479, %v476
        %v481 = vpop.permute.xlu0 %480
        %v484 = vperm.slane %v477, 0
        %v486 = vmul.f32 %v481, %v484
        %vm487 = vcmp.gt.f32.partialorder %v486, 0.0
        %v488 = vld [vmem:[%s426] sm:$0xf]
        %v489 = vld [vmem:[%s426 + $0x4] sm:$0xf]
        %v492 = vunpack.c.l.b16 %v488
        %v493 = vunpack.c.l.b16 %v489
        %v494 = vpack.c.b16 %v493, %v492
        %vm495 = vcmask 64512
        %v497 = vsel %vm495, %v462, 0
        %v500 = vsel %vm495, %v494, 0
        %502 = vmatpush.bf16.xpose.msra.mxu0 0
        %503 = vmatpush.bf16.xpose.msra.mxu0 0
        %504 = vmatpush.bf16.xpose.msra.mxu0 0
        %505 = vmatpush.bf16.xpose.msra.mxu0 0
        %506 = vmatpush.bf16.xpose.msra.mxu0 0
        %507 = vmatpush.bf16.xpose.msra.mxu0 0
        %508 = vmatpush.bf16.xpose.msra.mxu0 0
        %509 = vmatpush.bf16.xpose.msra.mxu0 %v500
        %510 = vmatmul.bf16.gmra.mxu0 %v497
        %v511 = vpop.f32.mrf.mxu0
        %v512 = vadd.f32 0.0, %v511
        %v513 = vpop.f32.mrf.mxu0
        %514 = vdwg.mxu0
        %v515 = vlaneseq
        %v516 = vshrl.u32 %v515, 7
        %v517 = vlaneseq
        %v518 = vand.u32 %v517, 127
        %v519 = vsub.s32 %v516, %v518
        %v520 = vadd.s32 %v519, 8
        %vm521 = vcmp.gt.s32.totalorder %v520, 0
        %v522 = vsel %vm521, %v520, 0
        %vm523 = vcmp.lt.s32.totalorder %v522, 15
        %v524 = vsel %vm523, %v522, 15
        %v525 = vld [vmem:[%s431] sm:$0xf]
        %v526 = vld [vmem:[%s431 + $0x4] sm:$0xf]
        %v529 = vunpack.c.l.b16 %v525
        %v530 = vunpack.c.l.b16 %v526
        %v531 = vpack.c.b16 %v530, %v529
        %v533 = vsel %vm495, %v531, 0
        %v536 = vsel %vm495, %v464, 0
        %538 = vmatpush.bf16.xpose.msra.mxu0 0
        %539 = vmatpush.bf16.xpose.msra.mxu0 0
        %540 = vmatpush.bf16.xpose.msra.mxu0 0
        %541 = vmatpush.bf16.xpose.msra.mxu0 0
        %542 = vmatpush.bf16.xpose.msra.mxu0 0
        %543 = vmatpush.bf16.xpose.msra.mxu0 0
        %544 = vmatpush.bf16.xpose.msra.mxu0 0
        %545 = vmatpush.bf16.xpose.msra.mxu0 %v536
        %546 = vmatmul.bf16.gmra.mxu0 %v533
        %v547 = vpop.f32.mrf.mxu0
        %v548 = vadd.f32 0.0, %v547
        %v549 = vpop.f32.mrf.mxu0
        %v550 = vadd.f32 0.0, %v549
        %551 = vdwg.mxu0
        %v552 = vmul.f32 %v548, 0.20412415
        %v553 = vmul.f32 %v550, 0.20412415
        %vm554 = vcmp.eq.s32.totalorder %v524, 0
        %556 = vset.pattern.permute.xlu0 0
        %557 = vperm.xlu0 %556, %v512
        %v558 = vpop.permute.xlu0 %557
        %v560 = vsel %vm554, %v558, 0.0
        %v561 = vadd.f32 %v560, 0.0
        %v562 = vperm.slane %v552, 0
        %v563 = vsel %vm554, %v562, 0.0
        %v564 = vadd.f32 %v563, 0.0
        %vm565 = vcmp.eq.s32.totalorder %v524, 1
        %566 = vset.pattern.permute.xlu0 1
        %567 = vperm.xlu0 %566, %v512
        %v568 = vpop.permute.xlu0 %567
        %v570 = vsel %vm565, %v568, 0.0
        %v571 = vadd.f32 %v561, %v570
        %v572 = vperm.slane %v552, 1
        %v573 = vsel %vm565, %v572, 0.0
        %v574 = vadd.f32 %v564, %v573
        %vm575 = vcmp.eq.s32.totalorder %v524, 2
        %576 = vset.pattern.permute.xlu0 2
        %577 = vperm.xlu0 %576, %v512
        %v578 = vpop.permute.xlu0 %577
        %v580 = vsel %vm575, %v578, 0.0
        %v581 = vadd.f32 %v571, %v580
        %v582 = vperm.slane %v552, 2
        %v583 = vsel %vm575, %v582, 0.0
        %v584 = vadd.f32 %v574, %v583
        %vm585 = vcmp.eq.s32.totalorder %v524, 3
        %586 = vset.pattern.permute.xlu0 3
        %587 = vperm.xlu0 %586, %v512
        %v588 = vpop.permute.xlu0 %587
        %v590 = vsel %vm585, %v588, 0.0
        %v591 = vadd.f32 %v581, %v590
        %v592 = vperm.slane %v552, 3
        %v593 = vsel %vm585, %v592, 0.0
        %v594 = vadd.f32 %v584, %v593
        %vm595 = vcmp.eq.s32.totalorder %v524, 4
        %596 = vset.pattern.permute.xlu0 4
        %597 = vperm.xlu0 %596, %v512
        %v598 = vpop.permute.xlu0 %597
        %v600 = vsel %vm595, %v598, 0.0
        %v601 = vadd.f32 %v591, %v600
        %v602 = vperm.slane %v552, 4
        %v603 = vsel %vm595, %v602, 0.0
        %v604 = vadd.f32 %v594, %v603
        %vm605 = vcmp.eq.s32.totalorder %v524, 5
        %606 = vset.pattern.permute.xlu0 5
        %607 = vperm.xlu0 %606, %v512
        %v608 = vpop.permute.xlu0 %607
        %v610 = vsel %vm605, %v608, 0.0
        %v611 = vadd.f32 %v601, %v610
        %v612 = vperm.slane %v552, 5
        %v613 = vsel %vm605, %v612, 0.0
        %v614 = vadd.f32 %v604, %v613
        %vm615 = vcmp.eq.s32.totalorder %v524, 6
        %616 = vset.pattern.permute.xlu0 6
        %617 = vperm.xlu0 %616, %v512
        %v618 = vpop.permute.xlu0 %617
        %v620 = vsel %vm615, %v618, 0.0
        %v621 = vadd.f32 %v611, %v620
        %v622 = vperm.slane %v552, 6
        %v623 = vsel %vm615, %v622, 0.0
        %v624 = vadd.f32 %v614, %v623
        %vm625 = vcmp.eq.s32.totalorder %v524, 7
        %626 = vset.pattern.permute.xlu0 7
        %627 = vperm.xlu0 %626, %v512
        %v628 = vpop.permute.xlu0 %627
        %v630 = vsel %vm625, %v628, 0.0
        %v631 = vadd.f32 %v621, %v630
        %v632 = vperm.slane %v552, 7
        %v633 = vsel %vm625, %v632, 0.0
        %v634 = vadd.f32 %v624, %v633
        %vm635 = vcmp.eq.s32.totalorder %v524, 8
        %636 = vset.pattern.permute.xlu0 8
        %637 = vperm.xlu0 %636, %v512
        %v638 = vpop.permute.xlu0 %637
        %v640 = vsel %vm635, %v638, 0.0
        %v641 = vadd.f32 %v631, %v640
        %v642 = vperm.slane %v553, 0
        %v643 = vsel %vm635, %v642, 0.0
        %v644 = vadd.f32 %v634, %v643
        %vm645 = vcmp.eq.s32.totalorder %v524, 9
        %646 = vset.pattern.permute.xlu0 9
        %647 = vperm.xlu0 %646, %v512
        %v648 = vpop.permute.xlu0 %647
        %v650 = vsel %vm645, %v648, 0.0
        %v651 = vadd.f32 %v641, %v650
        %v652 = vperm.slane %v553, 1
        %v653 = vsel %vm645, %v652, 0.0
        %v654 = vadd.f32 %v644, %v653
        %vm655 = vcmp.eq.s32.totalorder %v524, 10
        %656 = vset.pattern.permute.xlu0 10
        %657 = vperm.xlu0 %656, %v512
        %v658 = vpop.permute.xlu0 %657
        %v660 = vsel %vm655, %v658, 0.0
        %v661 = vadd.f32 %v651, %v660
        %v662 = vperm.slane %v553, 2
        %v663 = vsel %vm655, %v662, 0.0
        %v664 = vadd.f32 %v654, %v663
        %vm665 = vcmp.eq.s32.totalorder %v524, 11
        %666 = vset.pattern.permute.xlu0 11
        %667 = vperm.xlu0 %666, %v512
        %v668 = vpop.permute.xlu0 %667
        %v670 = vsel %vm665, %v668, 0.0
        %v671 = vadd.f32 %v661, %v670
        %v672 = vperm.slane %v553, 3
        %v673 = vsel %vm665, %v672, 0.0
        %v674 = vadd.f32 %v664, %v673
        %vm675 = vcmp.eq.s32.totalorder %v524, 12
        %676 = vset.pattern.permute.xlu0 12
        %677 = vperm.xlu0 %676, %v512
        %v678 = vpop.permute.xlu0 %677
        %v680 = vsel %vm675, %v678, 0.0
        %v681 = vadd.f32 %v671, %v680
        %v682 = vperm.slane %v553, 4
        %v683 = vsel %vm675, %v682, 0.0
        %v684 = vadd.f32 %v674, %v683
        %vm685 = vcmp.eq.s32.totalorder %v524, 13
        %686 = vset.pattern.permute.xlu0 13
        %687 = vperm.xlu0 %686, %v512
        %v688 = vpop.permute.xlu0 %687
        %v690 = vsel %vm685, %v688, 0.0
        %v691 = vadd.f32 %v681, %v690
        %v692 = vperm.slane %v553, 5
        %v693 = vsel %vm685, %v692, 0.0
        %v694 = vadd.f32 %v684, %v693
        %vm695 = vcmp.eq.s32.totalorder %v524, 14
        %696 = vset.pattern.permute.xlu0 14
        %697 = vperm.xlu0 %696, %v512
        %v698 = vpop.permute.xlu0 %697
        %v700 = vsel %vm695, %v698, 0.0
        %v701 = vadd.f32 %v691, %v700
        %v702 = vperm.slane %v553, 6
        %v703 = vsel %vm695, %v702, 0.0
        %v704 = vadd.f32 %v694, %v703
        %vm705 = vcmp.eq.s32.totalorder %v524, 15
        %706 = vset.pattern.permute.xlu0 15
        %707 = vperm.xlu0 %706, %v512
        %v708 = vpop.permute.xlu0 %707
        %v710 = vsel %vm705, %v708, 0.0
        %v711 = vadd.f32 %v701, %v710
        %v712 = vperm.slane %v553, 7
        %v713 = vsel %vm705, %v712, 0.0
        %v714 = vadd.f32 %v704, %v713
        %715 = vmatpush.bf16.xpose.msra.mxu0 0
        %716 = vmatpush.bf16.xpose.msra.mxu0 0
        %717 = vmatpush.bf16.xpose.msra.mxu0 0
        %718 = vmatpush.bf16.xpose.msra.mxu0 0
        %719 = vmatpush.bf16.xpose.msra.mxu0 0
        %720 = vmatpush.bf16.xpose.msra.mxu0 0
        %721 = vmatpush.bf16.xpose.msra.mxu0 0
        %722 = vmatpush.bf16.xpose.msra.mxu0 %v536
        %723 = vmatmul.bf16.gmra.mxu0 %v497
        %v724 = vpop.f32.mrf.mxu0
        %v725 = vadd.f32 %v711, %v724
        %v726 = vpop.f32.mrf.mxu0
        %727 = vdwg.mxu0
        %v728 = vadd.f32 %v725, %v714
        %v729 = vsel %vm487, %v728, -3.4028235e+38
        %v730 = vsel %vm495, %v729, -inf
        %731 = vmax.xlane.f32.xlu0 %v730
        %v732 = vpop.xlane.xlu0 %731
        %v733 = vsub.f32 %v729, %v732
        %v734 = vmul.f32 %v733, 1.442695
        %v735 = vpow.pop %v734
        %v736 = vsel %vm495, %v735, 0.0
        %737 = vadd.xlane.f32.xlu0 %v736
        %v738 = vpop.xlane.xlu0 %737
        %v739 = vrcp.pop %v738
        %v740 = vmul.f32 %v735, %v739
        %v741 = vpack.c.bf16 %v740, %v740
        %v743 = vsel %vm495, %v741, 0
        %vm745 = vcmask 1043456
        %v747 = vsel %vm745, %v475, 0
        %749 = vmatpush.bf16.msra.mxu0 0
        %750 = vmatpush.bf16.msra.mxu0 0
        %751 = vmatpush.bf16.msra.mxu0 0
        %752 = vmatpush.bf16.msra.mxu0 0
        %753 = vmatpush.bf16.msra.mxu0 0
        %754 = vmatpush.bf16.msra.mxu0 0
        %755 = vmatpush.bf16.msra.mxu0 0
        %756 = vmatpush.bf16.msra.mxu0 %v747
        %757 = vmatmul.bf16.gmra.mxu0 %v743
        %v758 = vpop.f32.mrf.mxu0
        %v759 = vadd.f32 0.0, %v758
        %v760 = vpop.f32.mrf.mxu0
        %761 = vdwg.mxu0
        %v762 = vpack.c.bf16 %v759, %v759
        %vm763 = vcmask 60416
        %764 = vst.msk [vmem:[%s452] sm:$0xf] %vm763, %v762
        %p765 = scmp.lt.s32.totalorder %s22, 1
        %s766 = scalar_select %p765, %s22, 1
        %p767 = scmp.lt.s32.totalorder %s23, 3
        %s768 = scalar_select %p767, %s23, 3
        %s769 = smul.addr %s766, 4
        %s770 = sadd.s32 %s768, %s769
        %s771 = smul.addr %s770, 4
        %s772 = scalar_lea.vmem %s7, %s771
        // Predicated region
        $region90: #{deberta_encoder.17} parent=84 // pred_check
          %p773 = pneg %p234
        $region91: #{deberta_encoder.17} parent=84 // pred_check_branch
          %775 = sbr.rel (%p773) target = $region93
        $region92: #{deberta_encoder.17} parent=84 // pred_region
          _
        $region93: #{deberta_encoder.17} parent=84 // pred_fallthru
          _
      $region85: #{deberta_encoder.17} parent=5 // pred_fallthru
        _
      %p776 = scmp.le.s32.totalorder 2, %s13
      // Predicated region
      $region94: #{deberta_encoder.17} parent=5 // pred_check
        %p777 = pneg %p776
      $region95: #{deberta_encoder.17} parent=5 // pred_check_branch
        %779 = sbr.rel (%p777) target = $region97
      $region96: #{deberta_encoder.17} parent=5 // pred_region
        %s780 = ssub.s32 %s13, 2
        // Predicated region
        $region98: #{deberta_encoder.17} parent=96 // pred_check
          %p781 = pneg %p240
        $region99: #{deberta_encoder.17} parent=96 // pred_check_branch
          %783 = sbr.rel (%p781) target = $region101
        $region100: #{deberta_encoder.17} parent=96 // pred_region
          %p784 = scmp.lt.s32.totalorder %s24, 1
          %s785 = scalar_select %p784, %s24, 1
          %p786 = scmp.lt.s32.totalorder %s25, 3
          %s787 = scalar_select %p786, %s25, 3
          %s788 = smul.addr %s785, 4
          %s789 = sadd.s32 %s787, %s788
          %s790 = smul.addr %s789, 4
          %s791 = scalar_lea.vmem %s7, %s790
        $region101: #{deberta_encoder.17} parent=96 // pred_fallthru
          _
      $region97: #{deberta_encoder.17} parent=5 // pred_fallthru
        _
    $region6: #{deberta_encoder.17} parent=1 // loop_footer
      %s17 = sadd.s32 1, %s13
    $region7: #{deberta_encoder.17} parent=1 // loop_footer_branch
      %12 = sbr.rel target = $region3
    $region8: #{deberta_encoder.17} parent=1 // loop_exit
      _

</llo_original>
